<compile_context>
chip_gen: v6e
topology: v6e:2x2x1
jax: 0.10.0
libtpu: 0.0.40
codegen_flags: <defaults>
</compile_context>

<pallas_src>
import functools

import jax
import jax.numpy as jnp
from jax import lax
from jax.experimental import pallas as pl
from jax.experimental.pallas import tpu as pltpu

LEAKY_SLOPE = 0.01        # PyTorch F.leaky_relu default negative slope
BN_EPS = 1e-5


# ------------------------------- small helpers ------------------------------ #

def _cdiv(a, b):
    return -(-a // b)


@functools.lru_cache(maxsize=None)
def _vmem_limit_bytes():
    """Generation-aware scoped-VMEM limit (v7x: 64 MiB phys, v5e/v6e: 128 MiB)."""
    cap = 64 * 1024 * 1024                      # conservative fallback (v7x)
    try:
        info = pltpu.get_tpu_info()
        cap = int(getattr(info, "vmem_capacity_bytes", cap))
    except Exception:
        pass
    return min((cap * 3) // 4, 96 * 1024 * 1024)


def _compiler_params(dimension_semantics):
    return pltpu.CompilerParams(dimension_semantics=dimension_semantics,
                                vmem_limit_bytes=_vmem_limit_bytes())


def _bspec(shape, index_map, *, single_buffered=False):
    """BlockSpec; single-buffer operands whose block index never changes
    (fetched once -> double buffering would only double their VMEM footprint)."""
    if single_buffered:
        try:
            return pl.BlockSpec(shape, index_map, pipeline_mode=pl.Buffered(1))
        except (TypeError, AttributeError):     # older Pallas without pipeline_mode
            pass
    return pl.BlockSpec(shape, index_map)


# ----------------------------- Pallas kernels ------------------------------ #

def _pw_kernel(x_ref, w_ref, b_ref, o_ref):
    # conv1 (1x1) + folded BN + leaky_relu on a (TM, Cin) row tile.
    y = jnp.dot(x_ref[...], w_ref[...], preferred_element_type=jnp.float32)
    y = y + b_ref[...]
    o_ref[...] = jnp.where(y > 0, y, LEAKY_SLOPE * y).astype(o_ref.dtype)


def _pw_add_proj_kernel(x_ref, r_ref, w_ref, wr_ref, b_ref, o_ref):
    # conv3 (1x1) + bn3 + projection shortcut (1x1 conv + bn) + add + leaky_relu.
    y = jnp.dot(x_ref[...], w_ref[...], preferred_element_type=jnp.float32)
    y = y + jnp.dot(r_ref[...], wr_ref[...], preferred_element_type=jnp.float32)
    y = y + b_ref[...]
    o_ref[...] = jnp.where(y > 0, y, LEAKY_SLOPE * y).astype(o_ref.dtype)


def _pw_add_id_kernel(x_ref, r_ref, w_ref, b_ref, o_ref):
    # conv3 (1x1) + bn3 + identity shortcut + add + leaky_relu.
    y = jnp.dot(x_ref[...], w_ref[...], preferred_element_type=jnp.float32)
    y = y + r_ref[...].astype(jnp.float32) + b_ref[...]
    o_ref[...] = jnp.where(y > 0, y, LEAKY_SLOPE * y).astype(o_ref.dtype)


def _conv3x3_kernel(x_ref, w_ref, b_ref, o_ref, xp_ref, *, stride, TH, Hu, Wu):
    # x_ref : (H, W, C)     unpadded conv1 output for one batch element
    #                       (VMEM-resident across the row-tile grid axis)
    # w_ref : (3, 3*C, Co)  3x3 weights, BN folded, dx taps concatenated along K
    # b_ref : (1, Co)
    # o_ref : (TH, Wo, Co)  one output row tile
    # xp_ref: (Hp, Wp, C)   VMEM scratch: zero-padded image, built once per batch
    _, Wo, Co = o_ref.shape
    _, _, C = xp_ref.shape
    r = pl.program_id(1)

    # Build the zero-padded image in VMEM once per batch element (row tile 0).
    # This replaces the former jnp.pad HBM round trip of the conv1 activation.
    @pl.when(r == 0)
    def _():
        xp_ref[...] = jnp.zeros_like(xp_ref)
        xp_ref[1:1 + Hu, 1:1 + Wu, :] = x_ref[:Hu, :Wu, :]

    row0 = r * (TH * stride)
    acc = jnp.zeros((TH * Wo, Co), jnp.float32)
    for dy in range(3):
        if stride == 1:
            rows = xp_ref[pl.ds(row0 + dy, TH), :, :]                   # (TH, Wp, C)
        else:
            rows = xp_ref[pl.ds(row0 + dy, TH, stride=stride), :, :]    # strided rows
        taps = []
        for dx in range(3):
            if stride == 1:
                t = rows[:, dx:dx + Wo, :]
            else:
                # Keep only the Wo needed columns (no stride-x over-compute).
                # TODO(synk): a sublane-strided ref read would avoid this
                # phase-select copy on strided blocks.
                t = rows[:, dx:dx + Wo * stride, :].reshape(
                    TH, Wo, stride, C)[:, :, 0, :]
            taps.append(t.reshape(TH * Wo, C))
        # One K = 3*C matmul per dy instead of three K = C matmuls
        # (better MXU K fill, 3x fewer result pops / f32 accumulator adds).
        acc = acc + jnp.dot(jnp.concatenate(taps, axis=-1), w_ref[dy],
                            preferred_element_type=jnp.float32)

    y = acc + b_ref[...]
    y = jnp.where(y > 0, y, LEAKY_SLOPE * y)
    o_ref[...] = y.reshape(TH, Wo, Co).astype(o_ref.dtype)


# ----------------------------- pallas_call glue ----------------------------- #

def _pw_call(x2d, w, b, *, out_dtype, block_rows):
    M, Cin = x2d.shape
    Co = w.shape[1]
    TM = min(block_rows, M)
    return pl.pallas_call(
        _pw_kernel,
        out_shape=jax.ShapeDtypeStruct((M, Co), out_dtype),
        grid=(_cdiv(M, TM),),
        in_specs=[
            pl.BlockSpec((TM, Cin), lambda i: (i, 0)),
            _bspec((Cin, Co), lambda i: (0, 0), single_buffered=True),
            _bspec((1, Co), lambda i: (0, 0), single_buffered=True),
        ],
        out_specs=pl.BlockSpec((TM, Co), lambda i: (i, 0)),
        compiler_params=_compiler_params(("parallel",)),
    )(x2d, w, b)


def _pw_add_call(x2d, res2d, w, b, wres, *, out_dtype, block_rows):
    M, Cm = x2d.shape
    Co = w.shape[1]
    Cr = res2d.shape[1]
    TM = min(block_rows, M)
    if wres is not None:
        kernel = _pw_add_proj_kernel
        in_specs = [
            pl.BlockSpec((TM, Cm), lambda i: (i, 0)),
            pl.BlockSpec((TM, Cr), lambda i: (i, 0)),
            _bspec((Cm, Co), lambda i: (0, 0), single_buffered=True),
            _bspec((Cr, Co), lambda i: (0, 0), single_buffered=True),
            _bspec((1, Co), lambda i: (0, 0), single_buffered=True),
        ]
        args = (x2d, res2d, w, wres, b)
    else:
        kernel = _pw_add_id_kernel
        in_specs = [
            pl.BlockSpec((TM, Cm), lambda i: (i, 0)),
            pl.BlockSpec((TM, Cr), lambda i: (i, 0)),
            _bspec((Cm, Co), lambda i: (0, 0), single_buffered=True),
            _bspec((1, Co), lambda i: (0, 0), single_buffered=True),
        ]
        args = (x2d, res2d, w, b)
    return pl.pallas_call(
        kernel,
        out_shape=jax.ShapeDtypeStruct((M, Co), out_dtype),
        grid=(_cdiv(M, TM),),
        in_specs=in_specs,
        out_specs=pl.BlockSpec((TM, Co), lambda i: (i, 0)),
        compiler_params=_compiler_params(("parallel",)),
    )(*args)


def _conv3x3_call(x, w3, b, *, stride, Ho, Wo, out_dtype, target_rows=512):
    N, H, W, C = x.shape
    Co = w3.shape[-1]
    # Row tile sized so the matmul M (= TH * Wo) is ~target_rows.
    TH = max(1, min(Ho, target_rows // max(1, Wo)))
    RB = _cdiv(Ho, TH)
    # Padded-image scratch sized so even a partial last row tile reads in-bounds.
    Hp = (RB * TH - 1) * stride + 3
    Wp = Wo * stride + 2
    Hu = min(H, Hp - 1)   # rows/cols of x that can contribute (rest never read)
    Wu = min(W, Wp - 1)
    kernel = functools.partial(_conv3x3_kernel, stride=stride, TH=TH, Hu=Hu, Wu=Wu)
    return pl.pallas_call(
        kernel,
        out_shape=jax.ShapeDtypeStruct((N, Ho, Wo, Co), out_dtype),
        grid=(N, RB),
        in_specs=[
            pl.BlockSpec((None, H, W, C), lambda n, r: (n, 0, 0, 0)),
            _bspec((3, 3 * C, Co), lambda n, r: (0, 0, 0), single_buffered=True),
            _bspec((1, Co), lambda n, r: (0, 0), single_buffered=True),
        ],
        out_specs=pl.BlockSpec((None, TH, Wo, Co), lambda n, r: (n, r, 0, 0)),
        scratch_shapes=[pltpu.VMEM((Hp, Wp, C), x.dtype)],
        # TODO(synk): the row axis must stay "arbitrary" because the padded
        # scratch is built at r == 0; a halo-masked variant could mark it
        # "parallel" too to use both v7x TensorCores when N is small/odd.
        compiler_params=_compiler_params(("parallel", "arbitrary")),
    )(x, w3, b)


# ------------------------------ parameter setup ----------------------------- #

def _fold_bn(gamma, beta, mean, var):
    scale = gamma / jnp.sqrt(var + BN_EPS)
    bias = beta - mean * scale
    return scale, bias


def init_bottleneck_params(key, in_planes, planes):
    out_planes = 4 * planes
    ks = jax.random.split(key, 8)

    def bn_params(k, c):
        k1, k2, k3, k4 = jax.random.split(k, 4)
        gamma = 1.0 + 0.1 * jax.random.normal(k1, (c,), jnp.float32)
        beta = 0.1 * jax.random.normal(k2, (c,), jnp.float32)
        mean = 0.1 * jax.random.normal(k3, (c,), jnp.float32)
        var = 1.0 + 0.1 * jnp.abs(jax.random.normal(k4, (c,), jnp.float32))
        return _fold_bn(gamma, beta, mean, var)

    def w(k, shape, fan_in):
        return jax.random.normal(k, shape, jnp.float32) / jnp.sqrt(float(fan_in))

    p = {}
    p["w1"] = w(ks[0], (in_planes, planes), in_planes)
    p["s1"], p["b1"] = bn_params(ks[1], planes)
    p["w2"] = w(ks[2], (3, 3, planes, planes), 9 * planes)
    p["s2"], p["b2"] = bn_params(ks[3], planes)
    p["w3"] = w(ks[4], (planes, out_planes), planes)
    p["s3"], p["b3"] = bn_params(ks[5], out_planes)
    p["wsc"] = w(ks[6], (in_planes, out_planes), in_planes)
    p["ssc"], p["bsc"] = bn_params(ks[7], out_planes)
    return p


# ------------------------------ forward wrapper ----------------------------- #

def bottleneck_forward(x_nchw, params, *, in_planes, planes, stride=1,
                       block_rows=512, compute_dtype=jnp.bfloat16,
                       out_dtype=jnp.float32):
    out_planes = 4 * planes
    N, Cin, H, W = x_nchw.shape
    assert Cin == in_planes
    x = jnp.transpose(x_nchw, (0, 2, 3, 1)).astype(compute_dtype)       # NHWC

    # Fold BN scale into the conv weights (inference); biases stay f32.
    w1f = (params["w1"] * params["s1"][None, :]).astype(compute_dtype)
    b1 = params["b1"].reshape(1, -1).astype(jnp.float32)
    # (ky, kx, ci, co) -> (ky, kx*ci, co): dx taps concatenated along K.
    # TODO(synk): pad co to a multiple of 128 when planes < 128 for lane-dense
    # stores (unmasked vst) on early ResNet stages.
    w2f = (params["w2"] * params["s2"][None, None, None, :]
           ).reshape(3, 3 * planes, planes).astype(compute_dtype)
    b2 = params["b2"].reshape(1, -1).astype(jnp.float32)
    w3f = (params["w3"] * params["s3"][None, :]).astype(compute_dtype)
    b3 = params["b3"].reshape(1, -1).astype(jnp.float32)

    proj = (stride != 1) or (in_planes != out_planes)
    if proj:
        wscf = (params["wsc"] * params["ssc"][None, :]).astype(compute_dtype)
        b3 = b3 + params["bsc"].reshape(1, -1).astype(jnp.float32)
    else:
        wscf = None

    Ho = (H - 1) // stride + 1
    Wo = (W - 1) // stride + 1

    # conv1 (1x1) + bn1 + leaky_relu  --  row-tiled matmul.
    out1 = _pw_call(x.reshape(N * H * W, Cin), w1f, b1,
                    out_dtype=compute_dtype, block_rows=block_rows)
    out1 = out1.reshape(N, H, W, planes)

    # conv2 (3x3, pad=1, stride) + bn2 + leaky_relu; halo padded in VMEM.
    # TODO(synk): fusing conv1 into this kernel would also remove the out1 HBM
    # round trip (largest remaining structural win on v5e).
    out2 = _conv3x3_call(out1, w2f, b2, stride=stride, Ho=Ho, Wo=Wo,
                         out_dtype=compute_dtype)

    # Shortcut input.
    # TODO(synk): fold the strided subsample into the fused conv3 kernel's
    # index_map instead of materializing it with an XLA gather.
    xs = x[:, ::stride, ::stride, :] if stride != 1 else x
    xs2d = xs.reshape(N * Ho * Wo, Cin)

    # conv3 (1x1) + bn3 + shortcut + add + leaky_relu (single fused kernel).
    out = _pw_add_call(out2.reshape(N * Ho * Wo, planes), xs2d, w3f, b3, wscf,
                       out_dtype=out_dtype, block_rows=block_rows)
    out = out.reshape(N, Ho, Wo, out_planes)
    # TODO(synk): keeping NHWC / bf16 between blocks would drop this transpose
    # pass; kept for NCHW fp32 parity with the PyTorch module.
    return jnp.transpose(out, (0, 3, 1, 2))                             # NCHW


# ------------------------------ pure-JAX reference --------------------------- #

def _ref_forward(x_nchw, params, *, in_planes, planes, stride=1,
                 compute_dtype=jnp.bfloat16):
    def conv(x, w, s):  # NHWC, HWIO; same mixed precision as the kernels
        pad = (w.shape[0] - 1) // 2
        return lax.conv_general_dilated(
            x.astype(compute_dtype), w.astype(compute_dtype),
            window_strides=(s, s), padding=[(pad, pad), (pad, pad)],
            dimension_numbers=("NHWC", "HWIO", "NHWC"),
            preferred_element_type=jnp.float32)

    def lrelu(y):
        return jnp.where(y > 0, y, LEAKY_SLOPE * y)

    out_planes = 4 * planes
    x = jnp.transpose(x_nchw, (0, 2, 3, 1)).astype(jnp.float32)
    y = lrelu(conv(x, params["w1"][None, None], 1) * params["s1"] + params["b1"])
    y = lrelu(conv(y, params["w2"], stride) * params["s2"] + params["b2"])
    y = conv(y, params["w3"][None, None], 1) * params["s3"] + params["b3"]
    if stride != 1 or in_planes != out_planes:
        y = y + (conv(x, params["wsc"][None, None], stride) * params["ssc"]
                 + params["bsc"])
    else:
        y = y + x
    return jnp.transpose(lrelu(y), (0, 3, 1, 2))


# ------------------------------------ main ----------------------------------- #

if __name__ == "__main__":
    key = jax.random.PRNGKey(0)

    cases = [
        # (N, in_planes, planes, H, W, stride, block_rows)
        (2, 4, 4, 16, 16, 1, 192),     # projection shortcut, partial M tiles
        (1, 16, 16, 15, 15, 2, 512),   # strided conv2 + strided projection, odd H/W
        (2, 32, 8, 8, 8, 1, 512),      # identity shortcut
    ]
    for idx, (N, in_planes, planes, H, W, stride, block_rows) in enumerate(cases):
        k_x, k_p, key = jax.random.split(key, 3)
        x = jax.random.normal(k_x, (N, in_planes, H, W), jnp.float32)   # NCHW
        params = init_bottleneck_params(k_p, in_planes, planes)

        fwd = jax.jit(functools.partial(
            bottleneck_forward, in_planes=in_planes, planes=planes,
            stride=stride, block_rows=block_rows))
        out = jax.block_until_ready(fwd(x, params))
        ref = jax.block_until_ready(
            _ref_forward(x, params, in_planes=in_planes, planes=planes,
                         stride=stride))

        Ho = (H - 1) // stride + 1
        Wo = (W - 1) // stride + 1
        assert out.shape == (N, 4 * planes, Ho, Wo), (idx, out.shape)
        max_err = float(jnp.max(jnp.abs(out - ref)))
        assert jnp.allclose(out, ref, rtol=5e-2, atol=5e-2), (idx, max_err)

    print("KERNEL_OK")
</pallas_src>

<mosaic_0001>
module attributes {stable_mosaic.version = 11 : i64} {
  func.func @_pw_kernel(%arg0: i32, %arg1: memref<192x4xbf16, #tpu.memory_space<vmem>>, %arg2: memref<4x4xbf16, #tpu.memory_space<vmem>>, %arg3: memref<1x4xf32, #tpu.memory_space<vmem>>, %arg4: memref<192x4xbf16, #tpu.memory_space<vmem>>) attributes {dimension_semantics = [#tpu.dimension_semantics<parallel>], iteration_bounds = array<i64: 3>, scalar_prefetch = 0 : i64, scratch_operands = 0 : i64, tpu.core_type = #tpu.core_type<tc>, window_params = [{transform_indices = @transform_0, window_bounds = array<i64: 192, 4>}, {pipeline_mode = #tpu.pipeline_mode<synchronous>, transform_indices = @transform_1, window_bounds = array<i64: 4, 4>}, {pipeline_mode = #tpu.pipeline_mode<synchronous>, transform_indices = @transform_2, window_bounds = array<i64: 1, 4>}, {transform_indices = @transform_3, window_bounds = array<i64: 192, 4>}]} {
    %c0 = arith.constant 0 : index
    %c0_0 = arith.constant 0 : index
    %0 = vector.load %arg1[%c0, %c0_0] : memref<192x4xbf16, #tpu.memory_space<vmem>>, vector<192x4xbf16>
    %c0_1 = arith.constant 0 : index
    %c0_2 = arith.constant 0 : index
    %1 = vector.load %arg2[%c0_1, %c0_2] : memref<4x4xbf16, #tpu.memory_space<vmem>>, vector<4x4xbf16>
    %cst = arith.constant dense<0.000000e+00> : vector<192x4xf32>
    %2 = tpu.matmul %0, %1, %cst {dimension_numbers = #tpu.dot_dimension_numbers<[1], [0], [0], [1], [0, 0, 1, 1], [], []>} : vector<192x4xbf16>, vector<4x4xbf16>, vector<192x4xf32> -> vector<192x4xf32>
    %c0_3 = arith.constant 0 : index
    %c0_4 = arith.constant 0 : index
    %3 = vector.load %arg3[%c0_3, %c0_4] : memref<1x4xf32, #tpu.memory_space<vmem>>, vector<1x4xf32>
    %4 = vector.broadcast %3 : vector<1x4xf32> to vector<192x4xf32>
    %5 = arith.addf %2, %4 : vector<192x4xf32>
    %cst_5 = arith.constant 0.000000e+00 : f32
    %6 = vector.broadcast %cst_5 : f32 to vector<192x4xf32>
    %7 = arith.cmpf ogt, %5, %6 : vector<192x4xf32>
    %cst_6 = arith.constant 0.00999999977 : f32
    %8 = vector.broadcast %cst_6 : f32 to vector<192x4xf32>
    %9 = arith.mulf %8, %5 : vector<192x4xf32>
    %10 = arith.select %7, %5, %9 : vector<192x4xi1>, vector<192x4xf32>
    %11 = arith.truncf %10 : vector<192x4xf32> to vector<192x4xbf16>
    %c0_7 = arith.constant 0 : index
    %c0_8 = arith.constant 0 : index
    %12 = vector.load %arg4[%c0_7, %c0_8] : memref<192x4xbf16, #tpu.memory_space<vmem>>, vector<192x4xbf16>
    tpu.vector_store %arg4[%c0_7, %c0_8], %11 {strides = array<i32>} : memref<192x4xbf16, #tpu.memory_space<vmem>>, vector<192x4xbf16>,
    return
  }
  func.func @transform_0(%arg0: i32) -> (i32, i32) {
    %c0_i32 = arith.constant 0 : i32
    %c0_i32_0 = arith.constant 0 : i32
    return %arg0, %c0_i32 : i32, i32
  }
  func.func @transform_1(%arg0: i32) -> (i32, i32) {
    %c0_i32 = arith.constant 0 : i32
    %c0_i32_0 = arith.constant 0 : i32
    %c0_i32_1 = arith.constant 0 : i32
    return %c0_i32, %c0_i32_0 : i32, i32
  }
  func.func @transform_2(%arg0: i32) -> (i32, i32) {
    %c0_i32 = arith.constant 0 : i32
    %c0_i32_0 = arith.constant 0 : i32
    %c0_i32_1 = arith.constant 0 : i32
    return %c0_i32, %c0_i32_0 : i32, i32
  }
  func.func @transform_3(%arg0: i32) -> (i32, i32) {
    %c0_i32 = arith.constant 0 : i32
    %c0_i32_0 = arith.constant 0 : i32
    return %arg0, %c0_i32 : i32, i32
  }
}

module attributes {stable_mosaic.version = 11 : i64} {
  func.func @_pw_add_proj_kernel(%arg0: i32, %arg1: memref<192x4xbf16, #tpu.memory_space<vmem>>, %arg2: memref<192x4xbf16, #tpu.memory_space<vmem>>, %arg3: memref<4x16xbf16, #tpu.memory_space<vmem>>, %arg4: memref<4x16xbf16, #tpu.memory_space<vmem>>, %arg5: memref<1x16xf32, #tpu.memory_space<vmem>>, %arg6: memref<192x16xf32, #tpu.memory_space<vmem>>) attributes {dimension_semantics = [#tpu.dimension_semantics<parallel>], iteration_bounds = array<i64: 3>, scalar_prefetch = 0 : i64, scratch_operands = 0 : i64, tpu.core_type = #tpu.core_type<tc>, window_params = [{transform_indices = @transform_0, window_bounds = array<i64: 192, 4>}, {transform_indices = @transform_1, window_bounds = array<i64: 192, 4>}, {pipeline_mode = #tpu.pipeline_mode<synchronous>, transform_indices = @transform_2, window_bounds = array<i64: 4, 16>}, {pipeline_mode = #tpu.pipeline_mode<synchronous>, transform_indices = @transform_3, window_bounds = array<i64: 4, 16>}, {pipeline_mode = #tpu.pipeline_mode<synchronous>, transform_indices = @transform_4, window_bounds = array<i64: 1, 16>}, {transform_indices = @transform_5, window_bounds = array<i64: 192, 16>}]} {
    %c0 = arith.constant 0 : index
    %c0_0 = arith.constant 0 : index
    %0 = vector.load %arg1[%c0, %c0_0] : memref<192x4xbf16, #tpu.memory_space<vmem>>, vector<192x4xbf16>
    %c0_1 = arith.constant 0 : index
    %c0_2 = arith.constant 0 : index
    %1 = vector.load %arg3[%c0_1, %c0_2] : memref<4x16xbf16, #tpu.memory_space<vmem>>, vector<4x16xbf16>
    %cst = arith.constant dense<0.000000e+00> : vector<192x16xf32>
    %2 = tpu.matmul %0, %1, %cst {dimension_numbers = #tpu.dot_dimension_numbers<[1], [0], [0], [1], [0, 0, 1, 1], [], []>} : vector<192x4xbf16>, vector<4x16xbf16>, vector<192x16xf32> -> vector<192x16xf32>
    %c0_3 = arith.constant 0 : index
    %c0_4 = arith.constant 0 : index
    %3 = vector.load %arg2[%c0_3, %c0_4] : memref<192x4xbf16, #tpu.memory_space<vmem>>, vector<192x4xbf16>
    %c0_5 = arith.constant 0 : index
    %c0_6 = arith.constant 0 : index
    %4 = vector.load %arg4[%c0_5, %c0_6] : memref<4x16xbf16, #tpu.memory_space<vmem>>, vector<4x16xbf16>
    %cst_7 = arith.constant dense<0.000000e+00> : vector<192x16xf32>
    %5 = tpu.matmul %3, %4, %cst_7 {dimension_numbers = #tpu.dot_dimension_numbers<[1], [0], [0], [1], [0, 0, 1, 1], [], []>} : vector<192x4xbf16>, vector<4x16xbf16>, vector<192x16xf32> -> vector<192x16xf32>
    %6 = arith.addf %2, %5 : vector<192x16xf32>
    %c0_8 = arith.constant 0 : index
    %c0_9 = arith.constant 0 : index
    %7 = vector.load %arg5[%c0_8, %c0_9] : memref<1x16xf32, #tpu.memory_space<vmem>>, vector<1x16xf32>
    %8 = vector.broadcast %7 : vector<1x16xf32> to vector<192x16xf32>
    %9 = arith.addf %6, %8 : vector<192x16xf32>
    %cst_10 = arith.constant 0.000000e+00 : f32
    %10 = vector.broadcast %cst_10 : f32 to vector<192x16xf32>
    %11 = arith.cmpf ogt, %9, %10 : vector<192x16xf32>
    %cst_11 = arith.constant 0.00999999977 : f32
    %12 = vector.broadcast %cst_11 : f32 to vector<192x16xf32>
    %13 = arith.mulf %12, %9 : vector<192x16xf32>
    %14 = arith.select %11, %9, %13 : vector<192x16xi1>, vector<192x16xf32>
    %c0_12 = arith.constant 0 : index
    %c0_13 = arith.constant 0 : index
    %15 = vector.load %arg6[%c0_12, %c0_13] : memref<192x16xf32, #tpu.memory_space<vmem>>, vector<192x16xf32>
    tpu.vector_store %arg6[%c0_12, %c0_13], %14 {strides = array<i32>} : memref<192x16xf32, #tpu.memory_space<vmem>>, vector<192x16xf32>,
    return
  }
  func.func @transform_0(%arg0: i32) -> (i32, i32) {
    %c0_i32 = arith.constant 0 : i32
    %c0_i32_0 = arith.constant 0 : i32
    return %arg0, %c0_i32 : i32, i32
  }
  func.func @transform_1(%arg0: i32) -> (i32, i32) {
    %c0_i32 = arith.constant 0 : i32
    %c0_i32_0 = arith.constant 0 : i32
    return %arg0, %c0_i32 : i32, i32
  }
  func.func @transform_2(%arg0: i32) -> (i32, i32) {
    %c0_i32 = arith.constant 0 : i32
    %c0_i32_0 = arith.constant 0 : i32
    %c0_i32_1 = arith.constant 0 : i32
    return %c0_i32, %c0_i32_0 : i32, i32
  }
  func.func @transform_3(%arg0: i32) -> (i32, i32) {
    %c0_i32 = arith.constant 0 : i32
    %c0_i32_0 = arith.constant 0 : i32
    %c0_i32_1 = arith.constant 0 : i32
    return %c0_i32, %c0_i32_0 : i32, i32
  }
  func.func @transform_4(%arg0: i32) -> (i32, i32) {
    %c0_i32 = arith.constant 0 : i32
    %c0_i32_0 = arith.constant 0 : i32
    %c0_i32_1 = arith.constant 0 : i32
    return %c0_i32, %c0_i32_0 : i32, i32
  }
  func.func @transform_5(%arg0: i32) -> (i32, i32) {
    %c0_i32 = arith.constant 0 : i32
    %c0_i32_0 = arith.constant 0 : i32
    return %arg0, %c0_i32 : i32, i32
  }
}

module attributes {stable_mosaic.version = 11 : i64} {
  func.func @_conv3x3_kernel(%arg0: i32, %arg1: i32, %arg2: memref<1x16x16x4xbf16, #tpu.memory_space<vmem>>, %arg3: memref<3x12x4xbf16, #tpu.memory_space<vmem>>, %arg4: memref<1x4xf32, #tpu.memory_space<vmem>>, %arg5: memref<1x16x16x4xbf16, #tpu.memory_space<vmem>>, %arg6: memref<18x18x4xbf16, #tpu.memory_space<vmem>>) attributes {dimension_semantics = [#tpu.dimension_semantics<parallel>, #tpu.dimension_semantics<arbitrary>], iteration_bounds = array<i64: 2, 1>, scalar_prefetch = 0 : i64, scratch_operands = 1 : i64, tpu.core_type = #tpu.core_type<tc>, window_params = [{transform_indices = @transform_0, window_bounds = array<i64: 1, 16, 16, 4>}, {pipeline_mode = #tpu.pipeline_mode<synchronous>, transform_indices = @transform_1, window_bounds = array<i64: 3, 12, 4>}, {pipeline_mode = #tpu.pipeline_mode<synchronous>, transform_indices = @transform_2, window_bounds = array<i64: 1, 4>}, {transform_indices = @transform_3, window_bounds = array<i64: 1, 16, 16, 4>}]} {
    %c0_i32 = arith.constant 0 : i32
    %0 = arith.cmpi eq, %arg1, %c0_i32 : i32
    %1 = arith.extui %0 : i1 to i32
    %c0_i32_0 = arith.constant 0 : i32
    %2 = arith.cmpi ne, %1, %c0_i32_0 : i32
    scf.if %2 {
      %cst_25 = arith.constant 0.000000e+00 : bf16
      %60 = vector.broadcast %cst_25 : bf16 to vector<18x18x4xbf16>
      %c0_26 = arith.constant 0 : index
      %c0_27 = arith.constant 0 : index
      %c0_28 = arith.constant 0 : index
      %61 = vector.load %arg6[%c0_26, %c0_27, %c0_28] : memref<18x18x4xbf16, #tpu.memory_space<vmem>>, vector<18x18x4xbf16>
      tpu.vector_store %arg6[%c0_26, %c0_27, %c0_28], %60 {strides = array<i32>} : memref<18x18x4xbf16, #tpu.memory_space<vmem>>, vector<18x18x4xbf16>,
      %c0_29 = arith.constant 0 : index
      %c0_30 = arith.constant 0 : index
      %c0_31 = arith.constant 0 : index
      %c0_32 = arith.constant 0 : index
      %62 = vector.load %arg2[%c0_29, %c0_30, %c0_31, %c0_32] : memref<1x16x16x4xbf16, #tpu.memory_space<vmem>>, vector<1x16x16x4xbf16>
      %63 = vector.shape_cast %62 : vector<1x16x16x4xbf16> to vector<16x16x4xbf16>
      %c1_33 = arith.constant 1 : index
      %c1_34 = arith.constant 1 : index
      %c0_35 = arith.constant 0 : index
      %64 = vector.load %arg6[%c1_33, %c1_34, %c0_35] : memref<18x18x4xbf16, #tpu.memory_space<vmem>>, vector<16x16x4xbf16>
      tpu.vector_store %arg6[%c1_33, %c1_34, %c0_35], %63 {strides = array<i32>} : memref<18x18x4xbf16, #tpu.memory_space<vmem>>, vector<16x16x4xbf16>,
    } else {
    }
    %c16_i32 = arith.constant 16 : i32
    %3 = arith.muli %arg1, %c16_i32 : i32
    %cst = arith.constant 0.000000e+00 : f32
    %4 = vector.broadcast %cst : f32 to vector<256x4xf32>
    %c0_i32_1 = arith.constant 0 : i32
    %5 = arith.addi %3, %c0_i32_1 : i32
    %6 = arith.index_cast %5 : i32 to index
    %c0 = arith.constant 0 : index
    %c0_2 = arith.constant 0 : index
    %7 = vector.load %arg6[%6, %c0, %c0_2] : memref<18x18x4xbf16, #tpu.memory_space<vmem>>, vector<16x18x4xbf16>
    %8 = vector.extract_strided_slice %7 {offsets = [0, 0, 0], sizes = [16, 16, 4], strides = [1, 1, 1]} : vector<16x18x4xbf16> to vector<16x16x4xbf16>
    %9 = vector.shape_cast %8 : vector<16x16x4xbf16> to vector<256x4xbf16>
    %10 = vector.extract_strided_slice %7 {offsets = [0, 1, 0], sizes = [16, 16, 4], strides = [1, 1, 1]} : vector<16x18x4xbf16> to vector<16x16x4xbf16>
    %11 = vector.shape_cast %10 : vector<16x16x4xbf16> to vector<256x4xbf16>
    %12 = vector.extract_strided_slice %7 {offsets = [0, 2, 0], sizes = [16, 16, 4], strides = [1, 1, 1]} : vector<16x18x4xbf16> to vector<16x16x4xbf16>
    %13 = vector.shape_cast %12 : vector<16x16x4xbf16> to vector<256x4xbf16>
    %14 = tpu.concatenate %9, %11, %13 in 1 : vector<256x4xbf16>, vector<256x4xbf16>, vector<256x4xbf16> -> vector<256x12xbf16>
    %c0_3 = arith.constant 0 : index
    %c0_4 = arith.constant 0 : index
    %c0_5 = arith.constant 0 : index
    %15 = vector.load %arg3[%c0_3, %c0_4, %c0_5] : memref<3x12x4xbf16, #tpu.memory_space<vmem>>, vector<1x12x4xbf16>
    %16 = vector.shape_cast %15 : vector<1x12x4xbf16> to vector<12x4xbf16>
    %cst_6 = arith.constant dense<0.000000e+00> : vector<256x4xf32>
    %17 = tpu.matmul %14, %16, %cst_6 {dimension_numbers = #tpu.dot_dimension_numbers<[1], [0], [0], [1], [0, 0, 1, 1], [], []>} : vector<256x12xbf16>, vector<12x4xbf16>, vector<256x4xf32> -> vector<256x4xf32>
    %18 = arith.addf %4, %17 : vector<256x4xf32>
    %c1_i32 = arith.constant 1 : i32
    %19 = arith.addi %3, %c1_i32 : i32
    %20 = arith.index_cast %19 : i32 to index
    %c0_7 = arith.constant 0 : index
    %c0_8 = arith.constant 0 : index
    %21 = vector.load %arg6[%20, %c0_7, %c0_8] : memref<18x18x4xbf16, #tpu.memory_space<vmem>>, vector<16x18x4xbf16>
    %22 = vector.extract_strided_slice %21 {offsets = [0, 0, 0], sizes = [16, 16, 4], strides = [1, 1, 1]} : vector<16x18x4xbf16> to vector<16x16x4xbf16>
    %23 = vector.shape_cast %22 : vector<16x16x4xbf16> to vector<256x4xbf16>
    %24 = vector.extract_strided_slice %21 {offsets = [0, 1, 0], sizes = [16, 16, 4], strides = [1, 1, 1]} : vector<16x18x4xbf16> to vector<16x16x4xbf16>
    %25 = vector.shape_cast %24 : vector<16x16x4xbf16> to vector<256x4xbf16>
    %26 = vector.extract_strided_slice %21 {offsets = [0, 2, 0], sizes = [16, 16, 4], strides = [1, 1, 1]} : vector<16x18x4xbf16> to vector<16x16x4xbf16>
    %27 = vector.shape_cast %26 : vector<16x16x4xbf16> to vector<256x4xbf16>
    %28 = tpu.concatenate %23, %25, %27 in 1 : vector<256x4xbf16>, vector<256x4xbf16>, vector<256x4xbf16> -> vector<256x12xbf16>
    %c1 = arith.constant 1 : index
    %c0_9 = arith.constant 0 : index
    %c0_10 = arith.constant 0 : index
    %29 = vector.load %arg3[%c1, %c0_9, %c0_10] : memref<3x12x4xbf16, #tpu.memory_space<vmem>>, vector<1x12x4xbf16>
    %30 = vector.shape_cast %29 : vector<1x12x4xbf16> to vector<12x4xbf16>
    %cst_11 = arith.constant dense<0.000000e+00> : vector<256x4xf32>
    %31 = tpu.matmul %28, %30, %cst_11 {dimension_numbers = #tpu.dot_dimension_numbers<[1], [0], [0], [1], [0, 0, 1, 1], [], []>} : vector<256x12xbf16>, vector<12x4xbf16>, vector<256x4xf32> -> vector<256x4xf32>
    %32 = arith.addf %18, %31 : vector<256x4xf32>
    %c2_i32 = arith.constant 2 : i32
    %33 = arith.addi %3, %c2_i32 : i32
    %34 = arith.index_cast %33 : i32 to index
    %c0_12 = arith.constant 0 : index
    %c0_13 = arith.constant 0 : index
    %35 = vector.load %arg6[%34, %c0_12, %c0_13] : memref<18x18x4xbf16, #tpu.memory_space<vmem>>, vector<16x18x4xbf16>
    %36 = vector.extract_strided_slice %35 {offsets = [0, 0, 0], sizes = [16, 16, 4], strides = [1, 1, 1]} : vector<16x18x4xbf16> to vector<16x16x4xbf16>
    %37 = vector.shape_cast %36 : vector<16x16x4xbf16> to vector<256x4xbf16>
    %38 = vector.extract_strided_slice %35 {offsets = [0, 1, 0], sizes = [16, 16, 4], strides = [1, 1, 1]} : vector<16x18x4xbf16> to vector<16x16x4xbf16>
    %39 = vector.shape_cast %38 : vector<16x16x4xbf16> to vector<256x4xbf16>
    %40 = vector.extract_strided_slice %35 {offsets = [0, 2, 0], sizes = [16, 16, 4], strides = [1, 1, 1]} : vector<16x18x4xbf16> to vector<16x16x4xbf16>
    %41 = vector.shape_cast %40 : vector<16x16x4xbf16> to vector<256x4xbf16>
    %42 = tpu.concatenate %37, %39, %41 in 1 : vector<256x4xbf16>, vector<256x4xbf16>, vector<256x4xbf16> -> vector<256x12xbf16>
    %c2 = arith.constant 2 : index
    %c0_14 = arith.constant 0 : index
    %c0_15 = arith.constant 0 : index
    %43 = vector.load %arg3[%c2, %c0_14, %c0_15] : memref<3x12x4xbf16, #tpu.memory_space<vmem>>, vector<1x12x4xbf16>
    %44 = vector.shape_cast %43 : vector<1x12x4xbf16> to vector<12x4xbf16>
    %cst_16 = arith.constant dense<0.000000e+00> : vector<256x4xf32>
    %45 = tpu.matmul %42, %44, %cst_16 {dimension_numbers = #tpu.dot_dimension_numbers<[1], [0], [0], [1], [0, 0, 1, 1], [], []>} : vector<256x12xbf16>, vector<12x4xbf16>, vector<256x4xf32> -> vector<256x4xf32>
    %46 = arith.addf %32, %45 : vector<256x4xf32>
    %c0_17 = arith.constant 0 : index
    %c0_18 = arith.constant 0 : index
    %47 = vector.load %arg4[%c0_17, %c0_18] : memref<1x4xf32, #tpu.memory_space<vmem>>, vector<1x4xf32>
    %48 = vector.broadcast %47 : vector<1x4xf32> to vector<256x4xf32>
    %49 = arith.addf %46, %48 : vector<256x4xf32>
    %cst_19 = arith.constant 0.000000e+00 : f32
    %50 = vector.broadcast %cst_19 : f32 to vector<256x4xf32>
    %51 = arith.cmpf ogt, %49, %50 : vector<256x4xf32>
    %cst_20 = arith.constant 0.00999999977 : f32
    %52 = vector.broadcast %cst_20 : f32 to vector<256x4xf32>
    %53 = arith.mulf %52, %49 : vector<256x4xf32>
    %54 = arith.select %51, %49, %53 : vector<256x4xi1>, vector<256x4xf32>
    %55 = vector.shape_cast %54 : vector<256x4xf32> to vector<16x16x4xf32>
    %56 = arith.truncf %55 : vector<16x16x4xf32> to vector<16x16x4xbf16>
    %c0_21 = arith.constant 0 : index
    %c0_22 = arith.constant 0 : index
    %c0_23 = arith.constant 0 : index
    %c0_24 = arith.constant 0 : index
    %57 = vector.load %arg5[%c0_21, %c0_22, %c0_23, %c0_24] : memref<1x16x16x4xbf16, #tpu.memory_space<vmem>>, vector<1x16x16x4xbf16>
    %58 = vector.shape_cast %57 : vector<1x16x16x4xbf16> to vector<16x16x4xbf16>
    %59 = vector.shape_cast %56 : vector<16x16x4xbf16> to vector<1x16x16x4xbf16>
    tpu.vector_store %arg5[%c0_21, %c0_22, %c0_23, %c0_24], %59 {strides = array<i32>} : memref<1x16x16x4xbf16, #tpu.memory_space<vmem>>, vector<1x16x16x4xbf16>,
    return
  }
  func.func @transform_0(%arg0: i32, %arg1: i32) -> (i32, i32, i32, i32) {
    %c0_i32 = arith.constant 0 : i32
    %c0_i32_0 = arith.constant 0 : i32
    %c0_i32_1 = arith.constant 0 : i32
    %c0_i32_2 = arith.constant 0 : i32
    return %arg0, %c0_i32, %c0_i32_0, %c0_i32_1 : i32, i32, i32, i32
  }
  func.func @transform_1(%arg0: i32, %arg1: i32) -> (i32, i32, i32) {
    %c0_i32 = arith.constant 0 : i32
    %c0_i32_0 = arith.constant 0 : i32
    %c0_i32_1 = arith.constant 0 : i32
    %c0_i32_2 = arith.constant 0 : i32
    return %c0_i32, %c0_i32_0, %c0_i32_1 : i32, i32, i32
  }
  func.func @transform_2(%arg0: i32, %arg1: i32) -> (i32, i32) {
    %c0_i32 = arith.constant 0 : i32
    %c0_i32_0 = arith.constant 0 : i32
    %c0_i32_1 = arith.constant 0 : i32
    return %c0_i32, %c0_i32_0 : i32, i32
  }
  func.func @transform_3(%arg0: i32, %arg1: i32) -> (i32, i32, i32, i32) {
    %c0_i32 = arith.constant 0 : i32
    %c0_i32_0 = arith.constant 0 : i32
    %c0_i32_1 = arith.constant 0 : i32
    return %arg0, %arg1, %c0_i32, %c0_i32_0 : i32, i32, i32, i32
  }
}

</mosaic_0001>

<llo_original>
// kernel: bottleneck_forward.3
$region0: #{bottleneck_forward.3}
  #allocation0 [shape = 'u32[]', space=smem, size = 0x4, offset = 0x4, fixed_abs, tag = 'smem constant byte address 0x4 - core index']
  #allocation1 [shape = 'u32[144,128]{1,0:T(1,128)}', space=vmem, size = 0x12000, scoped, tag = 'internal scratch']
  %s0 = inlined_call_operand.vmem [shape: bf16[512,4], index: 0, kind: input, shape index: {}]
  %s1 = inlined_call_operand.vmem [shape: bf16[4,4], index: 1, kind: input, shape index: {}]
  %s2 = inlined_call_operand.vmem [shape: f32[1,4], index: 2, kind: input, shape index: {}]
  %s3 = inlined_call_operand.vmem [shape: bf16[512,4], index: 3, kind: output, shape index: {}]
  %s4 = sld [smem:[#allocation0]]
  $region89: #{bottleneck_forward.3} parent=0
    _
  %s6 = ssub.s32 1, %s4
  %s7 = scalar_select 0, %s6, %s4
  $region1: #{bottleneck_forward.3} parent=0
    #allocation2 [shape = 'u8[98304]{0}', space=vmem, size = 0x18000, scoped, tag = 'output window, operand 0']
    loop: start=0, step=1, limit=5
    $region2: #{bottleneck_forward.3} parent=1 // loop_pre_header
      _
    $region3: #{bottleneck_forward.3} parent=1 // loop_header
      %s9 = sphi 0, %s13
      %p10 = scmp.ge.s32.totalorder %s9, 5
      %s19 = sphi 0, %s21
      %s22 = sphi 0, %s19
      %s23 = sphi 0, %s22
      %s39 = sphi 0, %s23
      %s43 = sphi 0, %s43
      %s45 = sphi 0, %s43
      %s46 = sphi 0, %s45
      %s60 = sphi 0, %s46
      %s64 = sphi 0, %s64
      %s66 = sphi 0, %s64
      %s67 = sphi 0, %s66
      %s81 = sphi 0, %s67
      %s87 = sphi 0, %s89
      %s90 = sphi 0, %s87
      %s91 = sphi 0, %s90
      %s107 = sphi 0, %s91
    $region4: #{bottleneck_forward.3} parent=1 // loop_header_branch
      %12 = sbr.rel (%p10) target = $region8
    $region5: #{bottleneck_forward.3} parent=1 // loop_body
      %s14 = ssub.s32 %s9, 1
      %s15 = ssub.s32 %s9, 2
      %s16 = sadd.s32 %s9, 1
      %s17 = ssub.s32 %s9, %s16
      %p18 = scmp.eq.s32.totalorder %s17, 0
      %s20 = sadd.s32 %s19, 1
      %s21 = scalar_select %p18, %s19, %s20
      %p24 = pneg %p18
      %p25 = scmp.eq.s32.totalorder %s9, 2
      %p26 = por %p24, %p25
      %p27 = scmp.ne.s32.totalorder %s19, %s22
      %p28 = scmp.eq.s32.totalorder %s9, 0
      %p29 = por %p27, %p28
      %p30 = scmp.ne.s32.totalorder %s19, %s22
      %p31 = scmp.eq.s32.totalorder %s14, 2
      %p32 = por %p30, %p31
      %p33 = scmp.ne.s32.totalorder %s22, %s23
      %p34 = scmp.eq.s32.totalorder %s14, 0
      %p35 = por %p33, %p34
      %p36 = scmp.ne.s32.totalorder %s22, %s23
      %p37 = scmp.eq.s32.totalorder %s15, 2
      %p38 = por %p36, %p37
      %p40 = scmp.ne.s32.totalorder %s23, %s39
      %p41 = scmp.eq.s32.totalorder %s15, 0
      %p42 = por %p40, %p41
      %s44 = sadd.s32 %s43, 1
      %p47 = scmp.eq.s32.totalorder %s9, 2
      %p48 = scmp.ne.s32.totalorder %s43, %s45
      %p49 = scmp.eq.s32.totalorder %s9, 0
      %p50 = por %p48, %p49
      %p51 = scmp.ne.s32.totalorder %s43, %s45
      %p52 = scmp.eq.s32.totalorder %s14, 2
      %p53 = por %p51, %p52
      %p54 = scmp.ne.s32.totalorder %s45, %s46
      %p55 = scmp.eq.s32.totalorder %s14, 0
      %p56 = por %p54, %p55
      %p57 = scmp.ne.s32.totalorder %s45, %s46
      %p58 = scmp.eq.s32.totalorder %s15, 2
      %p59 = por %p57, %p58
      %p61 = scmp.ne.s32.totalorder %s46, %s60
      %p62 = scmp.eq.s32.totalorder %s15, 0
      %p63 = por %p61, %p62
      %s65 = sadd.s32 %s64, 1
      %p68 = scmp.eq.s32.totalorder %s9, 2
      %p69 = scmp.ne.s32.totalorder %s64, %s66
      %p70 = scmp.eq.s32.totalorder %s9, 0
      %p71 = por %p69, %p70
      %p72 = scmp.ne.s32.totalorder %s64, %s66
      %p73 = scmp.eq.s32.totalorder %s14, 2
      %p74 = por %p72, %p73
      %p75 = scmp.ne.s32.totalorder %s66, %s67
      %p76 = scmp.eq.s32.totalorder %s14, 0
      %p77 = por %p75, %p76
      %p78 = scmp.ne.s32.totalorder %s66, %s67
      %p79 = scmp.eq.s32.totalorder %s15, 2
      %p80 = por %p78, %p79
      %p82 = scmp.ne.s32.totalorder %s67, %s81
      %p83 = scmp.eq.s32.totalorder %s15, 0
      %p84 = por %p82, %p83
      %s85 = ssub.s32 %s9, %s16
      %p86 = scmp.eq.s32.totalorder %s85, 0
      %s88 = sadd.s32 %s87, 1
      %s89 = scalar_select %p86, %s87, %s88
      %p92 = pneg %p86
      %p93 = scmp.eq.s32.totalorder %s9, 2
      %p94 = por %p92, %p93
      %p95 = scmp.ne.s32.totalorder %s87, %s90
      %p96 = scmp.eq.s32.totalorder %s9, 0
      %p97 = por %p95, %p96
      %p98 = scmp.ne.s32.totalorder %s87, %s90
      %p99 = scmp.eq.s32.totalorder %s14, 2
      %p100 = por %p98, %p99
      %p101 = scmp.ne.s32.totalorder %s90, %s91
      %p102 = scmp.eq.s32.totalorder %s14, 0
      %p103 = por %p101, %p102
      %p104 = scmp.ne.s32.totalorder %s90, %s91
      %p105 = scmp.eq.s32.totalorder %s15, 2
      %p106 = por %p104, %p105
      %p108 = scmp.ne.s32.totalorder %s91, %s107
      %p109 = scmp.eq.s32.totalorder %s15, 0
      %p110 = por %p108, %p109
      %p111 = scmp.le.s32.totalorder 1, %s9
      %p112 = scmp.lt.s32.totalorder %s9, 4
      %p113 = pnand %p111, %p112
      %p114 = pneg %p113
      // Predicated region
      $region9: #{bottleneck_forward.3} parent=5 // pred_check
        _
      $region10: #{bottleneck_forward.3} parent=5 // pred_check_branch
        %116 = sbr.rel (%p113) target = $region12
      $region11: #{bottleneck_forward.3} parent=5 // pred_region
        %s117 = ssub.s32 %s9, 1
        // Predicated region
        $region13: #{bottleneck_forward.3} parent=11 // pred_check
          %p118 = pneg %p56
        $region14: #{bottleneck_forward.3} parent=11 // pred_check_branch
          %120 = sbr.rel (%p118) target = $region16
        $region15: #{bottleneck_forward.3} parent=11 // pred_region
          _
        $region16: #{bottleneck_forward.3} parent=11 // pred_fallthru
          _
        // Predicated region
        $region17: #{bottleneck_forward.3} parent=11 // pred_check
          %p121 = pneg %p77
        $region18: #{bottleneck_forward.3} parent=11 // pred_check_branch
          %123 = sbr.rel (%p121) target = $region20
        $region19: #{bottleneck_forward.3} parent=11 // pred_region
          _
        $region20: #{bottleneck_forward.3} parent=11 // pred_fallthru
          _
      $region12: #{bottleneck_forward.3} parent=5 // pred_fallthru
        _
      %p124 = scmp.lt.s32.totalorder %s9, 3
      // Predicated region
      $region21: #{bottleneck_forward.3} parent=5 // pred_check
        %p125 = pneg %p124
      $region22: #{bottleneck_forward.3} parent=5 // pred_check_branch
        %127 = sbr.rel (%p125) target = $region24
      $region23: #{bottleneck_forward.3} parent=5 // pred_region
        // Predicated region
        $region25: #{bottleneck_forward.3} parent=23 // pred_check
          %p128 = pneg %p29
        $region26: #{bottleneck_forward.3} parent=23 // pred_check_branch
          %130 = sbr.rel (%p128) target = $region28
        $region27: #{bottleneck_forward.3} parent=23 // pred_region
          %s131 = smul.u32 24, %s9
          %s132 = ssub.s32 64, %s131
          %p133 = scmp.lt.s32.totalorder %s132, 24
          %s134 = scalar_select %p133, %s132, 24
          %s135 = smul.u32 64, %s134
          %p136 = scmp.lt.s32.totalorder %s131, 63
          %s137 = scalar_select %p136, %s131, 63
          %s138 = smul.addr %s137, 4
          %s139 = scalar_lea.vmem %s0, %s138
          %s140 = smul.u32 24, %s9
          %s141 = ssub.s32 64, %s140
          %p142 = scmp.lt.s32.totalorder %s141, 24
          %s143 = scalar_select %p142, %s141, 24
          %s144 = smul.u32 64, %s143
        $region28: #{bottleneck_forward.3} parent=23 // pred_fallthru
          _
      $region24: #{bottleneck_forward.3} parent=5 // pred_fallthru
        _
      %p145 = scmp.le.s32.totalorder 1, %s9
      %p146 = scmp.lt.s32.totalorder %s9, 4
      %p147 = pnand %p145, %p146
      %p148 = pneg %p147
      // Predicated region
      $region29: #{bottleneck_forward.3} parent=5 // pred_check
        _
      $region30: #{bottleneck_forward.3} parent=5 // pred_check_branch
        %150 = sbr.rel (%p147) target = $region32
      $region31: #{bottleneck_forward.3} parent=5 // pred_region
        %s151 = ssub.s32 %s9, 1
        %s152 = smul.u32 24, %s14
        %s153 = ssub.s32 64, %s152
        %p154 = scmp.lt.s32.totalorder %s153, 24
        %s155 = scalar_select %p154, %s153, 24
        %s156 = smul.u32 64, %s155
        %p157 = scmp.lt.s32.totalorder %s152, 63
        %s158 = scalar_select %p157, %s152, 63
        %s159 = smul.addr %s158, 4
        %s160 = scalar_lea.vmem %s0, %s159
        %p161 = pneg %p35
        %p162 = pneg %p32
        %p163 = pneg %p56
        %p164 = pneg %p53
        %p165 = pneg %p77
        %p166 = pneg %p74
        %p167 = pneg %p103
        %p168 = pneg %p100
        %s169 = sand.u32 %s90, 1
        %s170 = sand.u32 %s90, 1
        %s171 = smul.addr %s170, 96
        %s172 = scalar_lea.vmem [#allocation2], %s171
        %s173 = smul.u32 24, %s14
        %s174 = ssub.s32 64, %s173
        %p175 = scmp.lt.s32.totalorder %s174, 24
        %s176 = scalar_select %p175, %s174, 24
        %s177 = smul.u32 64, %s176
        %p178 = scmp.lt.s32.totalorder %s173, 63
        %s179 = scalar_select %p178, %s173, 63
        %s180 = smul.addr %s179, 4
        %s181 = scalar_lea.vmem %s0, %s180
        %s182 = smul.u32 24, %s14
        %s183 = ssub.s32 64, %s182
        %p184 = scmp.lt.s32.totalorder %s183, 24
        %s185 = scalar_select %p184, %s183, 24
        %s186 = smul.u32 64, %s185
        %s187 = smul.u32 24, %s14
        %s188 = ssub.s32 64, %s187
        %p189 = scmp.lt.s32.totalorder %s188, 24
        %s190 = scalar_select %p189, %s188, 24
        %s191 = smul.u32 64, %s190
        %v193 = vld [vmem:[%s181] sm:$0xf]
        %v194 = vld [vmem:[%s181 + $0x4] sm:$0xf]
        %v195 = vld [vmem:[%s181 + $0x8] sm:$0xf]
        %v196 = vld [vmem:[%s181 + $0xc] sm:$0xf]
        %v197 = vld [vmem:[%s181 + $0x10] sm:$0xf]
        %v198 = vld [vmem:[%s181 + $0x14] sm:$0xf]
        %v199 = vld [vmem:[%s181 + $0x18] sm:$0xf]
        %v200 = vld [vmem:[%s181 + $0x1c] sm:$0xf]
        %v201 = vld [vmem:[%s181 + $0x20] sm:$0xf]
        %v202 = vld [vmem:[%s181 + $0x24] sm:$0xf]
        %v203 = vld [vmem:[%s181 + $0x28] sm:$0xf]
        %v204 = vld [vmem:[%s181 + $0x2c] sm:$0xf]
        %v205 = vld [vmem:[%s181 + $0x30] sm:$0xf]
        %v206 = vld [vmem:[%s181 + $0x34] sm:$0xf]
        %v207 = vld [vmem:[%s181 + $0x38] sm:$0xf]
        %v208 = vld [vmem:[%s181 + $0x3c] sm:$0xf]
        %v209 = vld [vmem:[%s181 + $0x40] sm:$0xf]
        %v210 = vld [vmem:[%s181 + $0x44] sm:$0xf]
        %v211 = vld [vmem:[%s181 + $0x48] sm:$0xf]
        %v212 = vld [vmem:[%s181 + $0x4c] sm:$0xf]
        %v213 = vld [vmem:[%s181 + $0x50] sm:$0xf]
        %v214 = vld [vmem:[%s181 + $0x54] sm:$0xf]
        %v215 = vld [vmem:[%s181 + $0x58] sm:$0xf]
        %v216 = vld [vmem:[%s181 + $0x5c] sm:$0xf]
        %v217 = vld [vmem:[%s1] sm:$0x3]
        %v218 = vld [vmem:[%s2] sm:$0x1]
        %v220 = vlaneseq
        %v221 = vshrl.u32 %v220, 7
        %v222 = vsub.s32 0, %v221
        %v223 = vrot.slane %v218, %v222
        %v249 = vunpack.c.l.b16 %v193
        %v250 = vunpack.c.l.b16 %v194
        %v251 = vunpack.c.l.b16 %v195
        %v252 = vunpack.c.l.b16 %v196
        %v253 = vunpack.c.l.b16 %v197
        %v254 = vunpack.c.l.b16 %v198
        %v255 = vunpack.c.l.b16 %v199
        %v256 = vunpack.c.l.b16 %v200
        %v257 = vunpack.c.l.b16 %v201
        %v258 = vunpack.c.l.b16 %v202
        %v259 = vunpack.c.l.b16 %v203
        %v260 = vunpack.c.l.b16 %v204
        %v261 = vunpack.c.l.b16 %v205
        %v262 = vunpack.c.l.b16 %v206
        %v263 = vunpack.c.l.b16 %v207
        %v264 = vunpack.c.l.b16 %v208
        %v265 = vunpack.c.l.b16 %v209
        %v266 = vunpack.c.l.b16 %v210
        %v267 = vunpack.c.l.b16 %v211
        %v268 = vunpack.c.l.b16 %v212
        %v269 = vunpack.c.l.b16 %v213
        %v270 = vunpack.c.l.b16 %v214
        %v271 = vunpack.c.l.b16 %v215
        %v272 = vunpack.c.l.b16 %v216
        %v273 = vpack.c.b16 %v250, %v249
        %v274 = vpack.c.b16 %v252, %v251
        %v275 = vpack.c.b16 %v254, %v253
        %v276 = vpack.c.b16 %v256, %v255
        %v277 = vpack.c.b16 %v258, %v257
        %v278 = vpack.c.b16 %v260, %v259
        %v279 = vpack.c.b16 %v262, %v261
        %v280 = vpack.c.b16 %v264, %v263
        %v281 = vpack.c.b16 %v266, %v265
        %v282 = vpack.c.b16 %v268, %v267
        %v283 = vpack.c.b16 %v270, %v269
        %v284 = vpack.c.b16 %v272, %v271
        %vm285 = vcmask 31744
        %v287 = vsel %vm285, %v273, 0
        %v290 = vsel %vm285, %v274, 0
        %v293 = vsel %vm285, %v275, 0
        %v296 = vsel %vm285, %v276, 0
        %v299 = vsel %vm285, %v277, 0
        %v302 = vsel %vm285, %v278, 0
        %v305 = vsel %vm285, %v279, 0
        %v308 = vsel %vm285, %v280, 0
        %v311 = vsel %vm285, %v281, 0
        %v314 = vsel %vm285, %v282, 0
        %v317 = vsel %vm285, %v283, 0
        %v320 = vsel %vm285, %v284, 0
        %vm322 = vcmask 1041408
        %v324 = vsel %vm322, %v217, 0
        %326 = vmatprep.subr.bf16.mxu0 0
        %327 = vmatpush1.bf16.msra.mxu0 0
        %328 = vmatprep.subr.bf16.mxu0 0
        %329 = vmatpush1.bf16.msra.mxu0 0
        %330 = vmatprep.subr.bf16.mxu0 0
        %331 = vmatpush1.bf16.msra.mxu0 0
        %332 = vmatprep.subr.bf16.mxu0 0
        %333 = vmatpush1.bf16.msra.mxu0 0
        %334 = vmatprep.subr.bf16.mxu0 0
        %335 = vmatpush1.bf16.msra.mxu0 0
        %336 = vmatprep.subr.bf16.mxu0 0
        %337 = vmatpush1.bf16.msra.mxu0 0
        %338 = vmatprep.subr.bf16.mxu0 0
        %339 = vmatpush1.bf16.msra.mxu0 0
        %340 = vmatprep.subr.bf16.mxu0 0
        %341 = vmatpush1.bf16.msra.mxu0 %v324
        %342 = vmatprep.subr.bf16.mxu0 0
        %343 = vmatpush2.bf16.msra.mxu0 0
        %344 = vmatprep.subr.bf16.mxu0 0
        %345 = vmatpush2.bf16.msra.mxu0 0
        %346 = vmatprep.subr.bf16.mxu0 0
        %347 = vmatpush2.bf16.msra.mxu0 0
        %348 = vmatprep.subr.bf16.mxu0 0
        %349 = vmatpush2.bf16.msra.mxu0 0
        %350 = vmatprep.subr.bf16.mxu0 0
        %351 = vmatpush2.bf16.msra.mxu0 0
        %352 = vmatprep.subr.bf16.mxu0 0
        %353 = vmatpush2.bf16.msra.mxu0 0
        %354 = vmatprep.subr.bf16.mxu0 0
        %355 = vmatpush2.bf16.msra.mxu0 0
        %356 = vmatprep.subr.bf16.mxu0 0
        %357 = vmatpush2.bf16.msra.mxu0 0
        %358 = vmatprep.mubr.bf16.mxu0 0
        %359 = vmatmul.mubr.bf16.gmra.mxu0 %v287
        %v360 = vpop.f32.mrf.mxu0
        %v361 = vadd.f32 %v223, %v360
        %v362 = vpop.f32.mrf.mxu0
        %v363 = vpop.f32.mrf.mxu0
        %v364 = vadd.f32 %v223, %v363
        %v365 = vpop.f32.mrf.mxu0
        %366 = vmatprep.mubr.bf16.mxu0 0
        %367 = vmatmul.mubr.bf16.gmra.mxu0 %v290
        %v368 = vpop.f32.mrf.mxu0
        %v369 = vadd.f32 %v223, %v368
        %v370 = vpop.f32.mrf.mxu0
        %v371 = vpop.f32.mrf.mxu0
        %v372 = vadd.f32 %v223, %v371
        %v373 = vpop.f32.mrf.mxu0
        %374 = vmatprep.mubr.bf16.mxu0 0
        %375 = vmatmul.mubr.bf16.gmra.mxu0 %v293
        %v376 = vpop.f32.mrf.mxu0
        %v377 = vadd.f32 %v223, %v376
        %v378 = vpop.f32.mrf.mxu0
        %v379 = vpop.f32.mrf.mxu0
        %v380 = vadd.f32 %v223, %v379
        %v381 = vpop.f32.mrf.mxu0
        %382 = vmatprep.mubr.bf16.mxu0 0
        %383 = vmatmul.mubr.bf16.gmra.mxu0 %v296
        %v384 = vpop.f32.mrf.mxu0
        %v385 = vadd.f32 %v223, %v384
        %v386 = vpop.f32.mrf.mxu0
        %v387 = vpop.f32.mrf.mxu0
        %v388 = vadd.f32 %v223, %v387
        %v389 = vpop.f32.mrf.mxu0
        %390 = vmatprep.mubr.bf16.mxu0 0
        %391 = vmatmul.mubr.bf16.gmra.mxu0 %v299
        %v392 = vpop.f32.mrf.mxu0
        %v393 = vadd.f32 %v223, %v392
        %v394 = vpop.f32.mrf.mxu0
        %v395 = vpop.f32.mrf.mxu0
        %v396 = vadd.f32 %v223, %v395
        %v397 = vpop.f32.mrf.mxu0
        %398 = vmatprep.mubr.bf16.mxu0 0
        %399 = vmatmul.mubr.bf16.gmra.mxu0 %v302
        %v400 = vpop.f32.mrf.mxu0
        %v401 = vadd.f32 %v223, %v400
        %v402 = vpop.f32.mrf.mxu0
        %v403 = vpop.f32.mrf.mxu0
        %v404 = vadd.f32 %v223, %v403
        %v405 = vpop.f32.mrf.mxu0
        %406 = vmatprep.mubr.bf16.mxu0 0
        %407 = vmatmul.mubr.bf16.gmra.mxu0 %v305
        %v408 = vpop.f32.mrf.mxu0
        %v409 = vadd.f32 %v223, %v408
        %v410 = vpop.f32.mrf.mxu0
        %v411 = vpop.f32.mrf.mxu0
        %v412 = vadd.f32 %v223, %v411
        %v413 = vpop.f32.mrf.mxu0
        %414 = vmatprep.mubr.bf16.mxu0 0
        %415 = vmatmul.mubr.bf16.gmra.mxu0 %v308
        %v416 = vpop.f32.mrf.mxu0
        %v417 = vadd.f32 %v223, %v416
        %v418 = vpop.f32.mrf.mxu0
        %v419 = vpop.f32.mrf.mxu0
        %v420 = vadd.f32 %v223, %v419
        %v421 = vpop.f32.mrf.mxu0
        %422 = vmatprep.mubr.bf16.mxu0 0
        %423 = vmatmul.mubr.bf16.gmra.mxu0 %v311
        %v424 = vpop.f32.mrf.mxu0
        %v425 = vadd.f32 %v223, %v424
        %v426 = vpop.f32.mrf.mxu0
        %v427 = vpop.f32.mrf.mxu0
        %v428 = vadd.f32 %v223, %v427
        %v429 = vpop.f32.mrf.mxu0
        %430 = vmatprep.mubr.bf16.mxu0 0
        %431 = vmatmul.mubr.bf16.gmra.mxu0 %v314
        %v432 = vpop.f32.mrf.mxu0
        %v433 = vadd.f32 %v223, %v432
        %v434 = vpop.f32.mrf.mxu0
        %v435 = vpop.f32.mrf.mxu0
        %v436 = vadd.f32 %v223, %v435
        %v437 = vpop.f32.mrf.mxu0
        %438 = vmatprep.mubr.bf16.mxu0 0
        %439 = vmatmul.mubr.bf16.gmra.mxu0 %v317
        %v440 = vpop.f32.mrf.mxu0
        %v441 = vadd.f32 %v223, %v440
        %v442 = vpop.f32.mrf.mxu0
        %v443 = vpop.f32.mrf.mxu0
        %v444 = vadd.f32 %v223, %v443
        %v445 = vpop.f32.mrf.mxu0
        %446 = vmatprep.mubr.bf16.mxu0 0
        %447 = vmatmul.mubr.bf16.gmra.mxu0 %v320
        %v448 = vpop.f32.mrf.mxu0
        %v449 = vadd.f32 %v223, %v448
        %v450 = vpop.f32.mrf.mxu0
        %v451 = vpop.f32.mrf.mxu0
        %v452 = vadd.f32 %v223, %v451
        %v453 = vpop.f32.mrf.mxu0
        %454 = vdwg.mxu0
        %vm455 = vcmp.gt.f32.partialorder %v361, 0.0
        %vm456 = vcmp.gt.f32.partialorder %v364, 0.0
        %vm457 = vcmp.gt.f32.partialorder %v369, 0.0
        %vm458 = vcmp.gt.f32.partialorder %v372, 0.0
        %vm459 = vcmp.gt.f32.partialorder %v377, 0.0
        %vm460 = vcmp.gt.f32.partialorder %v380, 0.0
        %vm461 = vcmp.gt.f32.partialorder %v385, 0.0
        %vm462 = vcmp.gt.f32.partialorder %v388, 0.0
        %vm463 = vcmp.gt.f32.partialorder %v393, 0.0
        %vm464 = vcmp.gt.f32.partialorder %v396, 0.0
        %vm465 = vcmp.gt.f32.partialorder %v401, 0.0
        %vm466 = vcmp.gt.f32.partialorder %v404, 0.0
        %vm467 = vcmp.gt.f32.partialorder %v409, 0.0
        %vm468 = vcmp.gt.f32.partialorder %v412, 0.0
        %vm469 = vcmp.gt.f32.partialorder %v417, 0.0
        %vm470 = vcmp.gt.f32.partialorder %v420, 0.0
        %vm471 = vcmp.gt.f32.partialorder %v425, 0.0
        %vm472 = vcmp.gt.f32.partialorder %v428, 0.0
        %vm473 = vcmp.gt.f32.partialorder %v433, 0.0
        %vm474 = vcmp.gt.f32.partialorder %v436, 0.0
        %vm475 = vcmp.gt.f32.partialorder %v441, 0.0
        %vm476 = vcmp.gt.f32.partialorder %v444, 0.0
        %vm477 = vcmp.gt.f32.partialorder %v449, 0.0
        %vm478 = vcmp.gt.f32.partialorder %v452, 0.0
        %v479 = vmul.f32 %v361, 0.01
        %v480 = vmul.f32 %v364, 0.01
        %v481 = vmul.f32 %v369, 0.01
        %v482 = vmul.f32 %v372, 0.01
        %v483 = vmul.f32 %v377, 0.01
        %v484 = vmul.f32 %v380, 0.01
        %v485 = vmul.f32 %v385, 0.01
        %v486 = vmul.f32 %v388, 0.01
        %v487 = vmul.f32 %v393, 0.01
        %v488 = vmul.f32 %v396, 0.01
        %v489 = vmul.f32 %v401, 0.01
        %v490 = vmul.f32 %v404, 0.01
        %v491 = vmul.f32 %v409, 0.01
        %v492 = vmul.f32 %v412, 0.01
        %v493 = vmul.f32 %v417, 0.01
        %v494 = vmul.f32 %v420, 0.01
        %v495 = vmul.f32 %v425, 0.01
        %v496 = vmul.f32 %v428, 0.01
        %v497 = vmul.f32 %v433, 0.01
        %v498 = vmul.f32 %v436, 0.01
        %v499 = vmul.f32 %v441, 0.01
        %v500 = vmul.f32 %v444, 0.01
        %v501 = vmul.f32 %v449, 0.01
        %v502 = vmul.f32 %v452, 0.01
        %v503 = vsel %vm455, %v361, %v479
        %v504 = vsel %vm456, %v364, %v480
        %v505 = vsel %vm457, %v369, %v481
        %v506 = vsel %vm458, %v372, %v482
        %v507 = vsel %vm459, %v377, %v483
        %v508 = vsel %vm460, %v380, %v484
        %v509 = vsel %vm461, %v385, %v485
        %v510 = vsel %vm462, %v388, %v486
        %v511 = vsel %vm463, %v393, %v487
        %v512 = vsel %vm464, %v396, %v488
        %v513 = vsel %vm465, %v401, %v489
        %v514 = vsel %vm466, %v404, %v490
        %v515 = vsel %vm467, %v409, %v491
        %v516 = vsel %vm468, %v412, %v492
        %v517 = vsel %vm469, %v417, %v493
        %v518 = vsel %vm470, %v420, %v494
        %v519 = vsel %vm471, %v425, %v495
        %v520 = vsel %vm472, %v428, %v496
        %v521 = vsel %vm473, %v433, %v497
        %v522 = vsel %vm474, %v436, %v498
        %v523 = vsel %vm475, %v441, %v499
        %v524 = vsel %vm476, %v444, %v500
        %v525 = vsel %vm477, %v449, %v501
        %v526 = vsel %vm478, %v452, %v502
        %v527 = vpack.c.bf16 %v504, %v503
        %v528 = vpack.c.bf16 %v506, %v505
        %v529 = vpack.c.bf16 %v508, %v507
        %v530 = vpack.c.bf16 %v510, %v509
        %v531 = vpack.c.bf16 %v512, %v511
        %v532 = vpack.c.bf16 %v514, %v513
        %v533 = vpack.c.bf16 %v516, %v515
        %v534 = vpack.c.bf16 %v518, %v517
        %v535 = vpack.c.bf16 %v520, %v519
        %v536 = vpack.c.bf16 %v522, %v521
        %v537 = vpack.c.bf16 %v524, %v523
        %v538 = vpack.c.bf16 %v526, %v525
        %v551 = vunpack.c.l.b16 %v527
        %v552 = vunpack.c.h.b16 %v527
        %v553 = vunpack.c.l.b16 %v528
        %v554 = vunpack.c.h.b16 %v528
        %v555 = vunpack.c.l.b16 %v529
        %v556 = vunpack.c.h.b16 %v529
        %v557 = vunpack.c.l.b16 %v530
        %v558 = vunpack.c.h.b16 %v530
        %v559 = vunpack.c.l.b16 %v531
        %v560 = vunpack.c.h.b16 %v531
        %v561 = vunpack.c.l.b16 %v532
        %v562 = vunpack.c.h.b16 %v532
        %v563 = vunpack.c.l.b16 %v533
        %v564 = vunpack.c.h.b16 %v533
        %v565 = vunpack.c.l.b16 %v534
        %v566 = vunpack.c.h.b16 %v534
        %v567 = vunpack.c.l.b16 %v535
        %v568 = vunpack.c.h.b16 %v535
        %v569 = vunpack.c.l.b16 %v536
        %v570 = vunpack.c.h.b16 %v536
        %v571 = vunpack.c.l.b16 %v537
        %v572 = vunpack.c.h.b16 %v537
        %v573 = vunpack.c.l.b16 %v538
        %v574 = vunpack.c.h.b16 %v538
        %v575 = vpack.c.b16 %v551, %v551
        %v576 = vpack.c.b16 %v552, %v552
        %v577 = vpack.c.b16 %v553, %v553
        %v578 = vpack.c.b16 %v554, %v554
        %v579 = vpack.c.b16 %v555, %v555
        %v580 = vpack.c.b16 %v556, %v556
        %v581 = vpack.c.b16 %v557, %v557
        %v582 = vpack.c.b16 %v558, %v558
        %v583 = vpack.c.b16 %v559, %v559
        %v584 = vpack.c.b16 %v560, %v560
        %v585 = vpack.c.b16 %v561, %v561
        %v586 = vpack.c.b16 %v562, %v562
        %v587 = vpack.c.b16 %v563, %v563
        %v588 = vpack.c.b16 %v564, %v564
        %v589 = vpack.c.b16 %v565, %v565
        %v590 = vpack.c.b16 %v566, %v566
        %v591 = vpack.c.b16 %v567, %v567
        %v592 = vpack.c.b16 %v568, %v568
        %v593 = vpack.c.b16 %v569, %v569
        %v594 = vpack.c.b16 %v570, %v570
        %v595 = vpack.c.b16 %v571, %v571
        %v596 = vpack.c.b16 %v572, %v572
        %v597 = vpack.c.b16 %v573, %v573
        %v598 = vpack.c.b16 %v574, %v574
        %vm623 = vcmask 27648
        %624 = vst.msk [vmem:[%s172] sm:$0xf] %vm623, %v575
        %625 = vst.msk [vmem:[%s172 + $0x4] sm:$0xf] %vm623, %v576
        %626 = vst.msk [vmem:[%s172 + $0x8] sm:$0xf] %vm623, %v577
        %627 = vst.msk [vmem:[%s172 + $0xc] sm:$0xf] %vm623, %v578
        %628 = vst.msk [vmem:[%s172 + $0x10] sm:$0xf] %vm623, %v579
        %629 = vst.msk [vmem:[%s172 + $0x14] sm:$0xf] %vm623, %v580
        %630 = vst.msk [vmem:[%s172 + $0x18] sm:$0xf] %vm623, %v581
        %631 = vst.msk [vmem:[%s172 + $0x1c] sm:$0xf] %vm623, %v582
        %632 = vst.msk [vmem:[%s172 + $0x20] sm:$0xf] %vm623, %v583
        %633 = vst.msk [vmem:[%s172 + $0x24] sm:$0xf] %vm623, %v584
        %634 = vst.msk [vmem:[%s172 + $0x28] sm:$0xf] %vm623, %v585
        %635 = vst.msk [vmem:[%s172 + $0x2c] sm:$0xf] %vm623, %v586
        %636 = vst.msk [vmem:[%s172 + $0x30] sm:$0xf] %vm623, %v587
        %637 = vst.msk [vmem:[%s172 + $0x34] sm:$0xf] %vm623, %v588
        %638 = vst.msk [vmem:[%s172 + $0x38] sm:$0xf] %vm623, %v589
        %639 = vst.msk [vmem:[%s172 + $0x3c] sm:$0xf] %vm623, %v590
        %640 = vst.msk [vmem:[%s172 + $0x40] sm:$0xf] %vm623, %v591
        %641 = vst.msk [vmem:[%s172 + $0x44] sm:$0xf] %vm623, %v592
        %642 = vst.msk [vmem:[%s172 + $0x48] sm:$0xf] %vm623, %v593
        %643 = vst.msk [vmem:[%s172 + $0x4c] sm:$0xf] %vm623, %v594
        %644 = vst.msk [vmem:[%s172 + $0x50] sm:$0xf] %vm623, %v595
        %645 = vst.msk [vmem:[%s172 + $0x54] sm:$0xf] %vm623, %v596
        %646 = vst.msk [vmem:[%s172 + $0x58] sm:$0xf] %vm623, %v597
        %647 = vst.msk [vmem:[%s172 + $0x5c] sm:$0xf] %vm623, %v598
        %s648 = sand.u32 %s90, 1
        %s649 = sand.u32 %s90, 1
        %s650 = smul.addr %s649, 96
        %s651 = scalar_lea.vmem [#allocation2], %s650
        // Predicated region
        $region33: #{bottleneck_forward.3} parent=31 // pred_check
          %p652 = pneg %p100
        $region34: #{bottleneck_forward.3} parent=31 // pred_check_branch
          %654 = sbr.rel (%p652) target = $region36
        $region35: #{bottleneck_forward.3} parent=31 // pred_region
          %s655 = smul.u32 24, %s14
          %s656 = ssub.s32 64, %s655
          %p657 = scmp.lt.s32.totalorder %s656, 24
          %s658 = scalar_select %p657, %s656, 24
          %s659 = smul.u32 64, %s658
          %p660 = scmp.ne.s32.totalorder 0, %s659
          %s661 = smul.addr %s655, 4
          %s662 = scalar_lea.vmem %s3, %s661
          // Predicated region
          $region37: #{bottleneck_forward.3} parent=35 // pred_check
            %p663 = pneg %p660
          $region38: #{bottleneck_forward.3} parent=35 // pred_check_branch
            %665 = sbr.rel (%p663) target = $region40
          $region39: #{bottleneck_forward.3} parent=35 // pred_region
            // Predicated region
            $region41: #{bottleneck_forward.3} parent=39 // pred_check
              _
            $region42: #{bottleneck_forward.3} parent=39 // pred_check_branch
              %667 = sbr.rel target = $region44
            $region43: #{bottleneck_forward.3} parent=39 // pred_region
              // Predicated region
              $region63: #{bottleneck_forward.3} parent=43 // pred_check
                _
              $region64: #{bottleneck_forward.3} parent=43 // pred_check_branch
                %764 = sbr.rel (0) target = $region66
              $region65: #{bottleneck_forward.3} parent=43 // pred_region
                %s766 = ssub.s32 16, 1
                %s767 = sdiv.u32.pop %s658, 24
                %s768 = srem.u32.pop %s658, 24
                // While loop
                $region67: #{bottleneck_forward.3} parent=65 // loop_pre_header
                  _
                $region68: #{bottleneck_forward.3} parent=65 // loop_header
                  %s770 = sphi 0, %s772
                  %p771 = scmp.ge.s32.totalorder %s770, %s767
                  %s775 = sphi 0, %s828
                  %s776 = sphi %s651, %s831
                  %s777 = sphi %s662, %s832
                $region69: #{bottleneck_forward.3} parent=65 // loop_header_branch
                  %774 = sbr.rel (%p771) target = $region73
                $region70: #{bottleneck_forward.3} parent=65 // loop_body
                  %v778 = vld [vmem:[%s776] sm:%s766]
                  %779 = vst [vmem:[%s777] sm:%s766] %v778
                  %v780 = vld [vmem:[%s776 + $0x4] sm:%s766]
                  %781 = vst [vmem:[%s777 + $0x4] sm:%s766] %v780
                  %v782 = vld [vmem:[%s776 + $0x8] sm:%s766]
                  %783 = vst [vmem:[%s777 + $0x8] sm:%s766] %v782
                  %v784 = vld [vmem:[%s776 + $0xc] sm:%s766]
                  %785 = vst [vmem:[%s777 + $0xc] sm:%s766] %v784
                  %v786 = vld [vmem:[%s776 + $0x10] sm:%s766]
                  %787 = vst [vmem:[%s777 + $0x10] sm:%s766] %v786
                  %v788 = vld [vmem:[%s776 + $0x14] sm:%s766]
                  %789 = vst [vmem:[%s777 + $0x14] sm:%s766] %v788
                  %v790 = vld [vmem:[%s776 + $0x18] sm:%s766]
                  %791 = vst [vmem:[%s777 + $0x18] sm:%s766] %v790
                  %v792 = vld [vmem:[%s776 + $0x1c] sm:%s766]
                  %793 = vst [vmem:[%s777 + $0x1c] sm:%s766] %v792
                  %v794 = vld [vmem:[%s776 + $0x20] sm:%s766]
                  %795 = vst [vmem:[%s777 + $0x20] sm:%s766] %v794
                  %v796 = vld [vmem:[%s776 + $0x24] sm:%s766]
                  %797 = vst [vmem:[%s777 + $0x24] sm:%s766] %v796
                  %v798 = vld [vmem:[%s776 + $0x28] sm:%s766]
                  %799 = vst [vmem:[%s777 + $0x28] sm:%s766] %v798
                  %v800 = vld [vmem:[%s776 + $0x2c] sm:%s766]
                  %801 = vst [vmem:[%s777 + $0x2c] sm:%s766] %v800
                  %v802 = vld [vmem:[%s776 + $0x30] sm:%s766]
                  %803 = vst [vmem:[%s777 + $0x30] sm:%s766] %v802
                  %v804 = vld [vmem:[%s776 + $0x34] sm:%s766]
                  %805 = vst [vmem:[%s777 + $0x34] sm:%s766] %v804
                  %v806 = vld [vmem:[%s776 + $0x38] sm:%s766]
                  %807 = vst [vmem:[%s777 + $0x38] sm:%s766] %v806
                  %v808 = vld [vmem:[%s776 + $0x3c] sm:%s766]
                  %809 = vst [vmem:[%s777 + $0x3c] sm:%s766] %v808
                  %v810 = vld [vmem:[%s776 + $0x40] sm:%s766]
                  %811 = vst [vmem:[%s777 + $0x40] sm:%s766] %v810
                  %v812 = vld [vmem:[%s776 + $0x44] sm:%s766]
                  %813 = vst [vmem:[%s777 + $0x44] sm:%s766] %v812
                  %v814 = vld [vmem:[%s776 + $0x48] sm:%s766]
                  %815 = vst [vmem:[%s777 + $0x48] sm:%s766] %v814
                  %v816 = vld [vmem:[%s776 + $0x4c] sm:%s766]
                  %817 = vst [vmem:[%s777 + $0x4c] sm:%s766] %v816
                  %v818 = vld [vmem:[%s776 + $0x50] sm:%s766]
                  %819 = vst [vmem:[%s777 + $0x50] sm:%s766] %v818
                  %v820 = vld [vmem:[%s776 + $0x54] sm:%s766]
                  %821 = vst [vmem:[%s777 + $0x54] sm:%s766] %v820
                  %v822 = vld [vmem:[%s776 + $0x58] sm:%s766]
                  %823 = vst [vmem:[%s777 + $0x58] sm:%s766] %v822
                  %v824 = vld [vmem:[%s776 + $0x5c] sm:%s766]
                  %825 = vst [vmem:[%s777 + $0x5c] sm:%s766] %v824
                  %s826 = sadd.s32 1, %s775
                  %p827 = scmp.ge.s32.totalorder %s826, %s767
                  %s828 = scalar_select %p827, 0, %s826
                  %s829 = smul.u32 %s828, 96
                  %s830 = smul.u32 %s828, 96
                  %s831 = scalar_lea.vmem %s651, %s829 [#allocation2]
                  %s832 = scalar_lea.vmem %s662, %s830
                $region71: #{bottleneck_forward.3} parent=65 // loop_footer
                  %s772 = sadd.s32 %s770, 1
                $region72: #{bottleneck_forward.3} parent=65 // loop_footer_branch
                  %769 = sbr.rel target = $region68
                $region73: #{bottleneck_forward.3} parent=65 // loop_exit
                  _
                %s833 = sdiv.u32.pop %s658, 24
                %s834 = srem.u32.pop %s658, 24
                %s835 = smul.u32 %s833, 24
                %s836 = smul.u32 4, %s835
                %s837 = scalar_lea.vmem %s651, %s836 [#allocation2]
                %s838 = smul.u32 4, %s835
                %s839 = scalar_lea.vmem %s662, %s838
                // While loop
                $region74: #{bottleneck_forward.3} parent=65 // loop_pre_header
                  _
                $region75: #{bottleneck_forward.3} parent=65 // loop_header
                  %s841 = sphi 0, %s843
                  %p842 = scmp.ge.s32.totalorder %s841, %s834
                  %s846 = sphi 0, %s853
                  %s847 = sphi %s837, %s856
                  %s848 = sphi %s839, %s857
                $region76: #{bottleneck_forward.3} parent=65 // loop_header_branch
                  %845 = sbr.rel (%p842) target = $region80
                $region77: #{bottleneck_forward.3} parent=65 // loop_body
                  %v849 = vld [vmem:[%s847] sm:%s766]
                  %850 = vst [vmem:[%s848] sm:%s766] %v849
                  %s851 = sadd.s32 1, %s846
                  %p852 = scmp.ge.s32.totalorder %s851, %s834
                  %s853 = scalar_select %p852, 0, %s851
                  %s854 = smul.u32 %s853, 4
                  %s855 = smul.u32 %s853, 4
                  %s856 = scalar_lea.vmem %s837, %s854 [#allocation2]
                  %s857 = scalar_lea.vmem %s839, %s855
                $region78: #{bottleneck_forward.3} parent=65 // loop_footer
                  %s843 = sadd.s32 %s841, 1
                $region79: #{bottleneck_forward.3} parent=65 // loop_footer_branch
                  %840 = sbr.rel target = $region75
                $region80: #{bottleneck_forward.3} parent=65 // loop_exit
                  _
              $region66: #{bottleneck_forward.3} parent=43 // pred_fallthru
                _
            $region44: #{bottleneck_forward.3} parent=39 // pred_fallthru
              _
            // Predicated region
            $region45: #{bottleneck_forward.3} parent=39 // pred_check
              _
            $region46: #{bottleneck_forward.3} parent=39 // pred_check_branch
              %669 = sbr.rel (0) target = $region48
            $region47: #{bottleneck_forward.3} parent=39 // pred_region
              %s671 = ssub.s32 16, 1
              %s672 = sdiv.u32.pop %s658, 24
              %s673 = srem.u32.pop %s658, 24
              // While loop
              $region49: #{bottleneck_forward.3} parent=47 // loop_pre_header
                _
              $region50: #{bottleneck_forward.3} parent=47 // loop_header
                %s675 = sphi 0, %s677
                %p676 = scmp.ge.s32.totalorder %s675, %s672
                %s680 = sphi 0, %s733
                %s681 = sphi %s651, %s736
                %s682 = sphi %s662, %s737
              $region51: #{bottleneck_forward.3} parent=47 // loop_header_branch
                %679 = sbr.rel (%p676) target = $region55
              $region52: #{bottleneck_forward.3} parent=47 // loop_body
                %v683 = vld [vmem:[%s681] sm:%s671]
                %684 = vst [vmem:[%s682] sm:%s671] %v683
                %v685 = vld [vmem:[%s681 + $0x4] sm:%s671]
                %686 = vst [vmem:[%s682 + $0x4] sm:%s671] %v685
                %v687 = vld [vmem:[%s681 + $0x8] sm:%s671]
                %688 = vst [vmem:[%s682 + $0x8] sm:%s671] %v687
                %v689 = vld [vmem:[%s681 + $0xc] sm:%s671]
                %690 = vst [vmem:[%s682 + $0xc] sm:%s671] %v689
                %v691 = vld [vmem:[%s681 + $0x10] sm:%s671]
                %692 = vst [vmem:[%s682 + $0x10] sm:%s671] %v691
                %v693 = vld [vmem:[%s681 + $0x14] sm:%s671]
                %694 = vst [vmem:[%s682 + $0x14] sm:%s671] %v693
                %v695 = vld [vmem:[%s681 + $0x18] sm:%s671]
                %696 = vst [vmem:[%s682 + $0x18] sm:%s671] %v695
                %v697 = vld [vmem:[%s681 + $0x1c] sm:%s671]
                %698 = vst [vmem:[%s682 + $0x1c] sm:%s671] %v697
                %v699 = vld [vmem:[%s681 + $0x20] sm:%s671]
                %700 = vst [vmem:[%s682 + $0x20] sm:%s671] %v699
                %v701 = vld [vmem:[%s681 + $0x24] sm:%s671]
                %702 = vst [vmem:[%s682 + $0x24] sm:%s671] %v701
                %v703 = vld [vmem:[%s681 + $0x28] sm:%s671]
                %704 = vst [vmem:[%s682 + $0x28] sm:%s671] %v703
                %v705 = vld [vmem:[%s681 + $0x2c] sm:%s671]
                %706 = vst [vmem:[%s682 + $0x2c] sm:%s671] %v705
                %v707 = vld [vmem:[%s681 + $0x30] sm:%s671]
                %708 = vst [vmem:[%s682 + $0x30] sm:%s671] %v707
                %v709 = vld [vmem:[%s681 + $0x34] sm:%s671]
                %710 = vst [vmem:[%s682 + $0x34] sm:%s671] %v709
                %v711 = vld [vmem:[%s681 + $0x38] sm:%s671]
                %712 = vst [vmem:[%s682 + $0x38] sm:%s671] %v711
                %v713 = vld [vmem:[%s681 + $0x3c] sm:%s671]
                %714 = vst [vmem:[%s682 + $0x3c] sm:%s671] %v713
                %v715 = vld [vmem:[%s681 + $0x40] sm:%s671]
                %716 = vst [vmem:[%s682 + $0x40] sm:%s671] %v715
                %v717 = vld [vmem:[%s681 + $0x44] sm:%s671]
                %718 = vst [vmem:[%s682 + $0x44] sm:%s671] %v717
                %v719 = vld [vmem:[%s681 + $0x48] sm:%s671]
                %720 = vst [vmem:[%s682 + $0x48] sm:%s671] %v719
                %v721 = vld [vmem:[%s681 + $0x4c] sm:%s671]
                %722 = vst [vmem:[%s682 + $0x4c] sm:%s671] %v721
                %v723 = vld [vmem:[%s681 + $0x50] sm:%s671]
                %724 = vst [vmem:[%s682 + $0x50] sm:%s671] %v723
                %v725 = vld [vmem:[%s681 + $0x54] sm:%s671]
                %726 = vst [vmem:[%s682 + $0x54] sm:%s671] %v725
                %v727 = vld [vmem:[%s681 + $0x58] sm:%s671]
                %728 = vst [vmem:[%s682 + $0x58] sm:%s671] %v727
                %v729 = vld [vmem:[%s681 + $0x5c] sm:%s671]
                %730 = vst [vmem:[%s682 + $0x5c] sm:%s671] %v729
                %s731 = sadd.s32 1, %s680
                %p732 = scmp.ge.s32.totalorder %s731, %s672
                %s733 = scalar_select %p732, 0, %s731
                %s734 = smul.u32 %s733, 96
                %s735 = smul.u32 %s733, 96
                %s736 = scalar_lea.vmem %s651, %s734 [#allocation2]
                %s737 = scalar_lea.vmem %s662, %s735
              $region53: #{bottleneck_forward.3} parent=47 // loop_footer
                %s677 = sadd.s32 %s675, 1
              $region54: #{bottleneck_forward.3} parent=47 // loop_footer_branch
                %674 = sbr.rel target = $region50
              $region55: #{bottleneck_forward.3} parent=47 // loop_exit
                _
              %s738 = sdiv.u32.pop %s658, 24
              %s739 = srem.u32.pop %s658, 24
              %s740 = smul.u32 %s738, 24
              %s741 = smul.u32 4, %s740
              %s742 = scalar_lea.vmem %s651, %s741 [#allocation2]
              %s743 = smul.u32 4, %s740
              %s744 = scalar_lea.vmem %s662, %s743
              // While loop
              $region56: #{bottleneck_forward.3} parent=47 // loop_pre_header
                _
              $region57: #{bottleneck_forward.3} parent=47 // loop_header
                %s746 = sphi 0, %s748
                %p747 = scmp.ge.s32.totalorder %s746, %s739
                %s751 = sphi 0, %s758
                %s752 = sphi %s742, %s761
                %s753 = sphi %s744, %s762
              $region58: #{bottleneck_forward.3} parent=47 // loop_header_branch
                %750 = sbr.rel (%p747) target = $region62
              $region59: #{bottleneck_forward.3} parent=47 // loop_body
                %v754 = vld [vmem:[%s752] sm:%s671]
                %755 = vst [vmem:[%s753] sm:%s671] %v754
                %s756 = sadd.s32 1, %s751
                %p757 = scmp.ge.s32.totalorder %s756, %s739
                %s758 = scalar_select %p757, 0, %s756
                %s759 = smul.u32 %s758, 4
                %s760 = smul.u32 %s758, 4
                %s761 = scalar_lea.vmem %s742, %s759 [#allocation2]
                %s762 = scalar_lea.vmem %s744, %s760
              $region60: #{bottleneck_forward.3} parent=47 // loop_footer
                %s748 = sadd.s32 %s746, 1
              $region61: #{bottleneck_forward.3} parent=47 // loop_footer_branch
                %745 = sbr.rel target = $region57
              $region62: #{bottleneck_forward.3} parent=47 // loop_exit
                _
            $region48: #{bottleneck_forward.3} parent=39 // pred_fallthru
              _
          $region40: #{bottleneck_forward.3} parent=35 // pred_fallthru
            _
          %858 = vnop
        $region36: #{bottleneck_forward.3} parent=31 // pred_fallthru
          _
      $region32: #{bottleneck_forward.3} parent=5 // pred_fallthru
        _
      %p859 = scmp.le.s32.totalorder 2, %s9
      // Predicated region
      $region81: #{bottleneck_forward.3} parent=5 // pred_check
        %p860 = pneg %p859
      $region82: #{bottleneck_forward.3} parent=5 // pred_check_branch
        %862 = sbr.rel (%p860) target = $region84
      $region83: #{bottleneck_forward.3} parent=5 // pred_region
        %s863 = ssub.s32 %s9, 2
        // Predicated region
        $region85: #{bottleneck_forward.3} parent=83 // pred_check
          %p864 = pneg %p106
        $region86: #{bottleneck_forward.3} parent=83 // pred_check_branch
          %866 = sbr.rel (%p864) target = $region88
        $region87: #{bottleneck_forward.3} parent=83 // pred_region
          %s867 = sand.u32 %s91, 1
          %s868 = sand.u32 %s91, 1
          %s869 = smul.addr %s868, 96
          %s870 = scalar_lea.vmem [#allocation2], %s869
        $region88: #{bottleneck_forward.3} parent=83 // pred_fallthru
          _
      $region84: #{bottleneck_forward.3} parent=5 // pred_fallthru
        _
    $region6: #{bottleneck_forward.3} parent=1 // loop_footer
      %s13 = sadd.s32 1, %s9
    $region7: #{bottleneck_forward.3} parent=1 // loop_footer_branch
      %8 = sbr.rel target = $region3
    $region8: #{bottleneck_forward.3} parent=1 // loop_exit
      _

// kernel: bottleneck_forward.5
$region0: #{bottleneck_forward.5}
  #allocation0 [shape = 'u32[]', space=smem, size = 0x4, offset = 0x4, fixed_abs, tag = 'smem constant byte address 0x4 - core index']
  #allocation1 [shape = 'u32[144,128]{1,0:T(1,128)}', space=vmem, size = 0x12000, scoped, tag = 'internal scratch']
  %s0 = inlined_call_operand.vmem [shape: bf16[512,4], index: 0, kind: input, shape index: {}]
  %s1 = inlined_call_operand.vmem [shape: bf16[512,4], index: 1, kind: input, shape index: {}]
  %s2 = inlined_call_operand.vmem [shape: bf16[4,16], index: 2, kind: input, shape index: {}]
  %s3 = inlined_call_operand.vmem [shape: bf16[4,16], index: 3, kind: input, shape index: {}]
  %s4 = inlined_call_operand.vmem [shape: f32[1,16], index: 4, kind: input, shape index: {}]
  %s5 = inlined_call_operand.vmem [shape: f32[512,16], index: 5, kind: output, shape index: {}]
  %s6 = sld [smem:[#allocation0]]
  $region101: #{bottleneck_forward.5} parent=0
    _
  %s8 = ssub.s32 1, %s6
  %s9 = scalar_select 0, %s8, %s6
  $region1: #{bottleneck_forward.5} parent=0
    #allocation2 [shape = 'u8[196608]{0}', space=vmem, size = 0x30000, scoped, tag = 'output window, operand 0']
    loop: start=0, step=1, limit=5
    $region2: #{bottleneck_forward.5} parent=1 // loop_pre_header
      _
    $region3: #{bottleneck_forward.5} parent=1 // loop_header
      %s11 = sphi 0, %s15
      %p12 = scmp.ge.s32.totalorder %s11, 5
      %s21 = sphi 0, %s23
      %s24 = sphi 0, %s21
      %s25 = sphi 0, %s24
      %s41 = sphi 0, %s25
      %s47 = sphi 0, %s49
      %s50 = sphi 0, %s47
      %s51 = sphi 0, %s50
      %s67 = sphi 0, %s51
      %s71 = sphi 0, %s71
      %s73 = sphi 0, %s71
      %s74 = sphi 0, %s73
      %s88 = sphi 0, %s74
      %s92 = sphi 0, %s92
      %s94 = sphi 0, %s92
      %s95 = sphi 0, %s94
      %s109 = sphi 0, %s95
      %s113 = sphi 0, %s113
      %s115 = sphi 0, %s113
      %s116 = sphi 0, %s115
      %s130 = sphi 0, %s116
      %s136 = sphi 0, %s138
      %s139 = sphi 0, %s136
      %s140 = sphi 0, %s139
      %s156 = sphi 0, %s140
    $region4: #{bottleneck_forward.5} parent=1 // loop_header_branch
      %14 = sbr.rel (%p12) target = $region8
    $region5: #{bottleneck_forward.5} parent=1 // loop_body
      %s16 = ssub.s32 %s11, 1
      %s17 = ssub.s32 %s11, 2
      %s18 = sadd.s32 %s11, 1
      %s19 = ssub.s32 %s11, %s18
      %p20 = scmp.eq.s32.totalorder %s19, 0
      %s22 = sadd.s32 %s21, 1
      %s23 = scalar_select %p20, %s21, %s22
      %p26 = pneg %p20
      %p27 = scmp.eq.s32.totalorder %s11, 2
      %p28 = por %p26, %p27
      %p29 = scmp.ne.s32.totalorder %s21, %s24
      %p30 = scmp.eq.s32.totalorder %s11, 0
      %p31 = por %p29, %p30
      %p32 = scmp.ne.s32.totalorder %s21, %s24
      %p33 = scmp.eq.s32.totalorder %s16, 2
      %p34 = por %p32, %p33
      %p35 = scmp.ne.s32.totalorder %s24, %s25
      %p36 = scmp.eq.s32.totalorder %s16, 0
      %p37 = por %p35, %p36
      %p38 = scmp.ne.s32.totalorder %s24, %s25
      %p39 = scmp.eq.s32.totalorder %s17, 2
      %p40 = por %p38, %p39
      %p42 = scmp.ne.s32.totalorder %s25, %s41
      %p43 = scmp.eq.s32.totalorder %s17, 0
      %p44 = por %p42, %p43
      %s45 = ssub.s32 %s11, %s18
      %p46 = scmp.eq.s32.totalorder %s45, 0
      %s48 = sadd.s32 %s47, 1
      %s49 = scalar_select %p46, %s47, %s48
      %p52 = pneg %p46
      %p53 = scmp.eq.s32.totalorder %s11, 2
      %p54 = por %p52, %p53
      %p55 = scmp.ne.s32.totalorder %s47, %s50
      %p56 = scmp.eq.s32.totalorder %s11, 0
      %p57 = por %p55, %p56
      %p58 = scmp.ne.s32.totalorder %s47, %s50
      %p59 = scmp.eq.s32.totalorder %s16, 2
      %p60 = por %p58, %p59
      %p61 = scmp.ne.s32.totalorder %s50, %s51
      %p62 = scmp.eq.s32.totalorder %s16, 0
      %p63 = por %p61, %p62
      %p64 = scmp.ne.s32.totalorder %s50, %s51
      %p65 = scmp.eq.s32.totalorder %s17, 2
      %p66 = por %p64, %p65
      %p68 = scmp.ne.s32.totalorder %s51, %s67
      %p69 = scmp.eq.s32.totalorder %s17, 0
      %p70 = por %p68, %p69
      %s72 = sadd.s32 %s71, 1
      %p75 = scmp.eq.s32.totalorder %s11, 2
      %p76 = scmp.ne.s32.totalorder %s71, %s73
      %p77 = scmp.eq.s32.totalorder %s11, 0
      %p78 = por %p76, %p77
      %p79 = scmp.ne.s32.totalorder %s71, %s73
      %p80 = scmp.eq.s32.totalorder %s16, 2
      %p81 = por %p79, %p80
      %p82 = scmp.ne.s32.totalorder %s73, %s74
      %p83 = scmp.eq.s32.totalorder %s16, 0
      %p84 = por %p82, %p83
      %p85 = scmp.ne.s32.totalorder %s73, %s74
      %p86 = scmp.eq.s32.totalorder %s17, 2
      %p87 = por %p85, %p86
      %p89 = scmp.ne.s32.totalorder %s74, %s88
      %p90 = scmp.eq.s32.totalorder %s17, 0
      %p91 = por %p89, %p90
      %s93 = sadd.s32 %s92, 1
      %p96 = scmp.eq.s32.totalorder %s11, 2
      %p97 = scmp.ne.s32.totalorder %s92, %s94
      %p98 = scmp.eq.s32.totalorder %s11, 0
      %p99 = por %p97, %p98
      %p100 = scmp.ne.s32.totalorder %s92, %s94
      %p101 = scmp.eq.s32.totalorder %s16, 2
      %p102 = por %p100, %p101
      %p103 = scmp.ne.s32.totalorder %s94, %s95
      %p104 = scmp.eq.s32.totalorder %s16, 0
      %p105 = por %p103, %p104
      %p106 = scmp.ne.s32.totalorder %s94, %s95
      %p107 = scmp.eq.s32.totalorder %s17, 2
      %p108 = por %p106, %p107
      %p110 = scmp.ne.s32.totalorder %s95, %s109
      %p111 = scmp.eq.s32.totalorder %s17, 0
      %p112 = por %p110, %p111
      %s114 = sadd.s32 %s113, 1
      %p117 = scmp.eq.s32.totalorder %s11, 2
      %p118 = scmp.ne.s32.totalorder %s113, %s115
      %p119 = scmp.eq.s32.totalorder %s11, 0
      %p120 = por %p118, %p119
      %p121 = scmp.ne.s32.totalorder %s113, %s115
      %p122 = scmp.eq.s32.totalorder %s16, 2
      %p123 = por %p121, %p122
      %p124 = scmp.ne.s32.totalorder %s115, %s116
      %p125 = scmp.eq.s32.totalorder %s16, 0
      %p126 = por %p124, %p125
      %p127 = scmp.ne.s32.totalorder %s115, %s116
      %p128 = scmp.eq.s32.totalorder %s17, 2
      %p129 = por %p127, %p128
      %p131 = scmp.ne.s32.totalorder %s116, %s130
      %p132 = scmp.eq.s32.totalorder %s17, 0
      %p133 = por %p131, %p132
      %s134 = ssub.s32 %s11, %s18
      %p135 = scmp.eq.s32.totalorder %s134, 0
      %s137 = sadd.s32 %s136, 1
      %s138 = scalar_select %p135, %s136, %s137
      %p141 = pneg %p135
      %p142 = scmp.eq.s32.totalorder %s11, 2
      %p143 = por %p141, %p142
      %p144 = scmp.ne.s32.totalorder %s136, %s139
      %p145 = scmp.eq.s32.totalorder %s11, 0
      %p146 = por %p144, %p145
      %p147 = scmp.ne.s32.totalorder %s136, %s139
      %p148 = scmp.eq.s32.totalorder %s16, 2
      %p149 = por %p147, %p148
      %p150 = scmp.ne.s32.totalorder %s139, %s140
      %p151 = scmp.eq.s32.totalorder %s16, 0
      %p152 = por %p150, %p151
      %p153 = scmp.ne.s32.totalorder %s139, %s140
      %p154 = scmp.eq.s32.totalorder %s17, 2
      %p155 = por %p153, %p154
      %p157 = scmp.ne.s32.totalorder %s140, %s156
      %p158 = scmp.eq.s32.totalorder %s17, 0
      %p159 = por %p157, %p158
      %p160 = scmp.le.s32.totalorder 1, %s11
      %p161 = scmp.lt.s32.totalorder %s11, 4
      %p162 = pnand %p160, %p161
      %p163 = pneg %p162
      // Predicated region
      $region9: #{bottleneck_forward.5} parent=5 // pred_check
        _
      $region10: #{bottleneck_forward.5} parent=5 // pred_check_branch
        %165 = sbr.rel (%p162) target = $region12
      $region11: #{bottleneck_forward.5} parent=5 // pred_region
        %s166 = ssub.s32 %s11, 1
        // Predicated region
        $region13: #{bottleneck_forward.5} parent=11 // pred_check
          %p167 = pneg %p84
        $region14: #{bottleneck_forward.5} parent=11 // pred_check_branch
          %169 = sbr.rel (%p167) target = $region16
        $region15: #{bottleneck_forward.5} parent=11 // pred_region
          _
        $region16: #{bottleneck_forward.5} parent=11 // pred_fallthru
          _
        // Predicated region
        $region17: #{bottleneck_forward.5} parent=11 // pred_check
          %p170 = pneg %p105
        $region18: #{bottleneck_forward.5} parent=11 // pred_check_branch
          %172 = sbr.rel (%p170) target = $region20
        $region19: #{bottleneck_forward.5} parent=11 // pred_region
          _
        $region20: #{bottleneck_forward.5} parent=11 // pred_fallthru
          _
        // Predicated region
        $region21: #{bottleneck_forward.5} parent=11 // pred_check
          %p173 = pneg %p126
        $region22: #{bottleneck_forward.5} parent=11 // pred_check_branch
          %175 = sbr.rel (%p173) target = $region24
        $region23: #{bottleneck_forward.5} parent=11 // pred_region
          _
        $region24: #{bottleneck_forward.5} parent=11 // pred_fallthru
          _
      $region12: #{bottleneck_forward.5} parent=5 // pred_fallthru
        _
      %p176 = scmp.lt.s32.totalorder %s11, 3
      // Predicated region
      $region25: #{bottleneck_forward.5} parent=5 // pred_check
        %p177 = pneg %p176
      $region26: #{bottleneck_forward.5} parent=5 // pred_check_branch
        %179 = sbr.rel (%p177) target = $region28
      $region27: #{bottleneck_forward.5} parent=5 // pred_region
        // Predicated region
        $region29: #{bottleneck_forward.5} parent=27 // pred_check
          %p180 = pneg %p31
        $region30: #{bottleneck_forward.5} parent=27 // pred_check_branch
          %182 = sbr.rel (%p180) target = $region32
        $region31: #{bottleneck_forward.5} parent=27 // pred_region
          %s183 = smul.u32 24, %s11
          %s184 = ssub.s32 64, %s183
          %p185 = scmp.lt.s32.totalorder %s184, 24
          %s186 = scalar_select %p185, %s184, 24
          %s187 = smul.u32 64, %s186
          %p188 = scmp.lt.s32.totalorder %s183, 63
          %s189 = scalar_select %p188, %s183, 63
          %s190 = smul.addr %s189, 4
          %s191 = scalar_lea.vmem %s0, %s190
          %s192 = smul.u32 24, %s11
          %s193 = ssub.s32 64, %s192
          %p194 = scmp.lt.s32.totalorder %s193, 24
          %s195 = scalar_select %p194, %s193, 24
          %s196 = smul.u32 64, %s195
        $region32: #{bottleneck_forward.5} parent=27 // pred_fallthru
          _
        // Predicated region
        $region33: #{bottleneck_forward.5} parent=27 // pred_check
          %p197 = pneg %p57
        $region34: #{bottleneck_forward.5} parent=27 // pred_check_branch
          %199 = sbr.rel (%p197) target = $region36
        $region35: #{bottleneck_forward.5} parent=27 // pred_region
          %s200 = smul.u32 24, %s11
          %s201 = ssub.s32 64, %s200
          %p202 = scmp.lt.s32.totalorder %s201, 24
          %s203 = scalar_select %p202, %s201, 24
          %s204 = smul.u32 64, %s203
          %p205 = scmp.lt.s32.totalorder %s200, 63
          %s206 = scalar_select %p205, %s200, 63
          %s207 = smul.addr %s206, 4
          %s208 = scalar_lea.vmem %s1, %s207
          %s209 = smul.u32 24, %s11
          %s210 = ssub.s32 64, %s209
          %p211 = scmp.lt.s32.totalorder %s210, 24
          %s212 = scalar_select %p211, %s210, 24
          %s213 = smul.u32 64, %s212
        $region36: #{bottleneck_forward.5} parent=27 // pred_fallthru
          _
      $region28: #{bottleneck_forward.5} parent=5 // pred_fallthru
        _
      %p214 = scmp.le.s32.totalorder 1, %s11
      %p215 = scmp.lt.s32.totalorder %s11, 4
      %p216 = pnand %p214, %p215
      %p217 = pneg %p216
      // Predicated region
      $region37: #{bottleneck_forward.5} parent=5 // pred_check
        _
      $region38: #{bottleneck_forward.5} parent=5 // pred_check_branch
        %219 = sbr.rel (%p216) target = $region40
      $region39: #{bottleneck_forward.5} parent=5 // pred_region
        %s220 = ssub.s32 %s11, 1
        %s221 = smul.u32 24, %s16
        %s222 = ssub.s32 64, %s221
        %p223 = scmp.lt.s32.totalorder %s222, 24
        %s224 = scalar_select %p223, %s222, 24
        %s225 = smul.u32 64, %s224
        %p226 = scmp.lt.s32.totalorder %s221, 63
        %s227 = scalar_select %p226, %s221, 63
        %s228 = smul.addr %s227, 4
        %s229 = scalar_lea.vmem %s0, %s228
        %p230 = pneg %p37
        %p231 = pneg %p34
        %s232 = smul.u32 24, %s16
        %s233 = ssub.s32 64, %s232
        %p234 = scmp.lt.s32.totalorder %s233, 24
        %s235 = scalar_select %p234, %s233, 24
        %s236 = smul.u32 64, %s235
        %p237 = scmp.lt.s32.totalorder %s232, 63
        %s238 = scalar_select %p237, %s232, 63
        %s239 = smul.addr %s238, 4
        %s240 = scalar_lea.vmem %s1, %s239
        %p241 = pneg %p63
        %p242 = pneg %p60
        %p243 = pneg %p84
        %p244 = pneg %p81
        %p245 = pneg %p105
        %p246 = pneg %p102
        %p247 = pneg %p126
        %p248 = pneg %p123
        %p249 = pneg %p152
        %p250 = pneg %p149
        %s251 = sand.u32 %s139, 1
        %s252 = sand.u32 %s139, 1
        %s253 = smul.addr %s252, 192
        %s254 = scalar_lea.vmem [#allocation2], %s253
        %s255 = smul.u32 24, %s16
        %s256 = ssub.s32 64, %s255
        %p257 = scmp.lt.s32.totalorder %s256, 24
        %s258 = scalar_select %p257, %s256, 24
        %s259 = smul.u32 64, %s258
        %p260 = scmp.lt.s32.totalorder %s255, 63
        %s261 = scalar_select %p260, %s255, 63
        %s262 = smul.addr %s261, 4
        %s263 = scalar_lea.vmem %s0, %s262
        %s264 = smul.u32 24, %s16
        %s265 = ssub.s32 64, %s264
        %p266 = scmp.lt.s32.totalorder %s265, 24
        %s267 = scalar_select %p266, %s265, 24
        %s268 = smul.u32 64, %s267
        %s269 = smul.u32 24, %s16
        %s270 = ssub.s32 64, %s269
        %p271 = scmp.lt.s32.totalorder %s270, 24
        %s272 = scalar_select %p271, %s270, 24
        %s273 = smul.u32 64, %s272
        %p274 = scmp.lt.s32.totalorder %s269, 63
        %s275 = scalar_select %p274, %s269, 63
        %s276 = smul.addr %s275, 4
        %s277 = scalar_lea.vmem %s1, %s276
        %s278 = smul.u32 24, %s16
        %s279 = ssub.s32 64, %s278
        %p280 = scmp.lt.s32.totalorder %s279, 24
        %s281 = scalar_select %p280, %s279, 24
        %s282 = smul.u32 64, %s281
        %s283 = smul.u32 24, %s16
        %s284 = ssub.s32 64, %s283
        %p285 = scmp.lt.s32.totalorder %s284, 24
        %s286 = scalar_select %p285, %s284, 24
        %s287 = smul.u32 128, %s286
        %v289 = vld [vmem:[%s263] sm:$0xf]
        %v290 = vld [vmem:[%s263 + $0x4] sm:$0xf]
        %v291 = vld [vmem:[%s263 + $0x8] sm:$0xf]
        %v292 = vld [vmem:[%s263 + $0xc] sm:$0xf]
        %v293 = vld [vmem:[%s263 + $0x10] sm:$0xf]
        %v294 = vld [vmem:[%s263 + $0x14] sm:$0xf]
        %v295 = vld [vmem:[%s263 + $0x18] sm:$0xf]
        %v296 = vld [vmem:[%s263 + $0x1c] sm:$0xf]
        %v297 = vld [vmem:[%s263 + $0x20] sm:$0xf]
        %v298 = vld [vmem:[%s263 + $0x24] sm:$0xf]
        %v299 = vld [vmem:[%s263 + $0x28] sm:$0xf]
        %v300 = vld [vmem:[%s263 + $0x2c] sm:$0xf]
        %v301 = vld [vmem:[%s263 + $0x30] sm:$0xf]
        %v302 = vld [vmem:[%s263 + $0x34] sm:$0xf]
        %v303 = vld [vmem:[%s263 + $0x38] sm:$0xf]
        %v304 = vld [vmem:[%s263 + $0x3c] sm:$0xf]
        %v305 = vld [vmem:[%s263 + $0x40] sm:$0xf]
        %v306 = vld [vmem:[%s263 + $0x44] sm:$0xf]
        %v307 = vld [vmem:[%s263 + $0x48] sm:$0xf]
        %v308 = vld [vmem:[%s263 + $0x4c] sm:$0xf]
        %v309 = vld [vmem:[%s263 + $0x50] sm:$0xf]
        %v310 = vld [vmem:[%s263 + $0x54] sm:$0xf]
        %v311 = vld [vmem:[%s263 + $0x58] sm:$0xf]
        %v312 = vld [vmem:[%s263 + $0x5c] sm:$0xf]
        %v313 = vld [vmem:[%s2] sm:$0x3]
        %v314 = vld [vmem:[%s277] sm:$0xf]
        %v315 = vld [vmem:[%s277 + $0x4] sm:$0xf]
        %v316 = vld [vmem:[%s277 + $0x8] sm:$0xf]
        %v317 = vld [vmem:[%s277 + $0xc] sm:$0xf]
        %v318 = vld [vmem:[%s277 + $0x10] sm:$0xf]
        %v319 = vld [vmem:[%s277 + $0x14] sm:$0xf]
        %v320 = vld [vmem:[%s277 + $0x18] sm:$0xf]
        %v321 = vld [vmem:[%s277 + $0x1c] sm:$0xf]
        %v322 = vld [vmem:[%s277 + $0x20] sm:$0xf]
        %v323 = vld [vmem:[%s277 + $0x24] sm:$0xf]
        %v324 = vld [vmem:[%s277 + $0x28] sm:$0xf]
        %v325 = vld [vmem:[%s277 + $0x2c] sm:$0xf]
        %v326 = vld [vmem:[%s277 + $0x30] sm:$0xf]
        %v327 = vld [vmem:[%s277 + $0x34] sm:$0xf]
        %v328 = vld [vmem:[%s277 + $0x38] sm:$0xf]
        %v329 = vld [vmem:[%s277 + $0x3c] sm:$0xf]
        %v330 = vld [vmem:[%s277 + $0x40] sm:$0xf]
        %v331 = vld [vmem:[%s277 + $0x44] sm:$0xf]
        %v332 = vld [vmem:[%s277 + $0x48] sm:$0xf]
        %v333 = vld [vmem:[%s277 + $0x4c] sm:$0xf]
        %v334 = vld [vmem:[%s277 + $0x50] sm:$0xf]
        %v335 = vld [vmem:[%s277 + $0x54] sm:$0xf]
        %v336 = vld [vmem:[%s277 + $0x58] sm:$0xf]
        %v337 = vld [vmem:[%s277 + $0x5c] sm:$0xf]
        %v338 = vld [vmem:[%s3] sm:$0x3]
        %v363 = vunpack.c.l.b16 %v314
        %v364 = vunpack.c.l.b16 %v315
        %v365 = vunpack.c.l.b16 %v316
        %v366 = vunpack.c.l.b16 %v317
        %v367 = vunpack.c.l.b16 %v318
        %v368 = vunpack.c.l.b16 %v319
        %v369 = vunpack.c.l.b16 %v320
        %v370 = vunpack.c.l.b16 %v321
        %v371 = vunpack.c.l.b16 %v322
        %v372 = vunpack.c.l.b16 %v323
        %v373 = vunpack.c.l.b16 %v324
        %v374 = vunpack.c.l.b16 %v325
        %v375 = vunpack.c.l.b16 %v326
        %v376 = vunpack.c.l.b16 %v327
        %v377 = vunpack.c.l.b16 %v328
        %v378 = vunpack.c.l.b16 %v329
        %v379 = vunpack.c.l.b16 %v330
        %v380 = vunpack.c.l.b16 %v331
        %v381 = vunpack.c.l.b16 %v332
        %v382 = vunpack.c.l.b16 %v333
        %v383 = vunpack.c.l.b16 %v334
        %v384 = vunpack.c.l.b16 %v335
        %v385 = vunpack.c.l.b16 %v336
        %v386 = vunpack.c.l.b16 %v337
        %v387 = vpack.c.b16 %v364, %v363
        %v388 = vpack.c.b16 %v366, %v365
        %v389 = vpack.c.b16 %v368, %v367
        %v390 = vpack.c.b16 %v370, %v369
        %v391 = vpack.c.b16 %v372, %v371
        %v392 = vpack.c.b16 %v374, %v373
        %v393 = vpack.c.b16 %v376, %v375
        %v394 = vpack.c.b16 %v378, %v377
        %v395 = vpack.c.b16 %v380, %v379
        %v396 = vpack.c.b16 %v382, %v381
        %v397 = vpack.c.b16 %v384, %v383
        %v398 = vpack.c.b16 %v386, %v385
        %vm399 = vcmask 31744
        %v401 = vsel %vm399, %v387, 0
        %v404 = vsel %vm399, %v388, 0
        %v407 = vsel %vm399, %v389, 0
        %v410 = vsel %vm399, %v390, 0
        %v413 = vsel %vm399, %v391, 0
        %v416 = vsel %vm399, %v392, 0
        %v419 = vsel %vm399, %v393, 0
        %v422 = vsel %vm399, %v394, 0
        %v425 = vsel %vm399, %v395, 0
        %v428 = vsel %vm399, %v396, 0
        %v431 = vsel %vm399, %v397, 0
        %v434 = vsel %vm399, %v398, 0
        %vm436 = vcmask 1041408
        %v438 = vsel %vm436, %v338, 0
        %440 = vmatprep.subr.bf16.mxu0 0
        %441 = vmatpush1.bf16.msra.mxu0 0
        %442 = vmatprep.subr.bf16.mxu0 0
        %443 = vmatpush1.bf16.msra.mxu0 0
        %444 = vmatprep.subr.bf16.mxu0 0
        %445 = vmatpush1.bf16.msra.mxu0 0
        %446 = vmatprep.subr.bf16.mxu0 0
        %447 = vmatpush1.bf16.msra.mxu0 0
        %448 = vmatprep.subr.bf16.mxu0 0
        %449 = vmatpush1.bf16.msra.mxu0 0
        %450 = vmatprep.subr.bf16.mxu0 0
        %451 = vmatpush1.bf16.msra.mxu0 0
        %452 = vmatprep.subr.bf16.mxu0 0
        %453 = vmatpush1.bf16.msra.mxu0 0
        %454 = vmatprep.subr.bf16.mxu0 0
        %455 = vmatpush1.bf16.msra.mxu0 %v438
        %456 = vmatprep.subr.bf16.mxu0 0
        %457 = vmatpush2.bf16.msra.mxu0 0
        %458 = vmatprep.subr.bf16.mxu0 0
        %459 = vmatpush2.bf16.msra.mxu0 0
        %460 = vmatprep.subr.bf16.mxu0 0
        %461 = vmatpush2.bf16.msra.mxu0 0
        %462 = vmatprep.subr.bf16.mxu0 0
        %463 = vmatpush2.bf16.msra.mxu0 0
        %464 = vmatprep.subr.bf16.mxu0 0
        %465 = vmatpush2.bf16.msra.mxu0 0
        %466 = vmatprep.subr.bf16.mxu0 0
        %467 = vmatpush2.bf16.msra.mxu0 0
        %468 = vmatprep.subr.bf16.mxu0 0
        %469 = vmatpush2.bf16.msra.mxu0 0
        %470 = vmatprep.subr.bf16.mxu0 0
        %471 = vmatpush2.bf16.msra.mxu0 0
        %472 = vmatprep.mubr.bf16.mxu0 0
        %473 = vmatmul.mubr.bf16.gmra.mxu0 %v401
        %v474 = vpop.f32.mrf.mxu0
        %v475 = vadd.f32 0.0, %v474
        %v476 = vpop.f32.mrf.mxu0
        %v477 = vpop.f32.mrf.mxu0
        %v478 = vadd.f32 0.0, %v477
        %v479 = vpop.f32.mrf.mxu0
        %480 = vmatprep.mubr.bf16.mxu0 0
        %481 = vmatmul.mubr.bf16.gmra.mxu0 %v404
        %v482 = vpop.f32.mrf.mxu0
        %v483 = vadd.f32 0.0, %v482
        %v484 = vpop.f32.mrf.mxu0
        %v485 = vpop.f32.mrf.mxu0
        %v486 = vadd.f32 0.0, %v485
        %v487 = vpop.f32.mrf.mxu0
        %488 = vmatprep.mubr.bf16.mxu0 0
        %489 = vmatmul.mubr.bf16.gmra.mxu0 %v407
        %v490 = vpop.f32.mrf.mxu0
        %v491 = vadd.f32 0.0, %v490
        %v492 = vpop.f32.mrf.mxu0
        %v493 = vpop.f32.mrf.mxu0
        %v494 = vadd.f32 0.0, %v493
        %v495 = vpop.f32.mrf.mxu0
        %496 = vmatprep.mubr.bf16.mxu0 0
        %497 = vmatmul.mubr.bf16.gmra.mxu0 %v410
        %v498 = vpop.f32.mrf.mxu0
        %v499 = vadd.f32 0.0, %v498
        %v500 = vpop.f32.mrf.mxu0
        %v501 = vpop.f32.mrf.mxu0
        %v502 = vadd.f32 0.0, %v501
        %v503 = vpop.f32.mrf.mxu0
        %504 = vmatprep.mubr.bf16.mxu0 0
        %505 = vmatmul.mubr.bf16.gmra.mxu0 %v413
        %v506 = vpop.f32.mrf.mxu0
        %v507 = vadd.f32 0.0, %v506
        %v508 = vpop.f32.mrf.mxu0
        %v509 = vpop.f32.mrf.mxu0
        %v510 = vadd.f32 0.0, %v509
        %v511 = vpop.f32.mrf.mxu0
        %512 = vmatprep.mubr.bf16.mxu0 0
        %513 = vmatmul.mubr.bf16.gmra.mxu0 %v416
        %v514 = vpop.f32.mrf.mxu0
        %v515 = vadd.f32 0.0, %v514
        %v516 = vpop.f32.mrf.mxu0
        %v517 = vpop.f32.mrf.mxu0
        %v518 = vadd.f32 0.0, %v517
        %v519 = vpop.f32.mrf.mxu0
        %520 = vmatprep.mubr.bf16.mxu0 0
        %521 = vmatmul.mubr.bf16.gmra.mxu0 %v419
        %v522 = vpop.f32.mrf.mxu0
        %v523 = vadd.f32 0.0, %v522
        %v524 = vpop.f32.mrf.mxu0
        %v525 = vpop.f32.mrf.mxu0
        %v526 = vadd.f32 0.0, %v525
        %v527 = vpop.f32.mrf.mxu0
        %528 = vmatprep.mubr.bf16.mxu0 0
        %529 = vmatmul.mubr.bf16.gmra.mxu0 %v422
        %v530 = vpop.f32.mrf.mxu0
        %v531 = vadd.f32 0.0, %v530
        %v532 = vpop.f32.mrf.mxu0
        %v533 = vpop.f32.mrf.mxu0
        %v534 = vadd.f32 0.0, %v533
        %v535 = vpop.f32.mrf.mxu0
        %536 = vmatprep.mubr.bf16.mxu0 0
        %537 = vmatmul.mubr.bf16.gmra.mxu0 %v425
        %v538 = vpop.f32.mrf.mxu0
        %v539 = vadd.f32 0.0, %v538
        %v540 = vpop.f32.mrf.mxu0
        %v541 = vpop.f32.mrf.mxu0
        %v542 = vadd.f32 0.0, %v541
        %v543 = vpop.f32.mrf.mxu0
        %544 = vmatprep.mubr.bf16.mxu0 0
        %545 = vmatmul.mubr.bf16.gmra.mxu0 %v428
        %v546 = vpop.f32.mrf.mxu0
        %v547 = vadd.f32 0.0, %v546
        %v548 = vpop.f32.mrf.mxu0
        %v549 = vpop.f32.mrf.mxu0
        %v550 = vadd.f32 0.0, %v549
        %v551 = vpop.f32.mrf.mxu0
        %552 = vmatprep.mubr.bf16.mxu0 0
        %553 = vmatmul.mubr.bf16.gmra.mxu0 %v431
        %v554 = vpop.f32.mrf.mxu0
        %v555 = vadd.f32 0.0, %v554
        %v556 = vpop.f32.mrf.mxu0
        %v557 = vpop.f32.mrf.mxu0
        %v558 = vadd.f32 0.0, %v557
        %v559 = vpop.f32.mrf.mxu0
        %560 = vmatprep.mubr.bf16.mxu0 0
        %561 = vmatmul.mubr.bf16.gmra.mxu0 %v434
        %v562 = vpop.f32.mrf.mxu0
        %v563 = vadd.f32 0.0, %v562
        %v564 = vpop.f32.mrf.mxu0
        %v565 = vpop.f32.mrf.mxu0
        %v566 = vadd.f32 0.0, %v565
        %v567 = vpop.f32.mrf.mxu0
        %568 = vdwg.mxu0
        %v593 = vunpack.c.l.b16 %v289
        %v594 = vunpack.c.l.b16 %v290
        %v595 = vunpack.c.l.b16 %v291
        %v596 = vunpack.c.l.b16 %v292
        %v597 = vunpack.c.l.b16 %v293
        %v598 = vunpack.c.l.b16 %v294
        %v599 = vunpack.c.l.b16 %v295
        %v600 = vunpack.c.l.b16 %v296
        %v601 = vunpack.c.l.b16 %v297
        %v602 = vunpack.c.l.b16 %v298
        %v603 = vunpack.c.l.b16 %v299
        %v604 = vunpack.c.l.b16 %v300
        %v605 = vunpack.c.l.b16 %v301
        %v606 = vunpack.c.l.b16 %v302
        %v607 = vunpack.c.l.b16 %v303
        %v608 = vunpack.c.l.b16 %v304
        %v609 = vunpack.c.l.b16 %v305
        %v610 = vunpack.c.l.b16 %v306
        %v611 = vunpack.c.l.b16 %v307
        %v612 = vunpack.c.l.b16 %v308
        %v613 = vunpack.c.l.b16 %v309
        %v614 = vunpack.c.l.b16 %v310
        %v615 = vunpack.c.l.b16 %v311
        %v616 = vunpack.c.l.b16 %v312
        %v617 = vpack.c.b16 %v594, %v593
        %v618 = vpack.c.b16 %v596, %v595
        %v619 = vpack.c.b16 %v598, %v597
        %v620 = vpack.c.b16 %v600, %v599
        %v621 = vpack.c.b16 %v602, %v601
        %v622 = vpack.c.b16 %v604, %v603
        %v623 = vpack.c.b16 %v606, %v605
        %v624 = vpack.c.b16 %v608, %v607
        %v625 = vpack.c.b16 %v610, %v609
        %v626 = vpack.c.b16 %v612, %v611
        %v627 = vpack.c.b16 %v614, %v613
        %v628 = vpack.c.b16 %v616, %v615
        %v630 = vsel %vm399, %v617, 0
        %v633 = vsel %vm399, %v618, 0
        %v636 = vsel %vm399, %v619, 0
        %v639 = vsel %vm399, %v620, 0
        %v642 = vsel %vm399, %v621, 0
        %v645 = vsel %vm399, %v622, 0
        %v648 = vsel %vm399, %v623, 0
        %v651 = vsel %vm399, %v624, 0
        %v654 = vsel %vm399, %v625, 0
        %v657 = vsel %vm399, %v626, 0
        %v660 = vsel %vm399, %v627, 0
        %v663 = vsel %vm399, %v628, 0
        %v666 = vsel %vm436, %v313, 0
        %668 = vmatprep.subr.bf16.mxu0 0
        %669 = vmatpush1.bf16.msra.mxu0 0
        %670 = vmatprep.subr.bf16.mxu0 0
        %671 = vmatpush1.bf16.msra.mxu0 0
        %672 = vmatprep.subr.bf16.mxu0 0
        %673 = vmatpush1.bf16.msra.mxu0 0
        %674 = vmatprep.subr.bf16.mxu0 0
        %675 = vmatpush1.bf16.msra.mxu0 0
        %676 = vmatprep.subr.bf16.mxu0 0
        %677 = vmatpush1.bf16.msra.mxu0 0
        %678 = vmatprep.subr.bf16.mxu0 0
        %679 = vmatpush1.bf16.msra.mxu0 0
        %680 = vmatprep.subr.bf16.mxu0 0
        %681 = vmatpush1.bf16.msra.mxu0 0
        %682 = vmatprep.subr.bf16.mxu0 0
        %683 = vmatpush1.bf16.msra.mxu0 %v666
        %684 = vmatprep.subr.bf16.mxu0 0
        %685 = vmatpush2.bf16.msra.mxu0 0
        %686 = vmatprep.subr.bf16.mxu0 0
        %687 = vmatpush2.bf16.msra.mxu0 0
        %688 = vmatprep.subr.bf16.mxu0 0
        %689 = vmatpush2.bf16.msra.mxu0 0
        %690 = vmatprep.subr.bf16.mxu0 0
        %691 = vmatpush2.bf16.msra.mxu0 0
        %692 = vmatprep.subr.bf16.mxu0 0
        %693 = vmatpush2.bf16.msra.mxu0 0
        %694 = vmatprep.subr.bf16.mxu0 0
        %695 = vmatpush2.bf16.msra.mxu0 0
        %696 = vmatprep.subr.bf16.mxu0 0
        %697 = vmatpush2.bf16.msra.mxu0 0
        %698 = vmatprep.subr.bf16.mxu0 0
        %699 = vmatpush2.bf16.msra.mxu0 0
        %700 = vmatprep.mubr.bf16.mxu0 0
        %701 = vmatmul.mubr.bf16.gmra.mxu0 %v630
        %v702 = vpop.f32.mrf.mxu0
        %v703 = vadd.f32 %v475, %v702
        %v704 = vpop.f32.mrf.mxu0
        %v705 = vpop.f32.mrf.mxu0
        %v706 = vadd.f32 %v478, %v705
        %v707 = vpop.f32.mrf.mxu0
        %708 = vmatprep.mubr.bf16.mxu0 0
        %709 = vmatmul.mubr.bf16.gmra.mxu0 %v633
        %v710 = vpop.f32.mrf.mxu0
        %v711 = vadd.f32 %v483, %v710
        %v712 = vpop.f32.mrf.mxu0
        %v713 = vpop.f32.mrf.mxu0
        %v714 = vadd.f32 %v486, %v713
        %v715 = vpop.f32.mrf.mxu0
        %716 = vmatprep.mubr.bf16.mxu0 0
        %717 = vmatmul.mubr.bf16.gmra.mxu0 %v636
        %v718 = vpop.f32.mrf.mxu0
        %v719 = vadd.f32 %v491, %v718
        %v720 = vpop.f32.mrf.mxu0
        %v721 = vpop.f32.mrf.mxu0
        %v722 = vadd.f32 %v494, %v721
        %v723 = vpop.f32.mrf.mxu0
        %724 = vmatprep.mubr.bf16.mxu0 0
        %725 = vmatmul.mubr.bf16.gmra.mxu0 %v639
        %v726 = vpop.f32.mrf.mxu0
        %v727 = vadd.f32 %v499, %v726
        %v728 = vpop.f32.mrf.mxu0
        %v729 = vpop.f32.mrf.mxu0
        %v730 = vadd.f32 %v502, %v729
        %v731 = vpop.f32.mrf.mxu0
        %732 = vmatprep.mubr.bf16.mxu0 0
        %733 = vmatmul.mubr.bf16.gmra.mxu0 %v642
        %v734 = vpop.f32.mrf.mxu0
        %v735 = vadd.f32 %v507, %v734
        %v736 = vpop.f32.mrf.mxu0
        %v737 = vpop.f32.mrf.mxu0
        %v738 = vadd.f32 %v510, %v737
        %v739 = vpop.f32.mrf.mxu0
        %740 = vmatprep.mubr.bf16.mxu0 0
        %741 = vmatmul.mubr.bf16.gmra.mxu0 %v645
        %v742 = vpop.f32.mrf.mxu0
        %v743 = vadd.f32 %v515, %v742
        %v744 = vpop.f32.mrf.mxu0
        %v745 = vpop.f32.mrf.mxu0
        %v746 = vadd.f32 %v518, %v745
        %v747 = vpop.f32.mrf.mxu0
        %748 = vmatprep.mubr.bf16.mxu0 0
        %749 = vmatmul.mubr.bf16.gmra.mxu0 %v648
        %v750 = vpop.f32.mrf.mxu0
        %v751 = vadd.f32 %v523, %v750
        %v752 = vpop.f32.mrf.mxu0
        %v753 = vpop.f32.mrf.mxu0
        %v754 = vadd.f32 %v526, %v753
        %v755 = vpop.f32.mrf.mxu0
        %756 = vmatprep.mubr.bf16.mxu0 0
        %757 = vmatmul.mubr.bf16.gmra.mxu0 %v651
        %v758 = vpop.f32.mrf.mxu0
        %v759 = vadd.f32 %v531, %v758
        %v760 = vpop.f32.mrf.mxu0
        %v761 = vpop.f32.mrf.mxu0
        %v762 = vadd.f32 %v534, %v761
        %v763 = vpop.f32.mrf.mxu0
        %764 = vmatprep.mubr.bf16.mxu0 0
        %765 = vmatmul.mubr.bf16.gmra.mxu0 %v654
        %v766 = vpop.f32.mrf.mxu0
        %v767 = vadd.f32 %v539, %v766
        %v768 = vpop.f32.mrf.mxu0
        %v769 = vpop.f32.mrf.mxu0
        %v770 = vadd.f32 %v542, %v769
        %v771 = vpop.f32.mrf.mxu0
        %772 = vmatprep.mubr.bf16.mxu0 0
        %773 = vmatmul.mubr.bf16.gmra.mxu0 %v657
        %v774 = vpop.f32.mrf.mxu0
        %v775 = vadd.f32 %v547, %v774
        %v776 = vpop.f32.mrf.mxu0
        %v777 = vpop.f32.mrf.mxu0
        %v778 = vadd.f32 %v550, %v777
        %v779 = vpop.f32.mrf.mxu0
        %780 = vmatprep.mubr.bf16.mxu0 0
        %781 = vmatmul.mubr.bf16.gmra.mxu0 %v660
        %v782 = vpop.f32.mrf.mxu0
        %v783 = vadd.f32 %v555, %v782
        %v784 = vpop.f32.mrf.mxu0
        %v785 = vpop.f32.mrf.mxu0
        %v786 = vadd.f32 %v558, %v785
        %v787 = vpop.f32.mrf.mxu0
        %788 = vmatprep.mubr.bf16.mxu0 0
        %789 = vmatmul.mubr.bf16.gmra.mxu0 %v663
        %v790 = vpop.f32.mrf.mxu0
        %v791 = vadd.f32 %v563, %v790
        %v792 = vpop.f32.mrf.mxu0
        %v793 = vpop.f32.mrf.mxu0
        %v794 = vadd.f32 %v566, %v793
        %v795 = vpop.f32.mrf.mxu0
        %796 = vdwg.mxu0
        %v797 = vld [vmem:[%s4] sm:$0x1]
        %v799 = vlaneseq
        %v800 = vshrl.u32 %v799, 7
        %v801 = vsub.s32 0, %v800
        %v802 = vrot.slane %v797, %v801
        %v804 = vadd.f32 %v703, %v802
        %v805 = vadd.f32 %v706, %v802
        %v806 = vadd.f32 %v711, %v802
        %v807 = vadd.f32 %v714, %v802
        %v808 = vadd.f32 %v719, %v802
        %v809 = vadd.f32 %v722, %v802
        %v810 = vadd.f32 %v727, %v802
        %v811 = vadd.f32 %v730, %v802
        %v812 = vadd.f32 %v735, %v802
        %v813 = vadd.f32 %v738, %v802
        %v814 = vadd.f32 %v743, %v802
        %v815 = vadd.f32 %v746, %v802
        %v816 = vadd.f32 %v751, %v802
        %v817 = vadd.f32 %v754, %v802
        %v818 = vadd.f32 %v759, %v802
        %v819 = vadd.f32 %v762, %v802
        %v820 = vadd.f32 %v767, %v802
        %v821 = vadd.f32 %v770, %v802
        %v822 = vadd.f32 %v775, %v802
        %v823 = vadd.f32 %v778, %v802
        %v824 = vadd.f32 %v783, %v802
        %v825 = vadd.f32 %v786, %v802
        %v826 = vadd.f32 %v791, %v802
        %v827 = vadd.f32 %v794, %v802
        %vm828 = vcmp.gt.f32.partialorder %v804, 0.0
        %vm829 = vcmp.gt.f32.partialorder %v805, 0.0
        %vm830 = vcmp.gt.f32.partialorder %v806, 0.0
        %vm831 = vcmp.gt.f32.partialorder %v807, 0.0
        %vm832 = vcmp.gt.f32.partialorder %v808, 0.0
        %vm833 = vcmp.gt.f32.partialorder %v809, 0.0
        %vm834 = vcmp.gt.f32.partialorder %v810, 0.0
        %vm835 = vcmp.gt.f32.partialorder %v811, 0.0
        %vm836 = vcmp.gt.f32.partialorder %v812, 0.0
        %vm837 = vcmp.gt.f32.partialorder %v813, 0.0
        %vm838 = vcmp.gt.f32.partialorder %v814, 0.0
        %vm839 = vcmp.gt.f32.partialorder %v815, 0.0
        %vm840 = vcmp.gt.f32.partialorder %v816, 0.0
        %vm841 = vcmp.gt.f32.partialorder %v817, 0.0
        %vm842 = vcmp.gt.f32.partialorder %v818, 0.0
        %vm843 = vcmp.gt.f32.partialorder %v819, 0.0
        %vm844 = vcmp.gt.f32.partialorder %v820, 0.0
        %vm845 = vcmp.gt.f32.partialorder %v821, 0.0
        %vm846 = vcmp.gt.f32.partialorder %v822, 0.0
        %vm847 = vcmp.gt.f32.partialorder %v823, 0.0
        %vm848 = vcmp.gt.f32.partialorder %v824, 0.0
        %vm849 = vcmp.gt.f32.partialorder %v825, 0.0
        %vm850 = vcmp.gt.f32.partialorder %v826, 0.0
        %vm851 = vcmp.gt.f32.partialorder %v827, 0.0
        %v852 = vmul.f32 %v804, 0.01
        %v853 = vmul.f32 %v805, 0.01
        %v854 = vmul.f32 %v806, 0.01
        %v855 = vmul.f32 %v807, 0.01
        %v856 = vmul.f32 %v808, 0.01
        %v857 = vmul.f32 %v809, 0.01
        %v858 = vmul.f32 %v810, 0.01
        %v859 = vmul.f32 %v811, 0.01
        %v860 = vmul.f32 %v812, 0.01
        %v861 = vmul.f32 %v813, 0.01
        %v862 = vmul.f32 %v814, 0.01
        %v863 = vmul.f32 %v815, 0.01
        %v864 = vmul.f32 %v816, 0.01
        %v865 = vmul.f32 %v817, 0.01
        %v866 = vmul.f32 %v818, 0.01
        %v867 = vmul.f32 %v819, 0.01
        %v868 = vmul.f32 %v820, 0.01
        %v869 = vmul.f32 %v821, 0.01
        %v870 = vmul.f32 %v822, 0.01
        %v871 = vmul.f32 %v823, 0.01
        %v872 = vmul.f32 %v824, 0.01
        %v873 = vmul.f32 %v825, 0.01
        %v874 = vmul.f32 %v826, 0.01
        %v875 = vmul.f32 %v827, 0.01
        %v876 = vsel %vm828, %v804, %v852
        %v877 = vsel %vm829, %v805, %v853
        %v878 = vsel %vm830, %v806, %v854
        %v879 = vsel %vm831, %v807, %v855
        %v880 = vsel %vm832, %v808, %v856
        %v881 = vsel %vm833, %v809, %v857
        %v882 = vsel %vm834, %v810, %v858
        %v883 = vsel %vm835, %v811, %v859
        %v884 = vsel %vm836, %v812, %v860
        %v885 = vsel %vm837, %v813, %v861
        %v886 = vsel %vm838, %v814, %v862
        %v887 = vsel %vm839, %v815, %v863
        %v888 = vsel %vm840, %v816, %v864
        %v889 = vsel %vm841, %v817, %v865
        %v890 = vsel %vm842, %v818, %v866
        %v891 = vsel %vm843, %v819, %v867
        %v892 = vsel %vm844, %v820, %v868
        %v893 = vsel %vm845, %v821, %v869
        %v894 = vsel %vm846, %v822, %v870
        %v895 = vsel %vm847, %v823, %v871
        %v896 = vsel %vm848, %v824, %v872
        %v897 = vsel %vm849, %v825, %v873
        %v898 = vsel %vm850, %v826, %v874
        %v899 = vsel %vm851, %v827, %v875
        %vm900 = vcmask 130048
        %901 = vst.msk [vmem:[%s254] sm:$0xff] %vm900, %v876
        %902 = vst.msk [vmem:[%s254 + $0x8] sm:$0xff] %vm900, %v877
        %903 = vst.msk [vmem:[%s254 + $0x10] sm:$0xff] %vm900, %v878
        %904 = vst.msk [vmem:[%s254 + $0x18] sm:$0xff] %vm900, %v879
        %905 = vst.msk [vmem:[%s254 + $0x20] sm:$0xff] %vm900, %v880
        %906 = vst.msk [vmem:[%s254 + $0x28] sm:$0xff] %vm900, %v881
        %907 = vst.msk [vmem:[%s254 + $0x30] sm:$0xff] %vm900, %v882
        %908 = vst.msk [vmem:[%s254 + $0x38] sm:$0xff] %vm900, %v883
        %909 = vst.msk [vmem:[%s254 + $0x40] sm:$0xff] %vm900, %v884
        %910 = vst.msk [vmem:[%s254 + $0x48] sm:$0xff] %vm900, %v885
        %911 = vst.msk [vmem:[%s254 + $0x50] sm:$0xff] %vm900, %v886
        %912 = vst.msk [vmem:[%s254 + $0x58] sm:$0xff] %vm900, %v887
        %913 = vst.msk [vmem:[%s254 + $0x60] sm:$0xff] %vm900, %v888
        %914 = vst.msk [vmem:[%s254 + $0x68] sm:$0xff] %vm900, %v889
        %915 = vst.msk [vmem:[%s254 + $0x70] sm:$0xff] %vm900, %v890
        %916 = vst.msk [vmem:[%s254 + $0x78] sm:$0xff] %vm900, %v891
        %917 = vst.msk [vmem:[%s254 + $0x80] sm:$0xff] %vm900, %v892
        %918 = vst.msk [vmem:[%s254 + $0x88] sm:$0xff] %vm900, %v893
        %919 = vst.msk [vmem:[%s254 + $0x90] sm:$0xff] %vm900, %v894
        %920 = vst.msk [vmem:[%s254 + $0x98] sm:$0xff] %vm900, %v895
        %921 = vst.msk [vmem:[%s254 + $0xa0] sm:$0xff] %vm900, %v896
        %922 = vst.msk [vmem:[%s254 + $0xa8] sm:$0xff] %vm900, %v897
        %923 = vst.msk [vmem:[%s254 + $0xb0] sm:$0xff] %vm900, %v898
        %924 = vst.msk [vmem:[%s254 + $0xb8] sm:$0xff] %vm900, %v899
        %s925 = sand.u32 %s139, 1
        %s926 = sand.u32 %s139, 1
        %s927 = smul.addr %s926, 192
        %s928 = scalar_lea.vmem [#allocation2], %s927
        // Predicated region
        $region41: #{bottleneck_forward.5} parent=39 // pred_check
          %p929 = pneg %p149
        $region42: #{bottleneck_forward.5} parent=39 // pred_check_branch
          %931 = sbr.rel (%p929) target = $region44
        $region43: #{bottleneck_forward.5} parent=39 // pred_region
          %s932 = smul.u32 24, %s16
          %s933 = ssub.s32 64, %s932
          %p934 = scmp.lt.s32.totalorder %s933, 24
          %s935 = scalar_select %p934, %s933, 24
          %s936 = smul.u32 128, %s935
          %p937 = scmp.ne.s32.totalorder 0, %s936
          %s938 = smul.addr %s932, 8
          %s939 = scalar_lea.vmem %s5, %s938
          // Predicated region
          $region45: #{bottleneck_forward.5} parent=43 // pred_check
            %p940 = pneg %p937
          $region46: #{bottleneck_forward.5} parent=43 // pred_check_branch
            %942 = sbr.rel (%p940) target = $region48
          $region47: #{bottleneck_forward.5} parent=43 // pred_region
            // Predicated region
            $region49: #{bottleneck_forward.5} parent=47 // pred_check
              _
            $region50: #{bottleneck_forward.5} parent=47 // pred_check_branch
              %944 = sbr.rel (0) target = $region52
            $region51: #{bottleneck_forward.5} parent=47 // pred_region
              // Predicated region
              $region71: #{bottleneck_forward.5} parent=51 // pred_check
                _
              $region72: #{bottleneck_forward.5} parent=51 // pred_check_branch
                %1041 = sbr.rel (0) target = $region74
              $region73: #{bottleneck_forward.5} parent=51 // pred_region
                %s1042 = sdiv.u32.pop %s935, 24
                %s1043 = srem.u32.pop %s935, 24
                // While loop
                $region75: #{bottleneck_forward.5} parent=73 // loop_pre_header
                  _
                $region76: #{bottleneck_forward.5} parent=73 // loop_header
                  %s1045 = sphi 0, %s1047
                  %p1046 = scmp.ge.s32.totalorder %s1045, %s1042
                  %s1050 = sphi 0, %s1103
                  %s1051 = sphi %s928, %s1106
                  %s1052 = sphi %s939, %s1107
                $region77: #{bottleneck_forward.5} parent=73 // loop_header_branch
                  %1049 = sbr.rel (%p1046) target = $region81
                $region78: #{bottleneck_forward.5} parent=73 // loop_body
                  %v1053 = vld [vmem:[%s1051] sm:$0xff]
                  %1054 = vst [vmem:[%s1052] sm:$0xff] %v1053
                  %v1055 = vld [vmem:[%s1051 + $0x8] sm:$0xff]
                  %1056 = vst [vmem:[%s1052 + $0x8] sm:$0xff] %v1055
                  %v1057 = vld [vmem:[%s1051 + $0x10] sm:$0xff]
                  %1058 = vst [vmem:[%s1052 + $0x10] sm:$0xff] %v1057
                  %v1059 = vld [vmem:[%s1051 + $0x18] sm:$0xff]
                  %1060 = vst [vmem:[%s1052 + $0x18] sm:$0xff] %v1059
                  %v1061 = vld [vmem:[%s1051 + $0x20] sm:$0xff]
                  %1062 = vst [vmem:[%s1052 + $0x20] sm:$0xff] %v1061
                  %v1063 = vld [vmem:[%s1051 + $0x28] sm:$0xff]
                  %1064 = vst [vmem:[%s1052 + $0x28] sm:$0xff] %v1063
                  %v1065 = vld [vmem:[%s1051 + $0x30] sm:$0xff]
                  %1066 = vst [vmem:[%s1052 + $0x30] sm:$0xff] %v1065
                  %v1067 = vld [vmem:[%s1051 + $0x38] sm:$0xff]
                  %1068 = vst [vmem:[%s1052 + $0x38] sm:$0xff] %v1067
                  %v1069 = vld [vmem:[%s1051 + $0x40] sm:$0xff]
                  %1070 = vst [vmem:[%s1052 + $0x40] sm:$0xff] %v1069
                  %v1071 = vld [vmem:[%s1051 + $0x48] sm:$0xff]
                  %1072 = vst [vmem:[%s1052 + $0x48] sm:$0xff] %v1071
                  %v1073 = vld [vmem:[%s1051 + $0x50] sm:$0xff]
                  %1074 = vst [vmem:[%s1052 + $0x50] sm:$0xff] %v1073
                  %v1075 = vld [vmem:[%s1051 + $0x58] sm:$0xff]
                  %1076 = vst [vmem:[%s1052 + $0x58] sm:$0xff] %v1075
                  %v1077 = vld [vmem:[%s1051 + $0x60] sm:$0xff]
                  %1078 = vst [vmem:[%s1052 + $0x60] sm:$0xff] %v1077
                  %v1079 = vld [vmem:[%s1051 + $0x68] sm:$0xff]
                  %1080 = vst [vmem:[%s1052 + $0x68] sm:$0xff] %v1079
                  %v1081 = vld [vmem:[%s1051 + $0x70] sm:$0xff]
                  %1082 = vst [vmem:[%s1052 + $0x70] sm:$0xff] %v1081
                  %v1083 = vld [vmem:[%s1051 + $0x78] sm:$0xff]
                  %1084 = vst [vmem:[%s1052 + $0x78] sm:$0xff] %v1083
                  %v1085 = vld [vmem:[%s1051 + $0x80] sm:$0xff]
                  %1086 = vst [vmem:[%s1052 + $0x80] sm:$0xff] %v1085
                  %v1087 = vld [vmem:[%s1051 + $0x88] sm:$0xff]
                  %1088 = vst [vmem:[%s1052 + $0x88] sm:$0xff] %v1087
                  %v1089 = vld [vmem:[%s1051 + $0x90] sm:$0xff]
                  %1090 = vst [vmem:[%s1052 + $0x90] sm:$0xff] %v1089
                  %v1091 = vld [vmem:[%s1051 + $0x98] sm:$0xff]
                  %1092 = vst [vmem:[%s1052 + $0x98] sm:$0xff] %v1091
                  %v1093 = vld [vmem:[%s1051 + $0xa0] sm:$0xff]
                  %1094 = vst [vmem:[%s1052 + $0xa0] sm:$0xff] %v1093
                  %v1095 = vld [vmem:[%s1051 + $0xa8] sm:$0xff]
                  %1096 = vst [vmem:[%s1052 + $0xa8] sm:$0xff] %v1095
                  %v1097 = vld [vmem:[%s1051 + $0xb0] sm:$0xff]
                  %1098 = vst [vmem:[%s1052 + $0xb0] sm:$0xff] %v1097
                  %v1099 = vld [vmem:[%s1051 + $0xb8] sm:$0xff]
                  %1100 = vst [vmem:[%s1052 + $0xb8] sm:$0xff] %v1099
                  %s1101 = sadd.s32 1, %s1050
                  %p1102 = scmp.ge.s32.totalorder %s1101, %s1042
                  %s1103 = scalar_select %p1102, 0, %s1101
                  %s1104 = smul.u32 %s1103, 192
                  %s1105 = smul.u32 %s1103, 192
                  %s1106 = scalar_lea.vmem %s928, %s1104 [#allocation2]
                  %s1107 = scalar_lea.vmem %s939, %s1105
                $region79: #{bottleneck_forward.5} parent=73 // loop_footer
                  %s1047 = sadd.s32 %s1045, 1
                $region80: #{bottleneck_forward.5} parent=73 // loop_footer_branch
                  %1044 = sbr.rel target = $region76
                $region81: #{bottleneck_forward.5} parent=73 // loop_exit
                  _
                %s1108 = sdiv.u32.pop %s935, 24
                %s1109 = srem.u32.pop %s935, 24
                %s1110 = smul.u32 %s1108, 24
                %s1111 = smul.u32 8, %s1110
                %s1112 = scalar_lea.vmem %s928, %s1111 [#allocation2]
                %s1113 = smul.u32 8, %s1110
                %s1114 = scalar_lea.vmem %s939, %s1113
                // While loop
                $region82: #{bottleneck_forward.5} parent=73 // loop_pre_header
                  _
                $region83: #{bottleneck_forward.5} parent=73 // loop_header
                  %s1116 = sphi 0, %s1118
                  %p1117 = scmp.ge.s32.totalorder %s1116, %s1109
                  %s1121 = sphi 0, %s1128
                  %s1122 = sphi %s1112, %s1131
                  %s1123 = sphi %s1114, %s1132
                $region84: #{bottleneck_forward.5} parent=73 // loop_header_branch
                  %1120 = sbr.rel (%p1117) target = $region88
                $region85: #{bottleneck_forward.5} parent=73 // loop_body
                  %v1124 = vld [vmem:[%s1122] sm:$0xff]
                  %1125 = vst [vmem:[%s1123] sm:$0xff] %v1124
                  %s1126 = sadd.s32 1, %s1121
                  %p1127 = scmp.ge.s32.totalorder %s1126, %s1109
                  %s1128 = scalar_select %p1127, 0, %s1126
                  %s1129 = smul.u32 %s1128, 8
                  %s1130 = smul.u32 %s1128, 8
                  %s1131 = scalar_lea.vmem %s1112, %s1129 [#allocation2]
                  %s1132 = scalar_lea.vmem %s1114, %s1130
                $region86: #{bottleneck_forward.5} parent=73 // loop_footer
                  %s1118 = sadd.s32 %s1116, 1
                $region87: #{bottleneck_forward.5} parent=73 // loop_footer_branch
                  %1115 = sbr.rel target = $region83
                $region88: #{bottleneck_forward.5} parent=73 // loop_exit
                  _
              $region74: #{bottleneck_forward.5} parent=51 // pred_fallthru
                _
              // Predicated region
              $region89: #{bottleneck_forward.5} parent=51 // pred_check
                _
              $region90: #{bottleneck_forward.5} parent=51 // pred_check_branch
                %1134 = sbr.rel target = $region92
              $region91: #{bottleneck_forward.5} parent=51 // pred_region
                _
              $region92: #{bottleneck_forward.5} parent=51 // pred_fallthru
                _
            $region52: #{bottleneck_forward.5} parent=47 // pred_fallthru
              _
            // Predicated region
            $region53: #{bottleneck_forward.5} parent=47 // pred_check
              _
            $region54: #{bottleneck_forward.5} parent=47 // pred_check_branch
              %946 = sbr.rel target = $region56
            $region55: #{bottleneck_forward.5} parent=47 // pred_region
              %s948 = ssub.s32 256, 1
              %s949 = sdiv.u32.pop %s935, 24
              %s950 = srem.u32.pop %s935, 24
              // While loop
              $region57: #{bottleneck_forward.5} parent=55 // loop_pre_header
                _
              $region58: #{bottleneck_forward.5} parent=55 // loop_header
                %s952 = sphi 0, %s954
                %p953 = scmp.ge.s32.totalorder %s952, %s949
                %s957 = sphi 0, %s1010
                %s958 = sphi %s928, %s1013
                %s959 = sphi %s939, %s1014
              $region59: #{bottleneck_forward.5} parent=55 // loop_header_branch
                %956 = sbr.rel (%p953) target = $region63
              $region60: #{bottleneck_forward.5} parent=55 // loop_body
                %v960 = vld [vmem:[%s958] sm:%s948]
                %961 = vst [vmem:[%s959] sm:%s948] %v960
                %v962 = vld [vmem:[%s958 + $0x8] sm:%s948]
                %963 = vst [vmem:[%s959 + $0x8] sm:%s948] %v962
                %v964 = vld [vmem:[%s958 + $0x10] sm:%s948]
                %965 = vst [vmem:[%s959 + $0x10] sm:%s948] %v964
                %v966 = vld [vmem:[%s958 + $0x18] sm:%s948]
                %967 = vst [vmem:[%s959 + $0x18] sm:%s948] %v966
                %v968 = vld [vmem:[%s958 + $0x20] sm:%s948]
                %969 = vst [vmem:[%s959 + $0x20] sm:%s948] %v968
                %v970 = vld [vmem:[%s958 + $0x28] sm:%s948]
                %971 = vst [vmem:[%s959 + $0x28] sm:%s948] %v970
                %v972 = vld [vmem:[%s958 + $0x30] sm:%s948]
                %973 = vst [vmem:[%s959 + $0x30] sm:%s948] %v972
                %v974 = vld [vmem:[%s958 + $0x38] sm:%s948]
                %975 = vst [vmem:[%s959 + $0x38] sm:%s948] %v974
                %v976 = vld [vmem:[%s958 + $0x40] sm:%s948]
                %977 = vst [vmem:[%s959 + $0x40] sm:%s948] %v976
                %v978 = vld [vmem:[%s958 + $0x48] sm:%s948]
                %979 = vst [vmem:[%s959 + $0x48] sm:%s948] %v978
                %v980 = vld [vmem:[%s958 + $0x50] sm:%s948]
                %981 = vst [vmem:[%s959 + $0x50] sm:%s948] %v980
                %v982 = vld [vmem:[%s958 + $0x58] sm:%s948]
                %983 = vst [vmem:[%s959 + $0x58] sm:%s948] %v982
                %v984 = vld [vmem:[%s958 + $0x60] sm:%s948]
                %985 = vst [vmem:[%s959 + $0x60] sm:%s948] %v984
                %v986 = vld [vmem:[%s958 + $0x68] sm:%s948]
                %987 = vst [vmem:[%s959 + $0x68] sm:%s948] %v986
                %v988 = vld [vmem:[%s958 + $0x70] sm:%s948]
                %989 = vst [vmem:[%s959 + $0x70] sm:%s948] %v988
                %v990 = vld [vmem:[%s958 + $0x78] sm:%s948]
                %991 = vst [vmem:[%s959 + $0x78] sm:%s948] %v990
                %v992 = vld [vmem:[%s958 + $0x80] sm:%s948]
                %993 = vst [vmem:[%s959 + $0x80] sm:%s948] %v992
                %v994 = vld [vmem:[%s958 + $0x88] sm:%s948]
                %995 = vst [vmem:[%s959 + $0x88] sm:%s948] %v994
                %v996 = vld [vmem:[%s958 + $0x90] sm:%s948]
                %997 = vst [vmem:[%s959 + $0x90] sm:%s948] %v996
                %v998 = vld [vmem:[%s958 + $0x98] sm:%s948]
                %999 = vst [vmem:[%s959 + $0x98] sm:%s948] %v998
                %v1000 = vld [vmem:[%s958 + $0xa0] sm:%s948]
                %1001 = vst [vmem:[%s959 + $0xa0] sm:%s948] %v1000
                %v1002 = vld [vmem:[%s958 + $0xa8] sm:%s948]
                %1003 = vst [vmem:[%s959 + $0xa8] sm:%s948] %v1002
                %v1004 = vld [vmem:[%s958 + $0xb0] sm:%s948]
                %1005 = vst [vmem:[%s959 + $0xb0] sm:%s948] %v1004
                %v1006 = vld [vmem:[%s958 + $0xb8] sm:%s948]
                %1007 = vst [vmem:[%s959 + $0xb8] sm:%s948] %v1006
                %s1008 = sadd.s32 1, %s957
                %p1009 = scmp.ge.s32.totalorder %s1008, %s949
                %s1010 = scalar_select %p1009, 0, %s1008
                %s1011 = smul.u32 %s1010, 192
                %s1012 = smul.u32 %s1010, 192
                %s1013 = scalar_lea.vmem %s928, %s1011 [#allocation2]
                %s1014 = scalar_lea.vmem %s939, %s1012
              $region61: #{bottleneck_forward.5} parent=55 // loop_footer
                %s954 = sadd.s32 %s952, 1
              $region62: #{bottleneck_forward.5} parent=55 // loop_footer_branch
                %951 = sbr.rel target = $region58
              $region63: #{bottleneck_forward.5} parent=55 // loop_exit
                _
              %s1015 = sdiv.u32.pop %s935, 24
              %s1016 = srem.u32.pop %s935, 24
              %s1017 = smul.u32 %s1015, 24
              %s1018 = smul.u32 8, %s1017
              %s1019 = scalar_lea.vmem %s928, %s1018 [#allocation2]
              %s1020 = smul.u32 8, %s1017
              %s1021 = scalar_lea.vmem %s939, %s1020
              // While loop
              $region64: #{bottleneck_forward.5} parent=55 // loop_pre_header
                _
              $region65: #{bottleneck_forward.5} parent=55 // loop_header
                %s1023 = sphi 0, %s1025
                %p1024 = scmp.ge.s32.totalorder %s1023, %s1016
                %s1028 = sphi 0, %s1035
                %s1029 = sphi %s1019, %s1038
                %s1030 = sphi %s1021, %s1039
              $region66: #{bottleneck_forward.5} parent=55 // loop_header_branch
                %1027 = sbr.rel (%p1024) target = $region70
              $region67: #{bottleneck_forward.5} parent=55 // loop_body
                %v1031 = vld [vmem:[%s1029] sm:%s948]
                %1032 = vst [vmem:[%s1030] sm:%s948] %v1031
                %s1033 = sadd.s32 1, %s1028
                %p1034 = scmp.ge.s32.totalorder %s1033, %s1016
                %s1035 = scalar_select %p1034, 0, %s1033
                %s1036 = smul.u32 %s1035, 8
                %s1037 = smul.u32 %s1035, 8
                %s1038 = scalar_lea.vmem %s1019, %s1036 [#allocation2]
                %s1039 = scalar_lea.vmem %s1021, %s1037
              $region68: #{bottleneck_forward.5} parent=55 // loop_footer
                %s1025 = sadd.s32 %s1023, 1
              $region69: #{bottleneck_forward.5} parent=55 // loop_footer_branch
                %1022 = sbr.rel target = $region65
              $region70: #{bottleneck_forward.5} parent=55 // loop_exit
                _
            $region56: #{bottleneck_forward.5} parent=47 // pred_fallthru
              _
          $region48: #{bottleneck_forward.5} parent=43 // pred_fallthru
            _
          %1135 = vnop
        $region44: #{bottleneck_forward.5} parent=39 // pred_fallthru
          _
      $region40: #{bottleneck_forward.5} parent=5 // pred_fallthru
        _
      %p1136 = scmp.le.s32.totalorder 2, %s11
      // Predicated region
      $region93: #{bottleneck_forward.5} parent=5 // pred_check
        %p1137 = pneg %p1136
      $region94: #{bottleneck_forward.5} parent=5 // pred_check_branch
        %1139 = sbr.rel (%p1137) target = $region96
      $region95: #{bottleneck_forward.5} parent=5 // pred_region
        %s1140 = ssub.s32 %s11, 2
        // Predicated region
        $region97: #{bottleneck_forward.5} parent=95 // pred_check
          %p1141 = pneg %p155
        $region98: #{bottleneck_forward.5} parent=95 // pred_check_branch
          %1143 = sbr.rel (%p1141) target = $region100
        $region99: #{bottleneck_forward.5} parent=95 // pred_region
          %s1144 = sand.u32 %s140, 1
          %s1145 = sand.u32 %s140, 1
          %s1146 = smul.addr %s1145, 192
          %s1147 = scalar_lea.vmem [#allocation2], %s1146
        $region100: #{bottleneck_forward.5} parent=95 // pred_fallthru
          _
      $region96: #{bottleneck_forward.5} parent=5 // pred_fallthru
        _
    $region6: #{bottleneck_forward.5} parent=1 // loop_footer
      %s15 = sadd.s32 1, %s11
    $region7: #{bottleneck_forward.5} parent=1 // loop_footer_branch
      %10 = sbr.rel target = $region3
    $region8: #{bottleneck_forward.5} parent=1 // loop_exit
      _

// kernel: bottleneck_forward.4
$region0: #{bottleneck_forward.4}
  #allocation0 [shape = 'u32[]', space=smem, size = 0x4, offset = 0x4, fixed_abs, tag = 'smem constant byte address 0x4 - core index']
  #allocation1 [shape = 'u32[144,128]{1,0:T(1,128)}', space=vmem, size = 0x12000, scoped, tag = 'internal scratch']
  #allocation2 [shape = 'bf16[18,18,4]{2,1,0:T(8,128)(2,1)}', space=vmem, size = 0x1b000, scoped, tag = 'scratch operand']
  %s0 = inlined_call_operand.vmem [shape: bf16[2,16,16,4], index: 0, kind: input, shape index: {}]
  %s1 = inlined_call_operand.vmem [shape: bf16[3,12,4], index: 1, kind: input, shape index: {}]
  %s2 = inlined_call_operand.vmem [shape: f32[1,4], index: 2, kind: input, shape index: {}]
  %s3 = inlined_call_operand.vmem [shape: bf16[2,16,16,4], index: 3, kind: output, shape index: {}]
  %s4 = sld [smem:[#allocation0]]
  $region49: #{bottleneck_forward.4} parent=0
    _
  %s6 = ssub.s32 1, %s4
  %s7 = scalar_select 0, %s6, %s4
  loop: start=0, step=1, limit=4
  $region2: #{bottleneck_forward.4} parent=0 // loop_pre_header
    _
  $region3: #{bottleneck_forward.4} parent=0 // loop_header
    %s9 = sphi 0, %s13
    %p10 = scmp.ge.s32.totalorder %s9, 4
    %s16 = sphi 0, %s28
    %s17 = sphi 0, %s24
    %s18 = sphi 0, %s16
    %s19 = sphi 0, %s17
    %s20 = sphi 0, %s18
    %s21 = sphi 0, %s19
    %s31 = sphi 0, %s33
    %s34 = sphi 0, %s31
    %s35 = sphi 0, %s34
    %s51 = sphi 0, %s35
    %s55 = sphi 0, %s55
    %s57 = sphi 0, %s55
    %s58 = sphi 0, %s57
    %s72 = sphi 0, %s58
    %s76 = sphi 0, %s76
    %s78 = sphi 0, %s76
    %s79 = sphi 0, %s78
    %s93 = sphi 0, %s79
    %s101 = sphi 0, %s103
    %s104 = sphi 0, %s101
    %s105 = sphi 0, %s104
    %s121 = sphi 0, %s105
  $region4: #{bottleneck_forward.4} parent=0 // loop_header_branch
    %12 = sbr.rel (%p10) target = $region8
  $region5: #{bottleneck_forward.4} parent=0 // loop_body
    %s14 = ssub.s32 %s9, 1
    %s15 = ssub.s32 %s9, 2
    %s22 = sadd.s32 1, %s17
    %p23 = scmp.ge.s32.totalorder %s22, 1
    %s24 = scalar_select %p23, 0, %s22
    %s25 = sadd.s32 1, %s16
    %s26 = scalar_select %p23, %s25, %s16
    %p27 = scmp.ge.s32.totalorder %s26, 2
    %s28 = scalar_select %p27, 0, %s26
    %s29 = ssub.s32 %s16, %s28
    %p30 = scmp.eq.s32.totalorder %s29, 0
    %s32 = sadd.s32 %s31, 1
    %s33 = scalar_select %p30, %s31, %s32
    %p36 = pneg %p30
    %p37 = scmp.eq.s32.totalorder %s9, 1
    %p38 = por %p36, %p37
    %p39 = scmp.ne.s32.totalorder %s31, %s34
    %p40 = scmp.eq.s32.totalorder %s9, 0
    %p41 = por %p39, %p40
    %p42 = scmp.ne.s32.totalorder %s31, %s34
    %p43 = scmp.eq.s32.totalorder %s14, 1
    %p44 = por %p42, %p43
    %p45 = scmp.ne.s32.totalorder %s34, %s35
    %p46 = scmp.eq.s32.totalorder %s14, 0
    %p47 = por %p45, %p46
    %p48 = scmp.ne.s32.totalorder %s34, %s35
    %p49 = scmp.eq.s32.totalorder %s15, 1
    %p50 = por %p48, %p49
    %p52 = scmp.ne.s32.totalorder %s35, %s51
    %p53 = scmp.eq.s32.totalorder %s15, 0
    %p54 = por %p52, %p53
    %s56 = sadd.s32 %s55, 1
    %p59 = scmp.eq.s32.totalorder %s9, 1
    %p60 = scmp.ne.s32.totalorder %s55, %s57
    %p61 = scmp.eq.s32.totalorder %s9, 0
    %p62 = por %p60, %p61
    %p63 = scmp.ne.s32.totalorder %s55, %s57
    %p64 = scmp.eq.s32.totalorder %s14, 1
    %p65 = por %p63, %p64
    %p66 = scmp.ne.s32.totalorder %s57, %s58
    %p67 = scmp.eq.s32.totalorder %s14, 0
    %p68 = por %p66, %p67
    %p69 = scmp.ne.s32.totalorder %s57, %s58
    %p70 = scmp.eq.s32.totalorder %s15, 1
    %p71 = por %p69, %p70
    %p73 = scmp.ne.s32.totalorder %s58, %s72
    %p74 = scmp.eq.s32.totalorder %s15, 0
    %p75 = por %p73, %p74
    %s77 = sadd.s32 %s76, 1
    %p80 = scmp.eq.s32.totalorder %s9, 1
    %p81 = scmp.ne.s32.totalorder %s76, %s78
    %p82 = scmp.eq.s32.totalorder %s9, 0
    %p83 = por %p81, %p82
    %p84 = scmp.ne.s32.totalorder %s76, %s78
    %p85 = scmp.eq.s32.totalorder %s14, 1
    %p86 = por %p84, %p85
    %p87 = scmp.ne.s32.totalorder %s78, %s79
    %p88 = scmp.eq.s32.totalorder %s14, 0
    %p89 = por %p87, %p88
    %p90 = scmp.ne.s32.totalorder %s78, %s79
    %p91 = scmp.eq.s32.totalorder %s15, 1
    %p92 = por %p90, %p91
    %p94 = scmp.ne.s32.totalorder %s79, %s93
    %p95 = scmp.eq.s32.totalorder %s15, 0
    %p96 = por %p94, %p95
    %s97 = ssub.s32 %s16, %s28
    %s98 = ssub.s32 %s17, %s24
    %s99 = sor.u32 %s97, %s98
    %p100 = scmp.eq.s32.totalorder %s99, 0
    %s102 = sadd.s32 %s101, 1
    %s103 = scalar_select %p100, %s101, %s102
    %p106 = pneg %p100
    %p107 = scmp.eq.s32.totalorder %s9, 1
    %p108 = por %p106, %p107
    %p109 = scmp.ne.s32.totalorder %s101, %s104
    %p110 = scmp.eq.s32.totalorder %s9, 0
    %p111 = por %p109, %p110
    %p112 = scmp.ne.s32.totalorder %s101, %s104
    %p113 = scmp.eq.s32.totalorder %s14, 1
    %p114 = por %p112, %p113
    %p115 = scmp.ne.s32.totalorder %s104, %s105
    %p116 = scmp.eq.s32.totalorder %s14, 0
    %p117 = por %p115, %p116
    %p118 = scmp.ne.s32.totalorder %s104, %s105
    %p119 = scmp.eq.s32.totalorder %s15, 1
    %p120 = por %p118, %p119
    %p122 = scmp.ne.s32.totalorder %s105, %s121
    %p123 = scmp.eq.s32.totalorder %s15, 0
    %p124 = por %p122, %p123
    %p125 = scmp.le.s32.totalorder 1, %s9
    %p126 = scmp.lt.s32.totalorder %s9, 3
    %p127 = pnand %p125, %p126
    %p128 = pneg %p127
    // Predicated region
    $region9: #{bottleneck_forward.4} parent=5 // pred_check
      _
    $region10: #{bottleneck_forward.4} parent=5 // pred_check_branch
      %130 = sbr.rel (%p127) target = $region12
    $region11: #{bottleneck_forward.4} parent=5 // pred_region
      %s131 = ssub.s32 %s9, 1
      // Predicated region
      $region13: #{bottleneck_forward.4} parent=11 // pred_check
        %p132 = pneg %p68
      $region14: #{bottleneck_forward.4} parent=11 // pred_check_branch
        %134 = sbr.rel (%p132) target = $region16
      $region15: #{bottleneck_forward.4} parent=11 // pred_region
        _
      $region16: #{bottleneck_forward.4} parent=11 // pred_fallthru
        _
      // Predicated region
      $region17: #{bottleneck_forward.4} parent=11 // pred_check
        %p135 = pneg %p89
      $region18: #{bottleneck_forward.4} parent=11 // pred_check_branch
        %137 = sbr.rel (%p135) target = $region20
      $region19: #{bottleneck_forward.4} parent=11 // pred_region
        _
      $region20: #{bottleneck_forward.4} parent=11 // pred_fallthru
        _
    $region12: #{bottleneck_forward.4} parent=5 // pred_fallthru
      _
    %p138 = scmp.lt.s32.totalorder %s9, 2
    // Predicated region
    $region21: #{bottleneck_forward.4} parent=5 // pred_check
      %p139 = pneg %p138
    $region22: #{bottleneck_forward.4} parent=5 // pred_check_branch
      %141 = sbr.rel (%p139) target = $region24
    $region23: #{bottleneck_forward.4} parent=5 // pred_region
      // Predicated region
      $region25: #{bottleneck_forward.4} parent=23 // pred_check
        %p142 = pneg %p41
      $region26: #{bottleneck_forward.4} parent=23 // pred_check_branch
        %144 = sbr.rel (%p142) target = $region28
      $region27: #{bottleneck_forward.4} parent=23 // pred_region
        %p145 = scmp.lt.s32.totalorder %s16, 1
        %s146 = scalar_select %p145, %s16, 1
        %s147 = smul.addr %s146, 32
        %s148 = smul.addr %s147, 4
        %s149 = scalar_lea.vmem %s0, %s148
      $region28: #{bottleneck_forward.4} parent=23 // pred_fallthru
        _
    $region24: #{bottleneck_forward.4} parent=5 // pred_fallthru
      _
    %p150 = scmp.le.s32.totalorder 1, %s9
    %p151 = scmp.lt.s32.totalorder %s9, 3
    %p152 = pnand %p150, %p151
    %p153 = pneg %p152
    // Predicated region
    $region29: #{bottleneck_forward.4} parent=5 // pred_check
      _
    $region30: #{bottleneck_forward.4} parent=5 // pred_check_branch
      %155 = sbr.rel (%p152) target = $region32
    $region31: #{bottleneck_forward.4} parent=5 // pred_region
      %s156 = ssub.s32 %s9, 1
      %p157 = scmp.lt.s32.totalorder %s18, 1
      %s158 = scalar_select %p157, %s18, 1
      %s159 = smul.addr %s158, 32
      %s160 = smul.addr %s159, 4
      %s161 = scalar_lea.vmem %s0, %s160
      %p162 = pneg %p47
      %p163 = pneg %p44
      %p164 = pneg %p68
      %p165 = pneg %p65
      %p166 = pneg %p89
      %p167 = pneg %p86
      %p168 = pneg %p117
      %p169 = pneg %p114
      %s170 = smul.u32 16, %s19
      %p171 = scmp.lt.s32.totalorder %s18, 1
      %s172 = scalar_select %p171, %s18, 1
      %p173 = scmp.lt.s32.totalorder %s170, 15
      %s174 = scalar_select %p173, %s170, 15
      %s175 = smul.addr %s174, 2
      %s176 = smul.addr %s172, 32
      %s177 = sadd.s32 %s175, %s176
      %s178 = smul.addr %s177, 4
      %s179 = scalar_lea.vmem %s3, %s178
      %p180 = scmp.lt.s32.totalorder %s18, 1
      %s181 = scalar_select %p180, %s18, 1
      %s182 = smul.addr %s181, 32
      %s183 = smul.addr %s182, 4
      %s184 = scalar_lea.vmem %s0, %s183
      %s185 = smul.u32 16, %s19
      %p186 = scmp.lt.s32.totalorder %s18, 1
      %s187 = scalar_select %p186, %s18, 1
      %p188 = scmp.lt.s32.totalorder %s185, 15
      %s189 = scalar_select %p188, %s185, 15
      %s190 = smul.addr %s189, 2
      %s191 = smul.addr %s187, 32
      %s192 = sadd.s32 %s190, %s191
      %s193 = smul.addr %s192, 4
      %s194 = scalar_lea.vmem %s3, %s193
      %s195 = smul.u32 16, %s19
      %p197 = scmp.eq.s32.totalorder %s19, 0
      // Predicated region
      $region33: #{bottleneck_forward.4} parent=31 // pred_check
        %p198 = pneg %p197
      $region34: #{bottleneck_forward.4} parent=31 // pred_check_branch
        %200 = sbr.rel (%p198) target = $region36
      $region35: #{bottleneck_forward.4} parent=31 // pred_region
        %vm201 = vcmask 27648
        %202 = vst.msk [vmem:[#allocation2] sm:$0xf] %vm201, 0
        %203 = vst.msk [vmem:[#allocation2 + $0x4] sm:$0xf] %vm201, 0
        %vm204 = vcmask 24576
        %205 = vst.msk [vmem:[#allocation2 + $0x8] sm:$0x1] %vm204, 0
        %206 = vst.msk [vmem:[#allocation2 + $0xc] sm:$0xf] %vm201, 0
        %207 = vst.msk [vmem:[#allocation2 + $0x10] sm:$0xf] %vm201, 0
        %208 = vst.msk [vmem:[#allocation2 + $0x14] sm:$0x1] %vm204, 0
        %209 = vst.msk [vmem:[#allocation2 + $0x18] sm:$0xf] %vm201, 0
        %210 = vst.msk [vmem:[#allocation2 + $0x1c] sm:$0xf] %vm201, 0
        %211 = vst.msk [vmem:[#allocation2 + $0x20] sm:$0x1] %vm204, 0
        %212 = vst.msk [vmem:[#allocation2 + $0x24] sm:$0xf] %vm201, 0
        %213 = vst.msk [vmem:[#allocation2 + $0x28] sm:$0xf] %vm201, 0
        %214 = vst.msk [vmem:[#allocation2 + $0x2c] sm:$0x1] %vm204, 0
        %215 = vst.msk [vmem:[#allocation2 + $0x30] sm:$0xf] %vm201, 0
        %216 = vst.msk [vmem:[#allocation2 + $0x34] sm:$0xf] %vm201, 0
        %217 = vst.msk [vmem:[#allocation2 + $0x38] sm:$0x1] %vm204, 0
        %218 = vst.msk [vmem:[#allocation2 + $0x3c] sm:$0xf] %vm201, 0
        %219 = vst.msk [vmem:[#allocation2 + $0x40] sm:$0xf] %vm201, 0
        %220 = vst.msk [vmem:[#allocation2 + $0x44] sm:$0x1] %vm204, 0
        %221 = vst.msk [vmem:[#allocation2 + $0x48] sm:$0xf] %vm201, 0
        %222 = vst.msk [vmem:[#allocation2 + $0x4c] sm:$0xf] %vm201, 0
        %223 = vst.msk [vmem:[#allocation2 + $0x50] sm:$0x1] %vm204, 0
        %224 = vst.msk [vmem:[#allocation2 + $0x54] sm:$0xf] %vm201, 0
        %225 = vst.msk [vmem:[#allocation2 + $0x58] sm:$0xf] %vm201, 0
        %226 = vst.msk [vmem:[#allocation2 + $0x5c] sm:$0x1] %vm204, 0
        %227 = vst.msk [vmem:[#allocation2 + $0x60] sm:$0xf] %vm201, 0
        %228 = vst.msk [vmem:[#allocation2 + $0x64] sm:$0xf] %vm201, 0
        %229 = vst.msk [vmem:[#allocation2 + $0x68] sm:$0x1] %vm204, 0
        %230 = vst.msk [vmem:[#allocation2 + $0x6c] sm:$0xf] %vm201, 0
        %231 = vst.msk [vmem:[#allocation2 + $0x70] sm:$0xf] %vm201, 0
        %232 = vst.msk [vmem:[#allocation2 + $0x74] sm:$0x1] %vm204, 0
        %233 = vst.msk [vmem:[#allocation2 + $0x78] sm:$0xf] %vm201, 0
        %234 = vst.msk [vmem:[#allocation2 + $0x7c] sm:$0xf] %vm201, 0
        %235 = vst.msk [vmem:[#allocation2 + $0x80] sm:$0x1] %vm204, 0
        %236 = vst.msk [vmem:[#allocation2 + $0x84] sm:$0xf] %vm201, 0
        %237 = vst.msk [vmem:[#allocation2 + $0x88] sm:$0xf] %vm201, 0
        %238 = vst.msk [vmem:[#allocation2 + $0x8c] sm:$0x1] %vm204, 0
        %239 = vst.msk [vmem:[#allocation2 + $0x90] sm:$0xf] %vm201, 0
        %240 = vst.msk [vmem:[#allocation2 + $0x94] sm:$0xf] %vm201, 0
        %241 = vst.msk [vmem:[#allocation2 + $0x98] sm:$0x1] %vm204, 0
        %242 = vst.msk [vmem:[#allocation2 + $0x9c] sm:$0xf] %vm201, 0
        %243 = vst.msk [vmem:[#allocation2 + $0xa0] sm:$0xf] %vm201, 0
        %244 = vst.msk [vmem:[#allocation2 + $0xa4] sm:$0x1] %vm204, 0
        %245 = vst.msk [vmem:[#allocation2 + $0xa8] sm:$0xf] %vm201, 0
        %246 = vst.msk [vmem:[#allocation2 + $0xac] sm:$0xf] %vm201, 0
        %247 = vst.msk [vmem:[#allocation2 + $0xb0] sm:$0x1] %vm204, 0
        %248 = vst.msk [vmem:[#allocation2 + $0xb4] sm:$0xf] %vm201, 0
        %249 = vst.msk [vmem:[#allocation2 + $0xb8] sm:$0xf] %vm201, 0
        %250 = vst.msk [vmem:[#allocation2 + $0xbc] sm:$0x1] %vm204, 0
        %251 = vst.msk [vmem:[#allocation2 + $0xc0] sm:$0xf] %vm201, 0
        %252 = vst.msk [vmem:[#allocation2 + $0xc4] sm:$0xf] %vm201, 0
        %253 = vst.msk [vmem:[#allocation2 + $0xc8] sm:$0x1] %vm204, 0
        %254 = vst.msk [vmem:[#allocation2 + $0xcc] sm:$0xf] %vm201, 0
        %255 = vst.msk [vmem:[#allocation2 + $0xd0] sm:$0xf] %vm201, 0
        %256 = vst.msk [vmem:[#allocation2 + $0xd4] sm:$0x1] %vm204, 0
        %v257 = vld [vmem:[%s184] sm:$0xf]
        %v258 = vld [vmem:[%s184 + $0x4] sm:$0xf]
        %v259 = vld [vmem:[%s184 + $0x8] sm:$0xf]
        %v260 = vld [vmem:[%s184 + $0xc] sm:$0xf]
        %v261 = vld [vmem:[%s184 + $0x10] sm:$0xf]
        %v262 = vld [vmem:[%s184 + $0x14] sm:$0xf]
        %v263 = vld [vmem:[%s184 + $0x18] sm:$0xf]
        %v264 = vld [vmem:[%s184 + $0x1c] sm:$0xf]
        %v265 = vld [vmem:[%s184 + $0x20] sm:$0xf]
        %v266 = vld [vmem:[%s184 + $0x24] sm:$0xf]
        %v267 = vld [vmem:[%s184 + $0x28] sm:$0xf]
        %v268 = vld [vmem:[%s184 + $0x2c] sm:$0xf]
        %v269 = vld [vmem:[%s184 + $0x30] sm:$0xf]
        %v270 = vld [vmem:[%s184 + $0x34] sm:$0xf]
        %v271 = vld [vmem:[%s184 + $0x38] sm:$0xf]
        %v272 = vld [vmem:[%s184 + $0x3c] sm:$0xf]
        %v273 = vld [vmem:[%s184 + $0x40] sm:$0xf]
        %v274 = vld [vmem:[%s184 + $0x44] sm:$0xf]
        %v275 = vld [vmem:[%s184 + $0x48] sm:$0xf]
        %v276 = vld [vmem:[%s184 + $0x4c] sm:$0xf]
        %v277 = vld [vmem:[%s184 + $0x50] sm:$0xf]
        %v278 = vld [vmem:[%s184 + $0x54] sm:$0xf]
        %v279 = vld [vmem:[%s184 + $0x58] sm:$0xf]
        %v280 = vld [vmem:[%s184 + $0x5c] sm:$0xf]
        %v281 = vld [vmem:[%s184 + $0x60] sm:$0xf]
        %v282 = vld [vmem:[%s184 + $0x64] sm:$0xf]
        %v283 = vld [vmem:[%s184 + $0x68] sm:$0xf]
        %v284 = vld [vmem:[%s184 + $0x6c] sm:$0xf]
        %v285 = vld [vmem:[%s184 + $0x70] sm:$0xf]
        %v286 = vld [vmem:[%s184 + $0x74] sm:$0xf]
        %v287 = vld [vmem:[%s184 + $0x78] sm:$0xf]
        %v288 = vld [vmem:[%s184 + $0x7c] sm:$0xf]
        %vm289 = vsmask.f32 256
        %vm290 = vsmask.f32 4368
        %vm291 = vmor %vm289, %vm290
        %v293 = vshrl.u32 %v257, 16
        %v295 = vrot.slane %v293, 7
        %v296 = vshll.u32 %v257, 16
        %v298 = vor.u32 %v295, %v296
        %v299 = vrot.slane %v295, 4
        %v301 = vshrl.u32 %v258, 16
        %v303 = vrot.slane %v301, 7
        %v304 = vshll.u32 %v258, 16
        %v306 = vor.u32 %v303, %v304
        %v307 = vsel %vm291, %v299, %v306
        %v308 = vrot.slane %v303, 4
        %v310 = vshrl.u32 %v259, 16
        %v312 = vrot.slane %v310, 7
        %v313 = vshll.u32 %v259, 16
        %v315 = vor.u32 %v312, %v313
        %v316 = vrot.slane %v312, 4
        %v318 = vshrl.u32 %v260, 16
        %v320 = vrot.slane %v318, 7
        %v321 = vshll.u32 %v260, 16
        %v323 = vor.u32 %v320, %v321
        %v324 = vsel %vm291, %v316, %v323
        %v325 = vrot.slane %v320, 4
        %v327 = vshrl.u32 %v261, 16
        %v329 = vrot.slane %v327, 7
        %v330 = vshll.u32 %v261, 16
        %v332 = vor.u32 %v329, %v330
        %v333 = vrot.slane %v329, 4
        %v335 = vshrl.u32 %v262, 16
        %v337 = vrot.slane %v335, 7
        %v338 = vshll.u32 %v262, 16
        %v340 = vor.u32 %v337, %v338
        %v341 = vsel %vm291, %v333, %v340
        %v342 = vrot.slane %v337, 4
        %v344 = vshrl.u32 %v263, 16
        %v346 = vrot.slane %v344, 7
        %v347 = vshll.u32 %v263, 16
        %v349 = vor.u32 %v346, %v347
        %v350 = vrot.slane %v346, 4
        %v352 = vshrl.u32 %v264, 16
        %v354 = vrot.slane %v352, 7
        %v355 = vshll.u32 %v264, 16
        %v357 = vor.u32 %v354, %v355
        %v358 = vsel %vm291, %v350, %v357
        %v359 = vrot.slane %v354, 4
        %v361 = vshrl.u32 %v265, 16
        %v363 = vrot.slane %v361, 7
        %v364 = vshll.u32 %v265, 16
        %v366 = vor.u32 %v363, %v364
        %v367 = vrot.slane %v363, 4
        %v369 = vshrl.u32 %v266, 16
        %v371 = vrot.slane %v369, 7
        %v372 = vshll.u32 %v266, 16
        %v374 = vor.u32 %v371, %v372
        %v375 = vsel %vm291, %v367, %v374
        %v376 = vrot.slane %v371, 4
        %v378 = vshrl.u32 %v267, 16
        %v380 = vrot.slane %v378, 7
        %v381 = vshll.u32 %v267, 16
        %v383 = vor.u32 %v380, %v381
        %v384 = vrot.slane %v380, 4
        %v386 = vshrl.u32 %v268, 16
        %v388 = vrot.slane %v386, 7
        %v389 = vshll.u32 %v268, 16
        %v391 = vor.u32 %v388, %v389
        %v392 = vsel %vm291, %v384, %v391
        %v393 = vrot.slane %v388, 4
        %v395 = vshrl.u32 %v269, 16
        %v397 = vrot.slane %v395, 7
        %v398 = vshll.u32 %v269, 16
        %v400 = vor.u32 %v397, %v398
        %v401 = vrot.slane %v397, 4
        %v403 = vshrl.u32 %v270, 16
        %v405 = vrot.slane %v403, 7
        %v406 = vshll.u32 %v270, 16
        %v408 = vor.u32 %v405, %v406
        %v409 = vsel %vm291, %v401, %v408
        %v410 = vrot.slane %v405, 4
        %v412 = vshrl.u32 %v271, 16
        %v414 = vrot.slane %v412, 7
        %v415 = vshll.u32 %v271, 16
        %v417 = vor.u32 %v414, %v415
        %v418 = vrot.slane %v414, 4
        %v420 = vshrl.u32 %v272, 16
        %v422 = vrot.slane %v420, 7
        %v423 = vshll.u32 %v272, 16
        %v425 = vor.u32 %v422, %v423
        %v426 = vsel %vm291, %v418, %v425
        %v427 = vrot.slane %v422, 4
        %v429 = vshrl.u32 %v273, 16
        %v431 = vrot.slane %v429, 7
        %v432 = vshll.u32 %v273, 16
        %v434 = vor.u32 %v431, %v432
        %v435 = vrot.slane %v431, 4
        %v437 = vshrl.u32 %v274, 16
        %v439 = vrot.slane %v437, 7
        %v440 = vshll.u32 %v274, 16
        %v442 = vor.u32 %v439, %v440
        %v443 = vsel %vm291, %v435, %v442
        %v444 = vrot.slane %v439, 4
        %v446 = vshrl.u32 %v275, 16
        %v448 = vrot.slane %v446, 7
        %v449 = vshll.u32 %v275, 16
        %v451 = vor.u32 %v448, %v449
        %v452 = vrot.slane %v448, 4
        %v454 = vshrl.u32 %v276, 16
        %v456 = vrot.slane %v454, 7
        %v457 = vshll.u32 %v276, 16
        %v459 = vor.u32 %v456, %v457
        %v460 = vsel %vm291, %v452, %v459
        %v461 = vrot.slane %v456, 4
        %v463 = vshrl.u32 %v277, 16
        %v465 = vrot.slane %v463, 7
        %v466 = vshll.u32 %v277, 16
        %v468 = vor.u32 %v465, %v466
        %v469 = vrot.slane %v465, 4
        %v471 = vshrl.u32 %v278, 16
        %v473 = vrot.slane %v471, 7
        %v474 = vshll.u32 %v278, 16
        %v476 = vor.u32 %v473, %v474
        %v477 = vsel %vm291, %v469, %v476
        %v478 = vrot.slane %v473, 4
        %v480 = vshrl.u32 %v279, 16
        %v482 = vrot.slane %v480, 7
        %v483 = vshll.u32 %v279, 16
        %v485 = vor.u32 %v482, %v483
        %v486 = vrot.slane %v482, 4
        %v488 = vshrl.u32 %v280, 16
        %v490 = vrot.slane %v488, 7
        %v491 = vshll.u32 %v280, 16
        %v493 = vor.u32 %v490, %v491
        %v494 = vsel %vm291, %v486, %v493
        %v495 = vrot.slane %v490, 4
        %v497 = vshrl.u32 %v281, 16
        %v499 = vrot.slane %v497, 7
        %v500 = vshll.u32 %v281, 16
        %v502 = vor.u32 %v499, %v500
        %v503 = vrot.slane %v499, 4
        %v505 = vshrl.u32 %v282, 16
        %v507 = vrot.slane %v505, 7
        %v508 = vshll.u32 %v282, 16
        %v510 = vor.u32 %v507, %v508
        %v511 = vsel %vm291, %v503, %v510
        %v512 = vrot.slane %v507, 4
        %v514 = vshrl.u32 %v283, 16
        %v516 = vrot.slane %v514, 7
        %v517 = vshll.u32 %v283, 16
        %v519 = vor.u32 %v516, %v517
        %v520 = vrot.slane %v516, 4
        %v522 = vshrl.u32 %v284, 16
        %v524 = vrot.slane %v522, 7
        %v525 = vshll.u32 %v284, 16
        %v527 = vor.u32 %v524, %v525
        %v528 = vsel %vm291, %v520, %v527
        %v529 = vrot.slane %v524, 4
        %v531 = vshrl.u32 %v285, 16
        %v533 = vrot.slane %v531, 7
        %v534 = vshll.u32 %v285, 16
        %v536 = vor.u32 %v533, %v534
        %v537 = vrot.slane %v533, 4
        %v539 = vshrl.u32 %v286, 16
        %v541 = vrot.slane %v539, 7
        %v542 = vshll.u32 %v286, 16
        %v544 = vor.u32 %v541, %v542
        %v545 = vsel %vm291, %v537, %v544
        %v546 = vrot.slane %v541, 4
        %v548 = vshrl.u32 %v287, 16
        %v550 = vrot.slane %v548, 7
        %v551 = vshll.u32 %v287, 16
        %v553 = vor.u32 %v550, %v551
        %v554 = vrot.slane %v550, 4
        %v556 = vshrl.u32 %v288, 16
        %v558 = vrot.slane %v556, 7
        %v559 = vshll.u32 %v288, 16
        %v561 = vor.u32 %v558, %v559
        %v562 = vsel %vm291, %v554, %v561
        %v563 = vrot.slane %v558, 4
        %s612 = scalar_lea.vmem [#allocation2], 12
        %vm613 = vcmask 27648
        %vm614 = vsmask.f32 7938
        %vm615 = vmand %vm613, %vm614
        %v616 = vld [vmem:[%s612] sm:$0xf]
        %v617 = vsel %vm615, %v298, %v616
        %618 = vst [vmem:[%s612] sm:$0xf] %v617
        %619 = vst.msk [vmem:[%s612 + $0x4] sm:$0xf] %vm201, %v307
        %vm620 = vcmask 24576
        %vm621 = vmand %vm620, %vm289
        %v622 = vld [vmem:[%s612 + $0x8] sm:$0x1]
        %v623 = vsel %vm621, %v308, %v622
        %624 = vst [vmem:[%s612 + $0x8] sm:$0x1] %v623
        %v625 = vld [vmem:[%s612 + $0xc] sm:$0xf]
        %v626 = vsel %vm615, %v315, %v625
        %627 = vst [vmem:[%s612 + $0xc] sm:$0xf] %v626
        %628 = vst.msk [vmem:[%s612 + $0x10] sm:$0xf] %vm201, %v324
        %v629 = vld [vmem:[%s612 + $0x14] sm:$0x1]
        %v630 = vsel %vm621, %v325, %v629
        %631 = vst [vmem:[%s612 + $0x14] sm:$0x1] %v630
        %v632 = vld [vmem:[%s612 + $0x18] sm:$0xf]
        %v633 = vsel %vm615, %v332, %v632
        %634 = vst [vmem:[%s612 + $0x18] sm:$0xf] %v633
        %635 = vst.msk [vmem:[%s612 + $0x1c] sm:$0xf] %vm201, %v341
        %v636 = vld [vmem:[%s612 + $0x20] sm:$0x1]
        %v637 = vsel %vm621, %v342, %v636
        %638 = vst [vmem:[%s612 + $0x20] sm:$0x1] %v637
        %v639 = vld [vmem:[%s612 + $0x24] sm:$0xf]
        %v640 = vsel %vm615, %v349, %v639
        %641 = vst [vmem:[%s612 + $0x24] sm:$0xf] %v640
        %642 = vst.msk [vmem:[%s612 + $0x28] sm:$0xf] %vm201, %v358
        %v643 = vld [vmem:[%s612 + $0x2c] sm:$0x1]
        %v644 = vsel %vm621, %v359, %v643
        %645 = vst [vmem:[%s612 + $0x2c] sm:$0x1] %v644
        %v646 = vld [vmem:[%s612 + $0x30] sm:$0xf]
        %v647 = vsel %vm615, %v366, %v646
        %648 = vst [vmem:[%s612 + $0x30] sm:$0xf] %v647
        %649 = vst.msk [vmem:[%s612 + $0x34] sm:$0xf] %vm201, %v375
        %v650 = vld [vmem:[%s612 + $0x38] sm:$0x1]
        %v651 = vsel %vm621, %v376, %v650
        %652 = vst [vmem:[%s612 + $0x38] sm:$0x1] %v651
        %v653 = vld [vmem:[%s612 + $0x3c] sm:$0xf]
        %v654 = vsel %vm615, %v383, %v653
        %655 = vst [vmem:[%s612 + $0x3c] sm:$0xf] %v654
        %656 = vst.msk [vmem:[%s612 + $0x40] sm:$0xf] %vm201, %v392
        %v657 = vld [vmem:[%s612 + $0x44] sm:$0x1]
        %v658 = vsel %vm621, %v393, %v657
        %659 = vst [vmem:[%s612 + $0x44] sm:$0x1] %v658
        %v660 = vld [vmem:[%s612 + $0x48] sm:$0xf]
        %v661 = vsel %vm615, %v400, %v660
        %662 = vst [vmem:[%s612 + $0x48] sm:$0xf] %v661
        %663 = vst.msk [vmem:[%s612 + $0x4c] sm:$0xf] %vm201, %v409
        %v664 = vld [vmem:[%s612 + $0x50] sm:$0x1]
        %v665 = vsel %vm621, %v410, %v664
        %666 = vst [vmem:[%s612 + $0x50] sm:$0x1] %v665
        %v667 = vld [vmem:[%s612 + $0x54] sm:$0xf]
        %v668 = vsel %vm615, %v417, %v667
        %669 = vst [vmem:[%s612 + $0x54] sm:$0xf] %v668
        %670 = vst.msk [vmem:[%s612 + $0x58] sm:$0xf] %vm201, %v426
        %v671 = vld [vmem:[%s612 + $0x5c] sm:$0x1]
        %v672 = vsel %vm621, %v427, %v671
        %673 = vst [vmem:[%s612 + $0x5c] sm:$0x1] %v672
        %v674 = vld [vmem:[%s612 + $0x60] sm:$0xf]
        %v675 = vsel %vm615, %v434, %v674
        %676 = vst [vmem:[%s612 + $0x60] sm:$0xf] %v675
        %677 = vst.msk [vmem:[%s612 + $0x64] sm:$0xf] %vm201, %v443
        %v678 = vld [vmem:[%s612 + $0x68] sm:$0x1]
        %v679 = vsel %vm621, %v444, %v678
        %680 = vst [vmem:[%s612 + $0x68] sm:$0x1] %v679
        %v681 = vld [vmem:[%s612 + $0x6c] sm:$0xf]
        %v682 = vsel %vm615, %v451, %v681
        %683 = vst [vmem:[%s612 + $0x6c] sm:$0xf] %v682
        %684 = vst.msk [vmem:[%s612 + $0x70] sm:$0xf] %vm201, %v460
        %v685 = vld [vmem:[%s612 + $0x74] sm:$0x1]
        %v686 = vsel %vm621, %v461, %v685
        %687 = vst [vmem:[%s612 + $0x74] sm:$0x1] %v686
        %v688 = vld [vmem:[%s612 + $0x78] sm:$0xf]
        %v689 = vsel %vm615, %v468, %v688
        %690 = vst [vmem:[%s612 + $0x78] sm:$0xf] %v689
        %691 = vst.msk [vmem:[%s612 + $0x7c] sm:$0xf] %vm201, %v477
        %v692 = vld [vmem:[%s612 + $0x80] sm:$0x1]
        %v693 = vsel %vm621, %v478, %v692
        %694 = vst [vmem:[%s612 + $0x80] sm:$0x1] %v693
        %v695 = vld [vmem:[%s612 + $0x84] sm:$0xf]
        %v696 = vsel %vm615, %v485, %v695
        %697 = vst [vmem:[%s612 + $0x84] sm:$0xf] %v696
        %698 = vst.msk [vmem:[%s612 + $0x88] sm:$0xf] %vm201, %v494
        %v699 = vld [vmem:[%s612 + $0x8c] sm:$0x1]
        %v700 = vsel %vm621, %v495, %v699
        %701 = vst [vmem:[%s612 + $0x8c] sm:$0x1] %v700
        %v702 = vld [vmem:[%s612 + $0x90] sm:$0xf]
        %v703 = vsel %vm615, %v502, %v702
        %704 = vst [vmem:[%s612 + $0x90] sm:$0xf] %v703
        %705 = vst.msk [vmem:[%s612 + $0x94] sm:$0xf] %vm201, %v511
        %v706 = vld [vmem:[%s612 + $0x98] sm:$0x1]
        %v707 = vsel %vm621, %v512, %v706
        %708 = vst [vmem:[%s612 + $0x98] sm:$0x1] %v707
        %v709 = vld [vmem:[%s612 + $0x9c] sm:$0xf]
        %v710 = vsel %vm615, %v519, %v709
        %711 = vst [vmem:[%s612 + $0x9c] sm:$0xf] %v710
        %712 = vst.msk [vmem:[%s612 + $0xa0] sm:$0xf] %vm201, %v528
        %v713 = vld [vmem:[%s612 + $0xa4] sm:$0x1]
        %v714 = vsel %vm621, %v529, %v713
        %715 = vst [vmem:[%s612 + $0xa4] sm:$0x1] %v714
        %v716 = vld [vmem:[%s612 + $0xa8] sm:$0xf]
        %v717 = vsel %vm615, %v536, %v716
        %718 = vst [vmem:[%s612 + $0xa8] sm:$0xf] %v717
        %719 = vst.msk [vmem:[%s612 + $0xac] sm:$0xf] %vm201, %v545
        %v720 = vld [vmem:[%s612 + $0xb0] sm:$0x1]
        %v721 = vsel %vm621, %v546, %v720
        %722 = vst [vmem:[%s612 + $0xb0] sm:$0x1] %v721
        %v723 = vld [vmem:[%s612 + $0xb4] sm:$0xf]
        %v724 = vsel %vm615, %v553, %v723
        %725 = vst [vmem:[%s612 + $0xb4] sm:$0xf] %v724
        %726 = vst.msk [vmem:[%s612 + $0xb8] sm:$0xf] %vm201, %v562
        %v727 = vld [vmem:[%s612 + $0xbc] sm:$0x1]
        %v728 = vsel %vm621, %v563, %v727
        %729 = vst [vmem:[%s612 + $0xbc] sm:$0x1] %v728
      $region36: #{bottleneck_forward.4} parent=31 // pred_fallthru
        _
      %s730 = smul.u32 %s19, 16
      %s731 = smul.u32 %s730, 3
      %s732 = smul.addr %s731, 4
      %s733 = scalar_lea.vmem [#allocation2], %s732
      %v734 = vld [vmem:[%s733] sm:$0xf]
      %v735 = vld [vmem:[%s733 + $0x4] sm:$0xf]
      %v736 = vld [vmem:[%s733 + $0x8] sm:$0x1]
      %v737 = vld [vmem:[%s733 + $0xc] sm:$0xf]
      %v738 = vld [vmem:[%s733 + $0x10] sm:$0xf]
      %v739 = vld [vmem:[%s733 + $0x14] sm:$0x1]
      %v740 = vld [vmem:[%s733 + $0x18] sm:$0xf]
      %v741 = vld [vmem:[%s733 + $0x1c] sm:$0xf]
      %v742 = vld [vmem:[%s733 + $0x20] sm:$0x1]
      %v743 = vld [vmem:[%s733 + $0x24] sm:$0xf]
      %v744 = vld [vmem:[%s733 + $0x28] sm:$0xf]
      %v745 = vld [vmem:[%s733 + $0x2c] sm:$0x1]
      %v746 = vld [vmem:[%s733 + $0x30] sm:$0xf]
      %v747 = vld [vmem:[%s733 + $0x34] sm:$0xf]
      %v748 = vld [vmem:[%s733 + $0x38] sm:$0x1]
      %v749 = vld [vmem:[%s733 + $0x3c] sm:$0xf]
      %v750 = vld [vmem:[%s733 + $0x40] sm:$0xf]
      %v751 = vld [vmem:[%s733 + $0x44] sm:$0x1]
      %v752 = vld [vmem:[%s733 + $0x48] sm:$0xf]
      %v753 = vld [vmem:[%s733 + $0x4c] sm:$0xf]
      %v754 = vld [vmem:[%s733 + $0x50] sm:$0x1]
      %v755 = vld [vmem:[%s733 + $0x54] sm:$0xf]
      %v756 = vld [vmem:[%s733 + $0x58] sm:$0xf]
      %v757 = vld [vmem:[%s733 + $0x5c] sm:$0x1]
      %v758 = vld [vmem:[%s733 + $0x60] sm:$0xf]
      %v759 = vld [vmem:[%s733 + $0x64] sm:$0xf]
      %v760 = vld [vmem:[%s733 + $0x68] sm:$0x1]
      %v761 = vld [vmem:[%s733 + $0x6c] sm:$0xf]
      %v762 = vld [vmem:[%s733 + $0x70] sm:$0xf]
      %v763 = vld [vmem:[%s733 + $0x74] sm:$0x1]
      %v764 = vld [vmem:[%s733 + $0x78] sm:$0xf]
      %v765 = vld [vmem:[%s733 + $0x7c] sm:$0xf]
      %v766 = vld [vmem:[%s733 + $0x80] sm:$0x1]
      %v767 = vld [vmem:[%s733 + $0x84] sm:$0xf]
      %v768 = vld [vmem:[%s733 + $0x88] sm:$0xf]
      %v769 = vld [vmem:[%s733 + $0x8c] sm:$0x1]
      %v770 = vld [vmem:[%s733 + $0x90] sm:$0xf]
      %v771 = vld [vmem:[%s733 + $0x94] sm:$0xf]
      %v772 = vld [vmem:[%s733 + $0x98] sm:$0x1]
      %v773 = vld [vmem:[%s733 + $0x9c] sm:$0xf]
      %v774 = vld [vmem:[%s733 + $0xa0] sm:$0xf]
      %v775 = vld [vmem:[%s733 + $0xa4] sm:$0x1]
      %v776 = vld [vmem:[%s733 + $0xa8] sm:$0xf]
      %v777 = vld [vmem:[%s733 + $0xac] sm:$0xf]
      %v778 = vld [vmem:[%s733 + $0xb0] sm:$0x1]
      %v779 = vld [vmem:[%s733 + $0xb4] sm:$0xf]
      %v780 = vld [vmem:[%s733 + $0xb8] sm:$0xf]
      %v781 = vld [vmem:[%s733 + $0xbc] sm:$0x1]
      %vm782 = vsmask.f32 3328
      %vm783 = vsmask.f32 7440
      %vm784 = vmor %vm782, %vm783
      %v786 = vshrl.u32 %v734, 16
      %v788 = vrot.slane %v786, 4
      %v789 = vshll.u32 %v734, 16
      %v791 = vrot.slane %v789, 5
      %v792 = vor.u32 %v788, %v791
      %v793 = vrot.slane %v792, 4
      %v795 = vshll.u32 %v735, 16
      %v797 = vrot.slane %v795, 5
      %v798 = vsel %vm784, %v793, %v797
      %v799 = vshrl.u32 %v735, 16
      %v801 = vrot.slane %v799, 4
      %v802 = vor.u32 %v801, %v797
      %v803 = vrot.slane %v802, 4
      %v805 = vshll.u32 %v736, 16
      %v807 = vrot.slane %v805, 5
      %v808 = vsel %vm784, %v803, %v807
      %v810 = vshrl.u32 %v737, 16
      %v812 = vrot.slane %v810, 4
      %v813 = vshll.u32 %v737, 16
      %v815 = vrot.slane %v813, 5
      %v816 = vor.u32 %v812, %v815
      %v817 = vrot.slane %v816, 4
      %v819 = vshll.u32 %v738, 16
      %v821 = vrot.slane %v819, 5
      %v822 = vsel %vm784, %v817, %v821
      %v823 = vshrl.u32 %v738, 16
      %v825 = vrot.slane %v823, 4
      %v826 = vor.u32 %v825, %v821
      %v827 = vrot.slane %v826, 4
      %v829 = vshll.u32 %v739, 16
      %v831 = vrot.slane %v829, 5
      %v832 = vsel %vm784, %v827, %v831
      %v834 = vshrl.u32 %v740, 16
      %v836 = vrot.slane %v834, 4
      %v837 = vshll.u32 %v740, 16
      %v839 = vrot.slane %v837, 5
      %v840 = vor.u32 %v836, %v839
      %v841 = vrot.slane %v840, 4
      %v843 = vshll.u32 %v741, 16
      %v845 = vrot.slane %v843, 5
      %v846 = vsel %vm784, %v841, %v845
      %v847 = vshrl.u32 %v741, 16
      %v849 = vrot.slane %v847, 4
      %v850 = vor.u32 %v849, %v845
      %v851 = vrot.slane %v850, 4
      %v853 = vshll.u32 %v742, 16
      %v855 = vrot.slane %v853, 5
      %v856 = vsel %vm784, %v851, %v855
      %v858 = vshrl.u32 %v743, 16
      %v860 = vrot.slane %v858, 4
      %v861 = vshll.u32 %v743, 16
      %v863 = vrot.slane %v861, 5
      %v864 = vor.u32 %v860, %v863
      %v865 = vrot.slane %v864, 4
      %v867 = vshll.u32 %v744, 16
      %v869 = vrot.slane %v867, 5
      %v870 = vsel %vm784, %v865, %v869
      %v871 = vshrl.u32 %v744, 16
      %v873 = vrot.slane %v871, 4
      %v874 = vor.u32 %v873, %v869
      %v875 = vrot.slane %v874, 4
      %v877 = vshll.u32 %v745, 16
      %v879 = vrot.slane %v877, 5
      %v880 = vsel %vm784, %v875, %v879
      %v882 = vshrl.u32 %v746, 16
      %v884 = vrot.slane %v882, 4
      %v885 = vshll.u32 %v746, 16
      %v887 = vrot.slane %v885, 5
      %v888 = vor.u32 %v884, %v887
      %v889 = vrot.slane %v888, 4
      %v891 = vshll.u32 %v747, 16
      %v893 = vrot.slane %v891, 5
      %v894 = vsel %vm784, %v889, %v893
      %v895 = vshrl.u32 %v747, 16
      %v897 = vrot.slane %v895, 4
      %v898 = vor.u32 %v897, %v893
      %v899 = vrot.slane %v898, 4
      %v901 = vshll.u32 %v748, 16
      %v903 = vrot.slane %v901, 5
      %v904 = vsel %vm784, %v899, %v903
      %v906 = vshrl.u32 %v749, 16
      %v908 = vrot.slane %v906, 4
      %v909 = vshll.u32 %v749, 16
      %v911 = vrot.slane %v909, 5
      %v912 = vor.u32 %v908, %v911
      %v913 = vrot.slane %v912, 4
      %v915 = vshll.u32 %v750, 16
      %v917 = vrot.slane %v915, 5
      %v918 = vsel %vm784, %v913, %v917
      %v919 = vshrl.u32 %v750, 16
      %v921 = vrot.slane %v919, 4
      %v922 = vor.u32 %v921, %v917
      %v923 = vrot.slane %v922, 4
      %v925 = vshll.u32 %v751, 16
      %v927 = vrot.slane %v925, 5
      %v928 = vsel %vm784, %v923, %v927
      %v930 = vshrl.u32 %v752, 16
      %v932 = vrot.slane %v930, 4
      %v933 = vshll.u32 %v752, 16
      %v935 = vrot.slane %v933, 5
      %v936 = vor.u32 %v932, %v935
      %v937 = vrot.slane %v936, 4
      %v939 = vshll.u32 %v753, 16
      %v941 = vrot.slane %v939, 5
      %v942 = vsel %vm784, %v937, %v941
      %v943 = vshrl.u32 %v753, 16
      %v945 = vrot.slane %v943, 4
      %v946 = vor.u32 %v945, %v941
      %v947 = vrot.slane %v946, 4
      %v949 = vshll.u32 %v754, 16
      %v951 = vrot.slane %v949, 5
      %v952 = vsel %vm784, %v947, %v951
      %v954 = vshrl.u32 %v755, 16
      %v956 = vrot.slane %v954, 4
      %v957 = vshll.u32 %v755, 16
      %v959 = vrot.slane %v957, 5
      %v960 = vor.u32 %v956, %v959
      %v961 = vrot.slane %v960, 4
      %v963 = vshll.u32 %v756, 16
      %v965 = vrot.slane %v963, 5
      %v966 = vsel %vm784, %v961, %v965
      %v967 = vshrl.u32 %v756, 16
      %v969 = vrot.slane %v967, 4
      %v970 = vor.u32 %v969, %v965
      %v971 = vrot.slane %v970, 4
      %v973 = vshll.u32 %v757, 16
      %v975 = vrot.slane %v973, 5
      %v976 = vsel %vm784, %v971, %v975
      %v978 = vshrl.u32 %v758, 16
      %v980 = vrot.slane %v978, 4
      %v981 = vshll.u32 %v758, 16
      %v983 = vrot.slane %v981, 5
      %v984 = vor.u32 %v980, %v983
      %v985 = vrot.slane %v984, 4
      %v987 = vshll.u32 %v759, 16
      %v989 = vrot.slane %v987, 5
      %v990 = vsel %vm784, %v985, %v989
      %v991 = vshrl.u32 %v759, 16
      %v993 = vrot.slane %v991, 4
      %v994 = vor.u32 %v993, %v989
      %v995 = vrot.slane %v994, 4
      %v997 = vshll.u32 %v760, 16
      %v999 = vrot.slane %v997, 5
      %v1000 = vsel %vm784, %v995, %v999
      %v1002 = vshrl.u32 %v761, 16
      %v1004 = vrot.slane %v1002, 4
      %v1005 = vshll.u32 %v761, 16
      %v1007 = vrot.slane %v1005, 5
      %v1008 = vor.u32 %v1004, %v1007
      %v1009 = vrot.slane %v1008, 4
      %v1011 = vshll.u32 %v762, 16
      %v1013 = vrot.slane %v1011, 5
      %v1014 = vsel %vm784, %v1009, %v1013
      %v1015 = vshrl.u32 %v762, 16
      %v1017 = vrot.slane %v1015, 4
      %v1018 = vor.u32 %v1017, %v1013
      %v1019 = vrot.slane %v1018, 4
      %v1021 = vshll.u32 %v763, 16
      %v1023 = vrot.slane %v1021, 5
      %v1024 = vsel %vm784, %v1019, %v1023
      %v1026 = vshrl.u32 %v764, 16
      %v1028 = vrot.slane %v1026, 4
      %v1029 = vshll.u32 %v764, 16
      %v1031 = vrot.slane %v1029, 5
      %v1032 = vor.u32 %v1028, %v1031
      %v1033 = vrot.slane %v1032, 4
      %v1035 = vshll.u32 %v765, 16
      %v1037 = vrot.slane %v1035, 5
      %v1038 = vsel %vm784, %v1033, %v1037
      %v1039 = vshrl.u32 %v765, 16
      %v1041 = vrot.slane %v1039, 4
      %v1042 = vor.u32 %v1041, %v1037
      %v1043 = vrot.slane %v1042, 4
      %v1045 = vshll.u32 %v766, 16
      %v1047 = vrot.slane %v1045, 5
      %v1048 = vsel %vm784, %v1043, %v1047
      %v1050 = vshrl.u32 %v767, 16
      %v1052 = vrot.slane %v1050, 4
      %v1053 = vshll.u32 %v767, 16
      %v1055 = vrot.slane %v1053, 5
      %v1056 = vor.u32 %v1052, %v1055
      %v1057 = vrot.slane %v1056, 4
      %v1059 = vshll.u32 %v768, 16
      %v1061 = vrot.slane %v1059, 5
      %v1062 = vsel %vm784, %v1057, %v1061
      %v1063 = vshrl.u32 %v768, 16
      %v1065 = vrot.slane %v1063, 4
      %v1066 = vor.u32 %v1065, %v1061
      %v1067 = vrot.slane %v1066, 4
      %v1069 = vshll.u32 %v769, 16
      %v1071 = vrot.slane %v1069, 5
      %v1072 = vsel %vm784, %v1067, %v1071
      %v1074 = vshrl.u32 %v770, 16
      %v1076 = vrot.slane %v1074, 4
      %v1077 = vshll.u32 %v770, 16
      %v1079 = vrot.slane %v1077, 5
      %v1080 = vor.u32 %v1076, %v1079
      %v1081 = vrot.slane %v1080, 4
      %v1083 = vshll.u32 %v771, 16
      %v1085 = vrot.slane %v1083, 5
      %v1086 = vsel %vm784, %v1081, %v1085
      %v1087 = vshrl.u32 %v771, 16
      %v1089 = vrot.slane %v1087, 4
      %v1090 = vor.u32 %v1089, %v1085
      %v1091 = vrot.slane %v1090, 4
      %v1093 = vshll.u32 %v772, 16
      %v1095 = vrot.slane %v1093, 5
      %v1096 = vsel %vm784, %v1091, %v1095
      %v1098 = vshrl.u32 %v773, 16
      %v1100 = vrot.slane %v1098, 4
      %v1101 = vshll.u32 %v773, 16
      %v1103 = vrot.slane %v1101, 5
      %v1104 = vor.u32 %v1100, %v1103
      %v1105 = vrot.slane %v1104, 4
      %v1107 = vshll.u32 %v774, 16
      %v1109 = vrot.slane %v1107, 5
      %v1110 = vsel %vm784, %v1105, %v1109
      %v1111 = vshrl.u32 %v774, 16
      %v1113 = vrot.slane %v1111, 4
      %v1114 = vor.u32 %v1113, %v1109
      %v1115 = vrot.slane %v1114, 4
      %v1117 = vshll.u32 %v775, 16
      %v1119 = vrot.slane %v1117, 5
      %v1120 = vsel %vm784, %v1115, %v1119
      %v1122 = vshrl.u32 %v776, 16
      %v1124 = vrot.slane %v1122, 4
      %v1125 = vshll.u32 %v776, 16
      %v1127 = vrot.slane %v1125, 5
      %v1128 = vor.u32 %v1124, %v1127
      %v1129 = vrot.slane %v1128, 4
      %v1131 = vshll.u32 %v777, 16
      %v1133 = vrot.slane %v1131, 5
      %v1134 = vsel %vm784, %v1129, %v1133
      %v1135 = vshrl.u32 %v777, 16
      %v1137 = vrot.slane %v1135, 4
      %v1138 = vor.u32 %v1137, %v1133
      %v1139 = vrot.slane %v1138, 4
      %v1141 = vshll.u32 %v778, 16
      %v1143 = vrot.slane %v1141, 5
      %v1144 = vsel %vm784, %v1139, %v1143
      %v1146 = vshrl.u32 %v779, 16
      %v1148 = vrot.slane %v1146, 4
      %v1149 = vshll.u32 %v779, 16
      %v1151 = vrot.slane %v1149, 5
      %v1152 = vor.u32 %v1148, %v1151
      %v1153 = vrot.slane %v1152, 4
      %v1155 = vshll.u32 %v780, 16
      %v1157 = vrot.slane %v1155, 5
      %v1158 = vsel %vm784, %v1153, %v1157
      %v1159 = vshrl.u32 %v780, 16
      %v1161 = vrot.slane %v1159, 4
      %v1162 = vor.u32 %v1161, %v1157
      %v1163 = vrot.slane %v1162, 4
      %v1165 = vshll.u32 %v781, 16
      %v1167 = vrot.slane %v1165, 5
      %v1168 = vsel %vm784, %v1163, %v1167
      %vm1217 = vcmask 1042432
      %vm1218 = vcmask 1046532
      %vm1219 = vmor %vm1217, %vm1218
      %v1220 = vrot.slane %v734, 5
      %v1221 = vrot.slane %v1220, 4
      %v1222 = vrot.slane %v735, 5
      %v1223 = vsel %vm1219, %v1221, %v1222
      %v1224 = vrot.slane %v1222, 4
      %v1225 = vrot.slane %v736, 5
      %v1226 = vsel %vm1219, %v1224, %v1225
      %v1227 = vrot.slane %v737, 5
      %v1228 = vrot.slane %v1227, 4
      %v1229 = vrot.slane %v738, 5
      %v1230 = vsel %vm1219, %v1228, %v1229
      %v1231 = vrot.slane %v1229, 4
      %v1232 = vrot.slane %v739, 5
      %v1233 = vsel %vm1219, %v1231, %v1232
      %v1234 = vrot.slane %v740, 5
      %v1235 = vrot.slane %v1234, 4
      %v1236 = vrot.slane %v741, 5
      %v1237 = vsel %vm1219, %v1235, %v1236
      %v1238 = vrot.slane %v1236, 4
      %v1239 = vrot.slane %v742, 5
      %v1240 = vsel %vm1219, %v1238, %v1239
      %v1241 = vrot.slane %v743, 5
      %v1242 = vrot.slane %v1241, 4
      %v1243 = vrot.slane %v744, 5
      %v1244 = vsel %vm1219, %v1242, %v1243
      %v1245 = vrot.slane %v1243, 4
      %v1246 = vrot.slane %v745, 5
      %v1247 = vsel %vm1219, %v1245, %v1246
      %v1248 = vrot.slane %v746, 5
      %v1249 = vrot.slane %v1248, 4
      %v1250 = vrot.slane %v747, 5
      %v1251 = vsel %vm1219, %v1249, %v1250
      %v1252 = vrot.slane %v1250, 4
      %v1253 = vrot.slane %v748, 5
      %v1254 = vsel %vm1219, %v1252, %v1253
      %v1255 = vrot.slane %v749, 5
      %v1256 = vrot.slane %v1255, 4
      %v1257 = vrot.slane %v750, 5
      %v1258 = vsel %vm1219, %v1256, %v1257
      %v1259 = vrot.slane %v1257, 4
      %v1260 = vrot.slane %v751, 5
      %v1261 = vsel %vm1219, %v1259, %v1260
      %v1262 = vrot.slane %v752, 5
      %v1263 = vrot.slane %v1262, 4
      %v1264 = vrot.slane %v753, 5
      %v1265 = vsel %vm1219, %v1263, %v1264
      %v1266 = vrot.slane %v1264, 4
      %v1267 = vrot.slane %v754, 5
      %v1268 = vsel %vm1219, %v1266, %v1267
      %v1269 = vrot.slane %v755, 5
      %v1270 = vrot.slane %v1269, 4
      %v1271 = vrot.slane %v756, 5
      %v1272 = vsel %vm1219, %v1270, %v1271
      %v1273 = vrot.slane %v1271, 4
      %v1274 = vrot.slane %v757, 5
      %v1275 = vsel %vm1219, %v1273, %v1274
      %v1276 = vrot.slane %v758, 5
      %v1277 = vrot.slane %v1276, 4
      %v1278 = vrot.slane %v759, 5
      %v1279 = vsel %vm1219, %v1277, %v1278
      %v1280 = vrot.slane %v1278, 4
      %v1281 = vrot.slane %v760, 5
      %v1282 = vsel %vm1219, %v1280, %v1281
      %v1283 = vrot.slane %v761, 5
      %v1284 = vrot.slane %v1283, 4
      %v1285 = vrot.slane %v762, 5
      %v1286 = vsel %vm1219, %v1284, %v1285
      %v1287 = vrot.slane %v1285, 4
      %v1288 = vrot.slane %v763, 5
      %v1289 = vsel %vm1219, %v1287, %v1288
      %v1290 = vrot.slane %v764, 5
      %v1291 = vrot.slane %v1290, 4
      %v1292 = vrot.slane %v765, 5
      %v1293 = vsel %vm1219, %v1291, %v1292
      %v1294 = vrot.slane %v1292, 4
      %v1295 = vrot.slane %v766, 5
      %v1296 = vsel %vm1219, %v1294, %v1295
      %v1297 = vrot.slane %v767, 5
      %v1298 = vrot.slane %v1297, 4
      %v1299 = vrot.slane %v768, 5
      %v1300 = vsel %vm1219, %v1298, %v1299
      %v1301 = vrot.slane %v1299, 4
      %v1302 = vrot.slane %v769, 5
      %v1303 = vsel %vm1219, %v1301, %v1302
      %v1304 = vrot.slane %v770, 5
      %v1305 = vrot.slane %v1304, 4
      %v1306 = vrot.slane %v771, 5
      %v1307 = vsel %vm1219, %v1305, %v1306
      %v1308 = vrot.slane %v1306, 4
      %v1309 = vrot.slane %v772, 5
      %v1310 = vsel %vm1219, %v1308, %v1309
      %v1311 = vrot.slane %v773, 5
      %v1312 = vrot.slane %v1311, 4
      %v1313 = vrot.slane %v774, 5
      %v1314 = vsel %vm1219, %v1312, %v1313
      %v1315 = vrot.slane %v1313, 4
      %v1316 = vrot.slane %v775, 5
      %v1317 = vsel %vm1219, %v1315, %v1316
      %v1318 = vrot.slane %v776, 5
      %v1319 = vrot.slane %v1318, 4
      %v1320 = vrot.slane %v777, 5
      %v1321 = vsel %vm1219, %v1319, %v1320
      %v1322 = vrot.slane %v1320, 4
      %v1323 = vrot.slane %v778, 5
      %v1324 = vsel %vm1219, %v1322, %v1323
      %v1325 = vrot.slane %v779, 5
      %v1326 = vrot.slane %v1325, 4
      %v1327 = vrot.slane %v780, 5
      %v1328 = vsel %vm1219, %v1326, %v1327
      %v1329 = vrot.slane %v1327, 4
      %v1330 = vrot.slane %v781, 5
      %v1331 = vsel %vm1219, %v1329, %v1330
      %v1332 = vunpack.c.l.b16 %v734
      %v1333 = vunpack.c.l.b16 %v735
      %v1334 = vunpack.c.l.b16 %v737
      %v1335 = vunpack.c.l.b16 %v738
      %v1336 = vunpack.c.l.b16 %v740
      %v1337 = vunpack.c.l.b16 %v741
      %v1338 = vunpack.c.l.b16 %v743
      %v1339 = vunpack.c.l.b16 %v744
      %v1340 = vunpack.c.l.b16 %v746
      %v1341 = vunpack.c.l.b16 %v747
      %v1342 = vunpack.c.l.b16 %v749
      %v1343 = vunpack.c.l.b16 %v750
      %v1344 = vunpack.c.l.b16 %v752
      %v1345 = vunpack.c.l.b16 %v753
      %v1346 = vunpack.c.l.b16 %v755
      %v1347 = vunpack.c.l.b16 %v756
      %v1348 = vunpack.c.l.b16 %v758
      %v1349 = vunpack.c.l.b16 %v759
      %v1350 = vunpack.c.l.b16 %v761
      %v1351 = vunpack.c.l.b16 %v762
      %v1352 = vunpack.c.l.b16 %v764
      %v1353 = vunpack.c.l.b16 %v765
      %v1354 = vunpack.c.l.b16 %v767
      %v1355 = vunpack.c.l.b16 %v768
      %v1356 = vunpack.c.l.b16 %v770
      %v1357 = vunpack.c.l.b16 %v771
      %v1358 = vunpack.c.l.b16 %v773
      %v1359 = vunpack.c.l.b16 %v774
      %v1360 = vunpack.c.l.b16 %v776
      %v1361 = vunpack.c.l.b16 %v777
      %v1362 = vunpack.c.l.b16 %v779
      %v1363 = vunpack.c.l.b16 %v780
      %v1364 = vpack.c.b16 %v1333, %v1332
      %v1365 = vpack.c.b16 %v1335, %v1334
      %v1366 = vpack.c.b16 %v1337, %v1336
      %v1367 = vpack.c.b16 %v1339, %v1338
      %v1368 = vpack.c.b16 %v1341, %v1340
      %v1369 = vpack.c.b16 %v1343, %v1342
      %v1370 = vpack.c.b16 %v1345, %v1344
      %v1371 = vpack.c.b16 %v1347, %v1346
      %v1372 = vpack.c.b16 %v1349, %v1348
      %v1373 = vpack.c.b16 %v1351, %v1350
      %v1374 = vpack.c.b16 %v1353, %v1352
      %v1375 = vpack.c.b16 %v1355, %v1354
      %v1376 = vpack.c.b16 %v1357, %v1356
      %v1377 = vpack.c.b16 %v1359, %v1358
      %v1378 = vpack.c.b16 %v1361, %v1360
      %v1379 = vpack.c.b16 %v1363, %v1362
      %v1380 = vunpack.c.l.b16 %v798
      %v1381 = vunpack.c.l.b16 %v808
      %v1382 = vunpack.c.l.b16 %v822
      %v1383 = vunpack.c.l.b16 %v832
      %v1384 = vunpack.c.l.b16 %v846
      %v1385 = vunpack.c.l.b16 %v856
      %v1386 = vunpack.c.l.b16 %v870
      %v1387 = vunpack.c.l.b16 %v880
      %v1388 = vunpack.c.l.b16 %v894
      %v1389 = vunpack.c.l.b16 %v904
      %v1390 = vunpack.c.l.b16 %v918
      %v1391 = vunpack.c.l.b16 %v928
      %v1392 = vunpack.c.l.b16 %v942
      %v1393 = vunpack.c.l.b16 %v952
      %v1394 = vunpack.c.l.b16 %v966
      %v1395 = vunpack.c.l.b16 %v976
      %v1396 = vunpack.c.l.b16 %v990
      %v1397 = vunpack.c.l.b16 %v1000
      %v1398 = vunpack.c.l.b16 %v1014
      %v1399 = vunpack.c.l.b16 %v1024
      %v1400 = vunpack.c.l.b16 %v1038
      %v1401 = vunpack.c.l.b16 %v1048
      %v1402 = vunpack.c.l.b16 %v1062
      %v1403 = vunpack.c.l.b16 %v1072
      %v1404 = vunpack.c.l.b16 %v1086
      %v1405 = vunpack.c.l.b16 %v1096
      %v1406 = vunpack.c.l.b16 %v1110
      %v1407 = vunpack.c.l.b16 %v1120
      %v1408 = vunpack.c.l.b16 %v1134
      %v1409 = vunpack.c.l.b16 %v1144
      %v1410 = vunpack.c.l.b16 %v1158
      %v1411 = vunpack.c.l.b16 %v1168
      %v1412 = vpack.c.b16 %v1381, %v1380
      %v1413 = vpack.c.b16 %v1383, %v1382
      %v1414 = vpack.c.b16 %v1385, %v1384
      %v1415 = vpack.c.b16 %v1387, %v1386
      %v1416 = vpack.c.b16 %v1389, %v1388
      %v1417 = vpack.c.b16 %v1391, %v1390
      %v1418 = vpack.c.b16 %v1393, %v1392
      %v1419 = vpack.c.b16 %v1395, %v1394
      %v1420 = vpack.c.b16 %v1397, %v1396
      %v1421 = vpack.c.b16 %v1399, %v1398
      %v1422 = vpack.c.b16 %v1401, %v1400
      %v1423 = vpack.c.b16 %v1403, %v1402
      %v1424 = vpack.c.b16 %v1405, %v1404
      %v1425 = vpack.c.b16 %v1407, %v1406
      %v1426 = vpack.c.b16 %v1409, %v1408
      %v1427 = vpack.c.b16 %v1411, %v1410
      %1428 = vrot.lane.b32.xlu0 %v1412, 4
      %v1429 = vpop.permute.xlu0 %1428
      %1430 = vrot.lane.b32.xlu0 %v1413, 4
      %v1431 = vpop.permute.xlu0 %1430
      %1432 = vrot.lane.b32.xlu0 %v1414, 4
      %v1433 = vpop.permute.xlu0 %1432
      %1434 = vrot.lane.b32.xlu0 %v1415, 4
      %v1435 = vpop.permute.xlu0 %1434
      %1436 = vrot.lane.b32.xlu0 %v1416, 4
      %v1437 = vpop.permute.xlu0 %1436
      %1438 = vrot.lane.b32.xlu0 %v1417, 4
      %v1439 = vpop.permute.xlu0 %1438
      %1440 = vrot.lane.b32.xlu0 %v1418, 4
      %v1441 = vpop.permute.xlu0 %1440
      %1442 = vrot.lane.b32.xlu0 %v1419, 4
      %v1443 = vpop.permute.xlu0 %1442
      %1444 = vrot.lane.b32.xlu0 %v1420, 4
      %v1445 = vpop.permute.xlu0 %1444
      %1446 = vrot.lane.b32.xlu0 %v1421, 4
      %v1447 = vpop.permute.xlu0 %1446
      %1448 = vrot.lane.b32.xlu0 %v1422, 4
      %v1449 = vpop.permute.xlu0 %1448
      %1450 = vrot.lane.b32.xlu0 %v1423, 4
      %v1451 = vpop.permute.xlu0 %1450
      %1452 = vrot.lane.b32.xlu0 %v1424, 4
      %v1453 = vpop.permute.xlu0 %1452
      %1454 = vrot.lane.b32.xlu0 %v1425, 4
      %v1455 = vpop.permute.xlu0 %1454
      %1456 = vrot.lane.b32.xlu0 %v1426, 4
      %v1457 = vpop.permute.xlu0 %1456
      %1458 = vrot.lane.b32.xlu0 %v1427, 4
      %v1459 = vpop.permute.xlu0 %1458
      %v1460 = vunpack.c.l.b16 %v1223
      %v1461 = vunpack.c.l.b16 %v1226
      %v1462 = vunpack.c.l.b16 %v1230
      %v1463 = vunpack.c.l.b16 %v1233
      %v1464 = vunpack.c.l.b16 %v1237
      %v1465 = vunpack.c.l.b16 %v1240
      %v1466 = vunpack.c.l.b16 %v1244
      %v1467 = vunpack.c.l.b16 %v1247
      %v1468 = vunpack.c.l.b16 %v1251
      %v1469 = vunpack.c.l.b16 %v1254
      %v1470 = vunpack.c.l.b16 %v1258
      %v1471 = vunpack.c.l.b16 %v1261
      %v1472 = vunpack.c.l.b16 %v1265
      %v1473 = vunpack.c.l.b16 %v1268
      %v1474 = vunpack.c.l.b16 %v1272
      %v1475 = vunpack.c.l.b16 %v1275
      %v1476 = vunpack.c.l.b16 %v1279
      %v1477 = vunpack.c.l.b16 %v1282
      %v1478 = vunpack.c.l.b16 %v1286
      %v1479 = vunpack.c.l.b16 %v1289
      %v1480 = vunpack.c.l.b16 %v1293
      %v1481 = vunpack.c.l.b16 %v1296
      %v1482 = vunpack.c.l.b16 %v1300
      %v1483 = vunpack.c.l.b16 %v1303
      %v1484 = vunpack.c.l.b16 %v1307
      %v1485 = vunpack.c.l.b16 %v1310
      %v1486 = vunpack.c.l.b16 %v1314
      %v1487 = vunpack.c.l.b16 %v1317
      %v1488 = vunpack.c.l.b16 %v1321
      %v1489 = vunpack.c.l.b16 %v1324
      %v1490 = vunpack.c.l.b16 %v1328
      %v1491 = vunpack.c.l.b16 %v1331
      %v1492 = vpack.c.b16 %v1461, %v1460
      %v1493 = vpack.c.b16 %v1463, %v1462
      %v1494 = vpack.c.b16 %v1465, %v1464
      %v1495 = vpack.c.b16 %v1467, %v1466
      %v1496 = vpack.c.b16 %v1469, %v1468
      %v1497 = vpack.c.b16 %v1471, %v1470
      %v1498 = vpack.c.b16 %v1473, %v1472
      %v1499 = vpack.c.b16 %v1475, %v1474
      %v1500 = vpack.c.b16 %v1477, %v1476
      %v1501 = vpack.c.b16 %v1479, %v1478
      %v1502 = vpack.c.b16 %v1481, %v1480
      %v1503 = vpack.c.b16 %v1483, %v1482
      %v1504 = vpack.c.b16 %v1485, %v1484
      %v1505 = vpack.c.b16 %v1487, %v1486
      %v1506 = vpack.c.b16 %v1489, %v1488
      %v1507 = vpack.c.b16 %v1491, %v1490
      %1508 = vrot.lane.b32.xlu0 %v1492, 8
      %v1509 = vpop.permute.xlu0 %1508
      %1510 = vrot.lane.b32.xlu0 %v1493, 8
      %v1511 = vpop.permute.xlu0 %1510
      %1512 = vrot.lane.b32.xlu0 %v1494, 8
      %v1513 = vpop.permute.xlu0 %1512
      %1514 = vrot.lane.b32.xlu0 %v1495, 8
      %v1515 = vpop.permute.xlu0 %1514
      %1516 = vrot.lane.b32.xlu0 %v1496, 8
      %v1517 = vpop.permute.xlu0 %1516
      %1518 = vrot.lane.b32.xlu0 %v1497, 8
      %v1519 = vpop.permute.xlu0 %1518
      %1520 = vrot.lane.b32.xlu0 %v1498, 8
      %v1521 = vpop.permute.xlu0 %1520
      %1522 = vrot.lane.b32.xlu0 %v1499, 8
      %v1523 = vpop.permute.xlu0 %1522
      %1524 = vrot.lane.b32.xlu0 %v1500, 8
      %v1525 = vpop.permute.xlu0 %1524
      %1526 = vrot.lane.b32.xlu0 %v1501, 8
      %v1527 = vpop.permute.xlu0 %1526
      %1528 = vrot.lane.b32.xlu0 %v1502, 8
      %v1529 = vpop.permute.xlu0 %1528
      %1530 = vrot.lane.b32.xlu0 %v1503, 8
      %v1531 = vpop.permute.xlu0 %1530
      %1532 = vrot.lane.b32.xlu0 %v1504, 8
      %v1533 = vpop.permute.xlu0 %1532
      %1534 = vrot.lane.b32.xlu0 %v1505, 8
      %v1535 = vpop.permute.xlu0 %1534
      %1536 = vrot.lane.b32.xlu0 %v1506, 8
      %v1537 = vpop.permute.xlu0 %1536
      %1538 = vrot.lane.b32.xlu0 %v1507, 8
      %v1539 = vpop.permute.xlu0 %1538
      %vm1540 = vcmask 31744
      %v1543 = vsel %vm1540, %v1364, %v1429
      %v1546 = vsel %vm1540, %v1365, %v1431
      %v1549 = vsel %vm1540, %v1366, %v1433
      %v1552 = vsel %vm1540, %v1367, %v1435
      %v1555 = vsel %vm1540, %v1368, %v1437
      %v1558 = vsel %vm1540, %v1369, %v1439
      %v1561 = vsel %vm1540, %v1370, %v1441
      %v1564 = vsel %vm1540, %v1371, %v1443
      %v1567 = vsel %vm1540, %v1372, %v1445
      %v1570 = vsel %vm1540, %v1373, %v1447
      %v1573 = vsel %vm1540, %v1374, %v1449
      %v1576 = vsel %vm1540, %v1375, %v1451
      %v1579 = vsel %vm1540, %v1376, %v1453
      %v1582 = vsel %vm1540, %v1377, %v1455
      %v1585 = vsel %vm1540, %v1378, %v1457
      %v1588 = vsel %vm1540, %v1379, %v1459
      %vm1589 = vcmask 64512
      %v1591 = vsel %vm1589, %v1543, %v1509
      %v1593 = vsel %vm1589, %v1546, %v1511
      %v1595 = vsel %vm1589, %v1549, %v1513
      %v1597 = vsel %vm1589, %v1552, %v1515
      %v1599 = vsel %vm1589, %v1555, %v1517
      %v1601 = vsel %vm1589, %v1558, %v1519
      %v1603 = vsel %vm1589, %v1561, %v1521
      %v1605 = vsel %vm1589, %v1564, %v1523
      %v1607 = vsel %vm1589, %v1567, %v1525
      %v1609 = vsel %vm1589, %v1570, %v1527
      %v1611 = vsel %vm1589, %v1573, %v1529
      %v1613 = vsel %vm1589, %v1576, %v1531
      %v1615 = vsel %vm1589, %v1579, %v1533
      %v1617 = vsel %vm1589, %v1582, %v1535
      %v1619 = vsel %vm1589, %v1585, %v1537
      %v1621 = vsel %vm1589, %v1588, %v1539
      %v1622 = vld [vmem:[%s1] sm:$0xf]
      %v1623 = vld [vmem:[%s1 + $0x4] sm:$0x3]
      %s1624 = sadd.s32 %s730, 1
      %s1625 = smul.u32 %s1624, 3
      %s1626 = smul.addr %s1625, 4
      %s1627 = scalar_lea.vmem [#allocation2], %s1626
      %v1628 = vld [vmem:[%s1627] sm:$0xf]
      %v1629 = vld [vmem:[%s1627 + $0x4] sm:$0xf]
      %v1630 = vld [vmem:[%s1627 + $0x8] sm:$0x1]
      %v1631 = vld [vmem:[%s1627 + $0xc] sm:$0xf]
      %v1632 = vld [vmem:[%s1627 + $0x10] sm:$0xf]
      %v1633 = vld [vmem:[%s1627 + $0x14] sm:$0x1]
      %v1634 = vld [vmem:[%s1627 + $0x18] sm:$0xf]
      %v1635 = vld [vmem:[%s1627 + $0x1c] sm:$0xf]
      %v1636 = vld [vmem:[%s1627 + $0x20] sm:$0x1]
      %v1637 = vld [vmem:[%s1627 + $0x24] sm:$0xf]
      %v1638 = vld [vmem:[%s1627 + $0x28] sm:$0xf]
      %v1639 = vld [vmem:[%s1627 + $0x2c] sm:$0x1]
      %v1640 = vld [vmem:[%s1627 + $0x30] sm:$0xf]
      %v1641 = vld [vmem:[%s1627 + $0x34] sm:$0xf]
      %v1642 = vld [vmem:[%s1627 + $0x38] sm:$0x1]
      %v1643 = vld [vmem:[%s1627 + $0x3c] sm:$0xf]
      %v1644 = vld [vmem:[%s1627 + $0x40] sm:$0xf]
      %v1645 = vld [vmem:[%s1627 + $0x44] sm:$0x1]
      %v1646 = vld [vmem:[%s1627 + $0x48] sm:$0xf]
      %v1647 = vld [vmem:[%s1627 + $0x4c] sm:$0xf]
      %v1648 = vld [vmem:[%s1627 + $0x50] sm:$0x1]
      %v1649 = vld [vmem:[%s1627 + $0x54] sm:$0xf]
      %v1650 = vld [vmem:[%s1627 + $0x58] sm:$0xf]
      %v1651 = vld [vmem:[%s1627 + $0x5c] sm:$0x1]
      %v1652 = vld [vmem:[%s1627 + $0x60] sm:$0xf]
      %v1653 = vld [vmem:[%s1627 + $0x64] sm:$0xf]
      %v1654 = vld [vmem:[%s1627 + $0x68] sm:$0x1]
      %v1655 = vld [vmem:[%s1627 + $0x6c] sm:$0xf]
      %v1656 = vld [vmem:[%s1627 + $0x70] sm:$0xf]
      %v1657 = vld [vmem:[%s1627 + $0x74] sm:$0x1]
      %v1658 = vld [vmem:[%s1627 + $0x78] sm:$0xf]
      %v1659 = vld [vmem:[%s1627 + $0x7c] sm:$0xf]
      %v1660 = vld [vmem:[%s1627 + $0x80] sm:$0x1]
      %v1661 = vld [vmem:[%s1627 + $0x84] sm:$0xf]
      %v1662 = vld [vmem:[%s1627 + $0x88] sm:$0xf]
      %v1663 = vld [vmem:[%s1627 + $0x8c] sm:$0x1]
      %v1664 = vld [vmem:[%s1627 + $0x90] sm:$0xf]
      %v1665 = vld [vmem:[%s1627 + $0x94] sm:$0xf]
      %v1666 = vld [vmem:[%s1627 + $0x98] sm:$0x1]
      %v1667 = vld [vmem:[%s1627 + $0x9c] sm:$0xf]
      %v1668 = vld [vmem:[%s1627 + $0xa0] sm:$0xf]
      %v1669 = vld [vmem:[%s1627 + $0xa4] sm:$0x1]
      %v1670 = vld [vmem:[%s1627 + $0xa8] sm:$0xf]
      %v1671 = vld [vmem:[%s1627 + $0xac] sm:$0xf]
      %v1672 = vld [vmem:[%s1627 + $0xb0] sm:$0x1]
      %v1673 = vld [vmem:[%s1627 + $0xb4] sm:$0xf]
      %v1674 = vld [vmem:[%s1627 + $0xb8] sm:$0xf]
      %v1675 = vld [vmem:[%s1627 + $0xbc] sm:$0x1]
      %v1677 = vshrl.u32 %v1628, 16
      %v1679 = vrot.slane %v1677, 4
      %v1680 = vshll.u32 %v1628, 16
      %v1682 = vrot.slane %v1680, 5
      %v1683 = vor.u32 %v1679, %v1682
      %v1684 = vrot.slane %v1683, 4
      %v1686 = vshll.u32 %v1629, 16
      %v1688 = vrot.slane %v1686, 5
      %v1689 = vsel %vm784, %v1684, %v1688
      %v1690 = vshrl.u32 %v1629, 16
      %v1692 = vrot.slane %v1690, 4
      %v1693 = vor.u32 %v1692, %v1688
      %v1694 = vrot.slane %v1693, 4
      %v1696 = vshll.u32 %v1630, 16
      %v1698 = vrot.slane %v1696, 5
      %v1699 = vsel %vm784, %v1694, %v1698
      %v1701 = vshrl.u32 %v1631, 16
      %v1703 = vrot.slane %v1701, 4
      %v1704 = vshll.u32 %v1631, 16
      %v1706 = vrot.slane %v1704, 5
      %v1707 = vor.u32 %v1703, %v1706
      %v1708 = vrot.slane %v1707, 4
      %v1710 = vshll.u32 %v1632, 16
      %v1712 = vrot.slane %v1710, 5
      %v1713 = vsel %vm784, %v1708, %v1712
      %v1714 = vshrl.u32 %v1632, 16
      %v1716 = vrot.slane %v1714, 4
      %v1717 = vor.u32 %v1716, %v1712
      %v1718 = vrot.slane %v1717, 4
      %v1720 = vshll.u32 %v1633, 16
      %v1722 = vrot.slane %v1720, 5
      %v1723 = vsel %vm784, %v1718, %v1722
      %v1725 = vshrl.u32 %v1634, 16
      %v1727 = vrot.slane %v1725, 4
      %v1728 = vshll.u32 %v1634, 16
      %v1730 = vrot.slane %v1728, 5
      %v1731 = vor.u32 %v1727, %v1730
      %v1732 = vrot.slane %v1731, 4
      %v1734 = vshll.u32 %v1635, 16
      %v1736 = vrot.slane %v1734, 5
      %v1737 = vsel %vm784, %v1732, %v1736
      %v1738 = vshrl.u32 %v1635, 16
      %v1740 = vrot.slane %v1738, 4
      %v1741 = vor.u32 %v1740, %v1736
      %v1742 = vrot.slane %v1741, 4
      %v1744 = vshll.u32 %v1636, 16
      %v1746 = vrot.slane %v1744, 5
      %v1747 = vsel %vm784, %v1742, %v1746
      %v1749 = vshrl.u32 %v1637, 16
      %v1751 = vrot.slane %v1749, 4
      %v1752 = vshll.u32 %v1637, 16
      %v1754 = vrot.slane %v1752, 5
      %v1755 = vor.u32 %v1751, %v1754
      %v1756 = vrot.slane %v1755, 4
      %v1758 = vshll.u32 %v1638, 16
      %v1760 = vrot.slane %v1758, 5
      %v1761 = vsel %vm784, %v1756, %v1760
      %v1762 = vshrl.u32 %v1638, 16
      %v1764 = vrot.slane %v1762, 4
      %v1765 = vor.u32 %v1764, %v1760
      %v1766 = vrot.slane %v1765, 4
      %v1768 = vshll.u32 %v1639, 16
      %v1770 = vrot.slane %v1768, 5
      %v1771 = vsel %vm784, %v1766, %v1770
      %v1773 = vshrl.u32 %v1640, 16
      %v1775 = vrot.slane %v1773, 4
      %v1776 = vshll.u32 %v1640, 16
      %v1778 = vrot.slane %v1776, 5
      %v1779 = vor.u32 %v1775, %v1778
      %v1780 = vrot.slane %v1779, 4
      %v1782 = vshll.u32 %v1641, 16
      %v1784 = vrot.slane %v1782, 5
      %v1785 = vsel %vm784, %v1780, %v1784
      %v1786 = vshrl.u32 %v1641, 16
      %v1788 = vrot.slane %v1786, 4
      %v1789 = vor.u32 %v1788, %v1784
      %v1790 = vrot.slane %v1789, 4
      %v1792 = vshll.u32 %v1642, 16
      %v1794 = vrot.slane %v1792, 5
      %v1795 = vsel %vm784, %v1790, %v1794
      %v1797 = vshrl.u32 %v1643, 16
      %v1799 = vrot.slane %v1797, 4
      %v1800 = vshll.u32 %v1643, 16
      %v1802 = vrot.slane %v1800, 5
      %v1803 = vor.u32 %v1799, %v1802
      %v1804 = vrot.slane %v1803, 4
      %v1806 = vshll.u32 %v1644, 16
      %v1808 = vrot.slane %v1806, 5
      %v1809 = vsel %vm784, %v1804, %v1808
      %v1810 = vshrl.u32 %v1644, 16
      %v1812 = vrot.slane %v1810, 4
      %v1813 = vor.u32 %v1812, %v1808
      %v1814 = vrot.slane %v1813, 4
      %v1816 = vshll.u32 %v1645, 16
      %v1818 = vrot.slane %v1816, 5
      %v1819 = vsel %vm784, %v1814, %v1818
      %v1821 = vshrl.u32 %v1646, 16
      %v1823 = vrot.slane %v1821, 4
      %v1824 = vshll.u32 %v1646, 16
      %v1826 = vrot.slane %v1824, 5
      %v1827 = vor.u32 %v1823, %v1826
      %v1828 = vrot.slane %v1827, 4
      %v1830 = vshll.u32 %v1647, 16
      %v1832 = vrot.slane %v1830, 5
      %v1833 = vsel %vm784, %v1828, %v1832
      %v1834 = vshrl.u32 %v1647, 16
      %v1836 = vrot.slane %v1834, 4
      %v1837 = vor.u32 %v1836, %v1832
      %v1838 = vrot.slane %v1837, 4
      %v1840 = vshll.u32 %v1648, 16
      %v1842 = vrot.slane %v1840, 5
      %v1843 = vsel %vm784, %v1838, %v1842
      %v1845 = vshrl.u32 %v1649, 16
      %v1847 = vrot.slane %v1845, 4
      %v1848 = vshll.u32 %v1649, 16
      %v1850 = vrot.slane %v1848, 5
      %v1851 = vor.u32 %v1847, %v1850
      %v1852 = vrot.slane %v1851, 4
      %v1854 = vshll.u32 %v1650, 16
      %v1856 = vrot.slane %v1854, 5
      %v1857 = vsel %vm784, %v1852, %v1856
      %v1858 = vshrl.u32 %v1650, 16
      %v1860 = vrot.slane %v1858, 4
      %v1861 = vor.u32 %v1860, %v1856
      %v1862 = vrot.slane %v1861, 4
      %v1864 = vshll.u32 %v1651, 16
      %v1866 = vrot.slane %v1864, 5
      %v1867 = vsel %vm784, %v1862, %v1866
      %v1869 = vshrl.u32 %v1652, 16
      %v1871 = vrot.slane %v1869, 4
      %v1872 = vshll.u32 %v1652, 16
      %v1874 = vrot.slane %v1872, 5
      %v1875 = vor.u32 %v1871, %v1874
      %v1876 = vrot.slane %v1875, 4
      %v1878 = vshll.u32 %v1653, 16
      %v1880 = vrot.slane %v1878, 5
      %v1881 = vsel %vm784, %v1876, %v1880
      %v1882 = vshrl.u32 %v1653, 16
      %v1884 = vrot.slane %v1882, 4
      %v1885 = vor.u32 %v1884, %v1880
      %v1886 = vrot.slane %v1885, 4
      %v1888 = vshll.u32 %v1654, 16
      %v1890 = vrot.slane %v1888, 5
      %v1891 = vsel %vm784, %v1886, %v1890
      %v1893 = vshrl.u32 %v1655, 16
      %v1895 = vrot.slane %v1893, 4
      %v1896 = vshll.u32 %v1655, 16
      %v1898 = vrot.slane %v1896, 5
      %v1899 = vor.u32 %v1895, %v1898
      %v1900 = vrot.slane %v1899, 4
      %v1902 = vshll.u32 %v1656, 16
      %v1904 = vrot.slane %v1902, 5
      %v1905 = vsel %vm784, %v1900, %v1904
      %v1906 = vshrl.u32 %v1656, 16
      %v1908 = vrot.slane %v1906, 4
      %v1909 = vor.u32 %v1908, %v1904
      %v1910 = vrot.slane %v1909, 4
      %v1912 = vshll.u32 %v1657, 16
      %v1914 = vrot.slane %v1912, 5
      %v1915 = vsel %vm784, %v1910, %v1914
      %v1917 = vshrl.u32 %v1658, 16
      %v1919 = vrot.slane %v1917, 4
      %v1920 = vshll.u32 %v1658, 16
      %v1922 = vrot.slane %v1920, 5
      %v1923 = vor.u32 %v1919, %v1922
      %v1924 = vrot.slane %v1923, 4
      %v1926 = vshll.u32 %v1659, 16
      %v1928 = vrot.slane %v1926, 5
      %v1929 = vsel %vm784, %v1924, %v1928
      %v1930 = vshrl.u32 %v1659, 16
      %v1932 = vrot.slane %v1930, 4
      %v1933 = vor.u32 %v1932, %v1928
      %v1934 = vrot.slane %v1933, 4
      %v1936 = vshll.u32 %v1660, 16
      %v1938 = vrot.slane %v1936, 5
      %v1939 = vsel %vm784, %v1934, %v1938
      %v1941 = vshrl.u32 %v1661, 16
      %v1943 = vrot.slane %v1941, 4
      %v1944 = vshll.u32 %v1661, 16
      %v1946 = vrot.slane %v1944, 5
      %v1947 = vor.u32 %v1943, %v1946
      %v1948 = vrot.slane %v1947, 4
      %v1950 = vshll.u32 %v1662, 16
      %v1952 = vrot.slane %v1950, 5
      %v1953 = vsel %vm784, %v1948, %v1952
      %v1954 = vshrl.u32 %v1662, 16
      %v1956 = vrot.slane %v1954, 4
      %v1957 = vor.u32 %v1956, %v1952
      %v1958 = vrot.slane %v1957, 4
      %v1960 = vshll.u32 %v1663, 16
      %v1962 = vrot.slane %v1960, 5
      %v1963 = vsel %vm784, %v1958, %v1962
      %v1965 = vshrl.u32 %v1664, 16
      %v1967 = vrot.slane %v1965, 4
      %v1968 = vshll.u32 %v1664, 16
      %v1970 = vrot.slane %v1968, 5
      %v1971 = vor.u32 %v1967, %v1970
      %v1972 = vrot.slane %v1971, 4
      %v1974 = vshll.u32 %v1665, 16
      %v1976 = vrot.slane %v1974, 5
      %v1977 = vsel %vm784, %v1972, %v1976
      %v1978 = vshrl.u32 %v1665, 16
      %v1980 = vrot.slane %v1978, 4
      %v1981 = vor.u32 %v1980, %v1976
      %v1982 = vrot.slane %v1981, 4
      %v1984 = vshll.u32 %v1666, 16
      %v1986 = vrot.slane %v1984, 5
      %v1987 = vsel %vm784, %v1982, %v1986
      %v1989 = vshrl.u32 %v1667, 16
      %v1991 = vrot.slane %v1989, 4
      %v1992 = vshll.u32 %v1667, 16
      %v1994 = vrot.slane %v1992, 5
      %v1995 = vor.u32 %v1991, %v1994
      %v1996 = vrot.slane %v1995, 4
      %v1998 = vshll.u32 %v1668, 16
      %v2000 = vrot.slane %v1998, 5
      %v2001 = vsel %vm784, %v1996, %v2000
      %v2002 = vshrl.u32 %v1668, 16
      %v2004 = vrot.slane %v2002, 4
      %v2005 = vor.u32 %v2004, %v2000
      %v2006 = vrot.slane %v2005, 4
      %v2008 = vshll.u32 %v1669, 16
      %v2010 = vrot.slane %v2008, 5
      %v2011 = vsel %vm784, %v2006, %v2010
      %v2013 = vshrl.u32 %v1670, 16
      %v2015 = vrot.slane %v2013, 4
      %v2016 = vshll.u32 %v1670, 16
      %v2018 = vrot.slane %v2016, 5
      %v2019 = vor.u32 %v2015, %v2018
      %v2020 = vrot.slane %v2019, 4
      %v2022 = vshll.u32 %v1671, 16
      %v2024 = vrot.slane %v2022, 5
      %v2025 = vsel %vm784, %v2020, %v2024
      %v2026 = vshrl.u32 %v1671, 16
      %v2028 = vrot.slane %v2026, 4
      %v2029 = vor.u32 %v2028, %v2024
      %v2030 = vrot.slane %v2029, 4
      %v2032 = vshll.u32 %v1672, 16
      %v2034 = vrot.slane %v2032, 5
      %v2035 = vsel %vm784, %v2030, %v2034
      %v2037 = vshrl.u32 %v1673, 16
      %v2039 = vrot.slane %v2037, 4
      %v2040 = vshll.u32 %v1673, 16
      %v2042 = vrot.slane %v2040, 5
      %v2043 = vor.u32 %v2039, %v2042
      %v2044 = vrot.slane %v2043, 4
      %v2046 = vshll.u32 %v1674, 16
      %v2048 = vrot.slane %v2046, 5
      %v2049 = vsel %vm784, %v2044, %v2048
      %v2050 = vshrl.u32 %v1674, 16
      %v2052 = vrot.slane %v2050, 4
      %v2053 = vor.u32 %v2052, %v2048
      %v2054 = vrot.slane %v2053, 4
      %v2056 = vshll.u32 %v1675, 16
      %v2058 = vrot.slane %v2056, 5
      %v2059 = vsel %vm784, %v2054, %v2058
      %v2108 = vrot.slane %v1628, 5
      %v2109 = vrot.slane %v2108, 4
      %v2110 = vrot.slane %v1629, 5
      %v2111 = vsel %vm1219, %v2109, %v2110
      %v2112 = vrot.slane %v2110, 4
      %v2113 = vrot.slane %v1630, 5
      %v2114 = vsel %vm1219, %v2112, %v2113
      %v2115 = vrot.slane %v1631, 5
      %v2116 = vrot.slane %v2115, 4
      %v2117 = vrot.slane %v1632, 5
      %v2118 = vsel %vm1219, %v2116, %v2117
      %v2119 = vrot.slane %v2117, 4
      %v2120 = vrot.slane %v1633, 5
      %v2121 = vsel %vm1219, %v2119, %v2120
      %v2122 = vrot.slane %v1634, 5
      %v2123 = vrot.slane %v2122, 4
      %v2124 = vrot.slane %v1635, 5
      %v2125 = vsel %vm1219, %v2123, %v2124
      %v2126 = vrot.slane %v2124, 4
      %v2127 = vrot.slane %v1636, 5
      %v2128 = vsel %vm1219, %v2126, %v2127
      %v2129 = vrot.slane %v1637, 5
      %v2130 = vrot.slane %v2129, 4
      %v2131 = vrot.slane %v1638, 5
      %v2132 = vsel %vm1219, %v2130, %v2131
      %v2133 = vrot.slane %v2131, 4
      %v2134 = vrot.slane %v1639, 5
      %v2135 = vsel %vm1219, %v2133, %v2134
      %v2136 = vrot.slane %v1640, 5
      %v2137 = vrot.slane %v2136, 4
      %v2138 = vrot.slane %v1641, 5
      %v2139 = vsel %vm1219, %v2137, %v2138
      %v2140 = vrot.slane %v2138, 4
      %v2141 = vrot.slane %v1642, 5
      %v2142 = vsel %vm1219, %v2140, %v2141
      %v2143 = vrot.slane %v1643, 5
      %v2144 = vrot.slane %v2143, 4
      %v2145 = vrot.slane %v1644, 5
      %v2146 = vsel %vm1219, %v2144, %v2145
      %v2147 = vrot.slane %v2145, 4
      %v2148 = vrot.slane %v1645, 5
      %v2149 = vsel %vm1219, %v2147, %v2148
      %v2150 = vrot.slane %v1646, 5
      %v2151 = vrot.slane %v2150, 4
      %v2152 = vrot.slane %v1647, 5
      %v2153 = vsel %vm1219, %v2151, %v2152
      %v2154 = vrot.slane %v2152, 4
      %v2155 = vrot.slane %v1648, 5
      %v2156 = vsel %vm1219, %v2154, %v2155
      %v2157 = vrot.slane %v1649, 5
      %v2158 = vrot.slane %v2157, 4
      %v2159 = vrot.slane %v1650, 5
      %v2160 = vsel %vm1219, %v2158, %v2159
      %v2161 = vrot.slane %v2159, 4
      %v2162 = vrot.slane %v1651, 5
      %v2163 = vsel %vm1219, %v2161, %v2162
      %v2164 = vrot.slane %v1652, 5
      %v2165 = vrot.slane %v2164, 4
      %v2166 = vrot.slane %v1653, 5
      %v2167 = vsel %vm1219, %v2165, %v2166
      %v2168 = vrot.slane %v2166, 4
      %v2169 = vrot.slane %v1654, 5
      %v2170 = vsel %vm1219, %v2168, %v2169
      %v2171 = vrot.slane %v1655, 5
      %v2172 = vrot.slane %v2171, 4
      %v2173 = vrot.slane %v1656, 5
      %v2174 = vsel %vm1219, %v2172, %v2173
      %v2175 = vrot.slane %v2173, 4
      %v2176 = vrot.slane %v1657, 5
      %v2177 = vsel %vm1219, %v2175, %v2176
      %v2178 = vrot.slane %v1658, 5
      %v2179 = vrot.slane %v2178, 4
      %v2180 = vrot.slane %v1659, 5
      %v2181 = vsel %vm1219, %v2179, %v2180
      %v2182 = vrot.slane %v2180, 4
      %v2183 = vrot.slane %v1660, 5
      %v2184 = vsel %vm1219, %v2182, %v2183
      %v2185 = vrot.slane %v1661, 5
      %v2186 = vrot.slane %v2185, 4
      %v2187 = vrot.slane %v1662, 5
      %v2188 = vsel %vm1219, %v2186, %v2187
      %v2189 = vrot.slane %v2187, 4
      %v2190 = vrot.slane %v1663, 5
      %v2191 = vsel %vm1219, %v2189, %v2190
      %v2192 = vrot.slane %v1664, 5
      %v2193 = vrot.slane %v2192, 4
      %v2194 = vrot.slane %v1665, 5
      %v2195 = vsel %vm1219, %v2193, %v2194
      %v2196 = vrot.slane %v2194, 4
      %v2197 = vrot.slane %v1666, 5
      %v2198 = vsel %vm1219, %v2196, %v2197
      %v2199 = vrot.slane %v1667, 5
      %v2200 = vrot.slane %v2199, 4
      %v2201 = vrot.slane %v1668, 5
      %v2202 = vsel %vm1219, %v2200, %v2201
      %v2203 = vrot.slane %v2201, 4
      %v2204 = vrot.slane %v1669, 5
      %v2205 = vsel %vm1219, %v2203, %v2204
      %v2206 = vrot.slane %v1670, 5
      %v2207 = vrot.slane %v2206, 4
      %v2208 = vrot.slane %v1671, 5
      %v2209 = vsel %vm1219, %v2207, %v2208
      %v2210 = vrot.slane %v2208, 4
      %v2211 = vrot.slane %v1672, 5
      %v2212 = vsel %vm1219, %v2210, %v2211
      %v2213 = vrot.slane %v1673, 5
      %v2214 = vrot.slane %v2213, 4
      %v2215 = vrot.slane %v1674, 5
      %v2216 = vsel %vm1219, %v2214, %v2215
      %v2217 = vrot.slane %v2215, 4
      %v2218 = vrot.slane %v1675, 5
      %v2219 = vsel %vm1219, %v2217, %v2218
      %v2220 = vunpack.c.l.b16 %v1628
      %v2221 = vunpack.c.l.b16 %v1629
      %v2222 = vunpack.c.l.b16 %v1631
      %v2223 = vunpack.c.l.b16 %v1632
      %v2224 = vunpack.c.l.b16 %v1634
      %v2225 = vunpack.c.l.b16 %v1635
      %v2226 = vunpack.c.l.b16 %v1637
      %v2227 = vunpack.c.l.b16 %v1638
      %v2228 = vunpack.c.l.b16 %v1640
      %v2229 = vunpack.c.l.b16 %v1641
      %v2230 = vunpack.c.l.b16 %v1643
      %v2231 = vunpack.c.l.b16 %v1644
      %v2232 = vunpack.c.l.b16 %v1646
      %v2233 = vunpack.c.l.b16 %v1647
      %v2234 = vunpack.c.l.b16 %v1649
      %v2235 = vunpack.c.l.b16 %v1650
      %v2236 = vunpack.c.l.b16 %v1652
      %v2237 = vunpack.c.l.b16 %v1653
      %v2238 = vunpack.c.l.b16 %v1655
      %v2239 = vunpack.c.l.b16 %v1656
      %v2240 = vunpack.c.l.b16 %v1658
      %v2241 = vunpack.c.l.b16 %v1659
      %v2242 = vunpack.c.l.b16 %v1661
      %v2243 = vunpack.c.l.b16 %v1662
      %v2244 = vunpack.c.l.b16 %v1664
      %v2245 = vunpack.c.l.b16 %v1665
      %v2246 = vunpack.c.l.b16 %v1667
      %v2247 = vunpack.c.l.b16 %v1668
      %v2248 = vunpack.c.l.b16 %v1670
      %v2249 = vunpack.c.l.b16 %v1671
      %v2250 = vunpack.c.l.b16 %v1673
      %v2251 = vunpack.c.l.b16 %v1674
      %v2252 = vpack.c.b16 %v2221, %v2220
      %v2253 = vpack.c.b16 %v2223, %v2222
      %v2254 = vpack.c.b16 %v2225, %v2224
      %v2255 = vpack.c.b16 %v2227, %v2226
      %v2256 = vpack.c.b16 %v2229, %v2228
      %v2257 = vpack.c.b16 %v2231, %v2230
      %v2258 = vpack.c.b16 %v2233, %v2232
      %v2259 = vpack.c.b16 %v2235, %v2234
      %v2260 = vpack.c.b16 %v2237, %v2236
      %v2261 = vpack.c.b16 %v2239, %v2238
      %v2262 = vpack.c.b16 %v2241, %v2240
      %v2263 = vpack.c.b16 %v2243, %v2242
      %v2264 = vpack.c.b16 %v2245, %v2244
      %v2265 = vpack.c.b16 %v2247, %v2246
      %v2266 = vpack.c.b16 %v2249, %v2248
      %v2267 = vpack.c.b16 %v2251, %v2250
      %v2268 = vunpack.c.l.b16 %v1689
      %v2269 = vunpack.c.l.b16 %v1699
      %v2270 = vunpack.c.l.b16 %v1713
      %v2271 = vunpack.c.l.b16 %v1723
      %v2272 = vunpack.c.l.b16 %v1737
      %v2273 = vunpack.c.l.b16 %v1747
      %v2274 = vunpack.c.l.b16 %v1761
      %v2275 = vunpack.c.l.b16 %v1771
      %v2276 = vunpack.c.l.b16 %v1785
      %v2277 = vunpack.c.l.b16 %v1795
      %v2278 = vunpack.c.l.b16 %v1809
      %v2279 = vunpack.c.l.b16 %v1819
      %v2280 = vunpack.c.l.b16 %v1833
      %v2281 = vunpack.c.l.b16 %v1843
      %v2282 = vunpack.c.l.b16 %v1857
      %v2283 = vunpack.c.l.b16 %v1867
      %v2284 = vunpack.c.l.b16 %v1881
      %v2285 = vunpack.c.l.b16 %v1891
      %v2286 = vunpack.c.l.b16 %v1905
      %v2287 = vunpack.c.l.b16 %v1915
      %v2288 = vunpack.c.l.b16 %v1929
      %v2289 = vunpack.c.l.b16 %v1939
      %v2290 = vunpack.c.l.b16 %v1953
      %v2291 = vunpack.c.l.b16 %v1963
      %v2292 = vunpack.c.l.b16 %v1977
      %v2293 = vunpack.c.l.b16 %v1987
      %v2294 = vunpack.c.l.b16 %v2001
      %v2295 = vunpack.c.l.b16 %v2011
      %v2296 = vunpack.c.l.b16 %v2025
      %v2297 = vunpack.c.l.b16 %v2035
      %v2298 = vunpack.c.l.b16 %v2049
      %v2299 = vunpack.c.l.b16 %v2059
      %v2300 = vpack.c.b16 %v2269, %v2268
      %v2301 = vpack.c.b16 %v2271, %v2270
      %v2302 = vpack.c.b16 %v2273, %v2272
      %v2303 = vpack.c.b16 %v2275, %v2274
      %v2304 = vpack.c.b16 %v2277, %v2276
      %v2305 = vpack.c.b16 %v2279, %v2278
      %v2306 = vpack.c.b16 %v2281, %v2280
      %v2307 = vpack.c.b16 %v2283, %v2282
      %v2308 = vpack.c.b16 %v2285, %v2284
      %v2309 = vpack.c.b16 %v2287, %v2286
      %v2310 = vpack.c.b16 %v2289, %v2288
      %v2311 = vpack.c.b16 %v2291, %v2290
      %v2312 = vpack.c.b16 %v2293, %v2292
      %v2313 = vpack.c.b16 %v2295, %v2294
      %v2314 = vpack.c.b16 %v2297, %v2296
      %v2315 = vpack.c.b16 %v2299, %v2298
      %2316 = vrot.lane.b32.xlu0 %v2300, 4
      %v2317 = vpop.permute.xlu0 %2316
      %2318 = vrot.lane.b32.xlu0 %v2301, 4
      %v2319 = vpop.permute.xlu0 %2318
      %2320 = vrot.lane.b32.xlu0 %v2302, 4
      %v2321 = vpop.permute.xlu0 %2320
      %2322 = vrot.lane.b32.xlu0 %v2303, 4
      %v2323 = vpop.permute.xlu0 %2322
      %2324 = vrot.lane.b32.xlu0 %v2304, 4
      %v2325 = vpop.permute.xlu0 %2324
      %2326 = vrot.lane.b32.xlu0 %v2305, 4
      %v2327 = vpop.permute.xlu0 %2326
      %2328 = vrot.lane.b32.xlu0 %v2306, 4
      %v2329 = vpop.permute.xlu0 %2328
      %2330 = vrot.lane.b32.xlu0 %v2307, 4
      %v2331 = vpop.permute.xlu0 %2330
      %2332 = vrot.lane.b32.xlu0 %v2308, 4
      %v2333 = vpop.permute.xlu0 %2332
      %2334 = vrot.lane.b32.xlu0 %v2309, 4
      %v2335 = vpop.permute.xlu0 %2334
      %2336 = vrot.lane.b32.xlu0 %v2310, 4
      %v2337 = vpop.permute.xlu0 %2336
      %2338 = vrot.lane.b32.xlu0 %v2311, 4
      %v2339 = vpop.permute.xlu0 %2338
      %2340 = vrot.lane.b32.xlu0 %v2312, 4
      %v2341 = vpop.permute.xlu0 %2340
      %2342 = vrot.lane.b32.xlu0 %v2313, 4
      %v2343 = vpop.permute.xlu0 %2342
      %2344 = vrot.lane.b32.xlu0 %v2314, 4
      %v2345 = vpop.permute.xlu0 %2344
      %2346 = vrot.lane.b32.xlu0 %v2315, 4
      %v2347 = vpop.permute.xlu0 %2346
      %v2348 = vunpack.c.l.b16 %v2111
      %v2349 = vunpack.c.l.b16 %v2114
      %v2350 = vunpack.c.l.b16 %v2118
      %v2351 = vunpack.c.l.b16 %v2121
      %v2352 = vunpack.c.l.b16 %v2125
      %v2353 = vunpack.c.l.b16 %v2128
      %v2354 = vunpack.c.l.b16 %v2132
      %v2355 = vunpack.c.l.b16 %v2135
      %v2356 = vunpack.c.l.b16 %v2139
      %v2357 = vunpack.c.l.b16 %v2142
      %v2358 = vunpack.c.l.b16 %v2146
      %v2359 = vunpack.c.l.b16 %v2149
      %v2360 = vunpack.c.l.b16 %v2153
      %v2361 = vunpack.c.l.b16 %v2156
      %v2362 = vunpack.c.l.b16 %v2160
      %v2363 = vunpack.c.l.b16 %v2163
      %v2364 = vunpack.c.l.b16 %v2167
      %v2365 = vunpack.c.l.b16 %v2170
      %v2366 = vunpack.c.l.b16 %v2174
      %v2367 = vunpack.c.l.b16 %v2177
      %v2368 = vunpack.c.l.b16 %v2181
      %v2369 = vunpack.c.l.b16 %v2184
      %v2370 = vunpack.c.l.b16 %v2188
      %v2371 = vunpack.c.l.b16 %v2191
      %v2372 = vunpack.c.l.b16 %v2195
      %v2373 = vunpack.c.l.b16 %v2198
      %v2374 = vunpack.c.l.b16 %v2202
      %v2375 = vunpack.c.l.b16 %v2205
      %v2376 = vunpack.c.l.b16 %v2209
      %v2377 = vunpack.c.l.b16 %v2212
      %v2378 = vunpack.c.l.b16 %v2216
      %v2379 = vunpack.c.l.b16 %v2219
      %v2380 = vpack.c.b16 %v2349, %v2348
      %v2381 = vpack.c.b16 %v2351, %v2350
      %v2382 = vpack.c.b16 %v2353, %v2352
      %v2383 = vpack.c.b16 %v2355, %v2354
      %v2384 = vpack.c.b16 %v2357, %v2356
      %v2385 = vpack.c.b16 %v2359, %v2358
      %v2386 = vpack.c.b16 %v2361, %v2360
      %v2387 = vpack.c.b16 %v2363, %v2362
      %v2388 = vpack.c.b16 %v2365, %v2364
      %v2389 = vpack.c.b16 %v2367, %v2366
      %v2390 = vpack.c.b16 %v2369, %v2368
      %v2391 = vpack.c.b16 %v2371, %v2370
      %v2392 = vpack.c.b16 %v2373, %v2372
      %v2393 = vpack.c.b16 %v2375, %v2374
      %v2394 = vpack.c.b16 %v2377, %v2376
      %v2395 = vpack.c.b16 %v2379, %v2378
      %2396 = vrot.lane.b32.xlu0 %v2380, 8
      %v2397 = vpop.permute.xlu0 %2396
      %2398 = vrot.lane.b32.xlu0 %v2381, 8
      %v2399 = vpop.permute.xlu0 %2398
      %2400 = vrot.lane.b32.xlu0 %v2382, 8
      %v2401 = vpop.permute.xlu0 %2400
      %2402 = vrot.lane.b32.xlu0 %v2383, 8
      %v2403 = vpop.permute.xlu0 %2402
      %2404 = vrot.lane.b32.xlu0 %v2384, 8
      %v2405 = vpop.permute.xlu0 %2404
      %2406 = vrot.lane.b32.xlu0 %v2385, 8
      %v2407 = vpop.permute.xlu0 %2406
      %2408 = vrot.lane.b32.xlu0 %v2386, 8
      %v2409 = vpop.permute.xlu0 %2408
      %2410 = vrot.lane.b32.xlu0 %v2387, 8
      %v2411 = vpop.permute.xlu0 %2410
      %2412 = vrot.lane.b32.xlu0 %v2388, 8
      %v2413 = vpop.permute.xlu0 %2412
      %2414 = vrot.lane.b32.xlu0 %v2389, 8
      %v2415 = vpop.permute.xlu0 %2414
      %2416 = vrot.lane.b32.xlu0 %v2390, 8
      %v2417 = vpop.permute.xlu0 %2416
      %2418 = vrot.lane.b32.xlu0 %v2391, 8
      %v2419 = vpop.permute.xlu0 %2418
      %2420 = vrot.lane.b32.xlu0 %v2392, 8
      %v2421 = vpop.permute.xlu0 %2420
      %2422 = vrot.lane.b32.xlu0 %v2393, 8
      %v2423 = vpop.permute.xlu0 %2422
      %2424 = vrot.lane.b32.xlu0 %v2394, 8
      %v2425 = vpop.permute.xlu0 %2424
      %2426 = vrot.lane.b32.xlu0 %v2395, 8
      %v2427 = vpop.permute.xlu0 %2426
      %v2430 = vsel %vm1540, %v2252, %v2317
      %v2433 = vsel %vm1540, %v2253, %v2319
      %v2436 = vsel %vm1540, %v2254, %v2321
      %v2439 = vsel %vm1540, %v2255, %v2323
      %v2442 = vsel %vm1540, %v2256, %v2325
      %v2445 = vsel %vm1540, %v2257, %v2327
      %v2448 = vsel %vm1540, %v2258, %v2329
      %v2451 = vsel %vm1540, %v2259, %v2331
      %v2454 = vsel %vm1540, %v2260, %v2333
      %v2457 = vsel %vm1540, %v2261, %v2335
      %v2460 = vsel %vm1540, %v2262, %v2337
      %v2463 = vsel %vm1540, %v2263, %v2339
      %v2466 = vsel %vm1540, %v2264, %v2341
      %v2469 = vsel %vm1540, %v2265, %v2343
      %v2472 = vsel %vm1540, %v2266, %v2345
      %v2475 = vsel %vm1540, %v2267, %v2347
      %v2477 = vsel %vm1589, %v2430, %v2397
      %v2479 = vsel %vm1589, %v2433, %v2399
      %v2481 = vsel %vm1589, %v2436, %v2401
      %v2483 = vsel %vm1589, %v2439, %v2403
      %v2485 = vsel %vm1589, %v2442, %v2405
      %v2487 = vsel %vm1589, %v2445, %v2407
      %v2489 = vsel %vm1589, %v2448, %v2409
      %v2491 = vsel %vm1589, %v2451, %v2411
      %v2493 = vsel %vm1589, %v2454, %v2413
      %v2495 = vsel %vm1589, %v2457, %v2415
      %v2497 = vsel %vm1589, %v2460, %v2417
      %v2499 = vsel %vm1589, %v2463, %v2419
      %v2501 = vsel %vm1589, %v2466, %v2421
      %v2503 = vsel %vm1589, %v2469, %v2423
      %v2505 = vsel %vm1589, %v2472, %v2425
      %v2507 = vsel %vm1589, %v2475, %v2427
      %s2508 = scalar_lea.vmem %s1, 8
      %v2509 = vld [vmem:[%s2508] sm:$0xf]
      %v2510 = vld [vmem:[%s2508 + $0x4] sm:$0x3]
      %v2513 = vunpack.c.l.b16 %v2509
      %v2514 = vunpack.c.l.b16 %v2510
      %v2515 = vpack.c.b16 %v2514, %v2513
      %vm2516 = vcmask 97280
      %v2517 = vsel %vm2516, %v2477, 0
      %v2519 = vsel %vm2516, %v2479, 0
      %v2521 = vsel %vm2516, %v2481, 0
      %v2523 = vsel %vm2516, %v2483, 0
      %v2525 = vsel %vm2516, %v2485, 0
      %v2527 = vsel %vm2516, %v2487, 0
      %v2529 = vsel %vm2516, %v2489, 0
      %v2531 = vsel %vm2516, %v2491, 0
      %v2533 = vsel %vm2516, %v2493, 0
      %v2535 = vsel %vm2516, %v2495, 0
      %v2537 = vsel %vm2516, %v2497, 0
      %v2539 = vsel %vm2516, %v2499, 0
      %v2541 = vsel %vm2516, %v2501, 0
      %v2543 = vsel %vm2516, %v2503, 0
      %v2545 = vsel %vm2516, %v2505, 0
      %v2547 = vsel %vm2516, %v2507, 0
      %vm2549 = vcmask 1045504
      %v2551 = vsel %vm2549, %v2515, 0
      %2553 = vmatprep.subr.bf16.mxu0 0
      %2554 = vmatpush1.bf16.msra.mxu0 0
      %2555 = vmatprep.subr.bf16.mxu0 0
      %2556 = vmatpush1.bf16.msra.mxu0 0
      %2557 = vmatprep.subr.bf16.mxu0 0
      %2558 = vmatpush1.bf16.msra.mxu0 0
      %2559 = vmatprep.subr.bf16.mxu0 0
      %2560 = vmatpush1.bf16.msra.mxu0 0
      %2561 = vmatprep.subr.bf16.mxu0 0
      %2562 = vmatpush1.bf16.msra.mxu0 0
      %2563 = vmatprep.subr.bf16.mxu0 0
      %2564 = vmatpush1.bf16.msra.mxu0 0
      %2565 = vmatprep.subr.bf16.mxu0 0
      %2566 = vmatpush1.bf16.msra.mxu0 0
      %2567 = vmatprep.subr.bf16.mxu0 0
      %2568 = vmatpush1.bf16.msra.mxu0 %v2551
      %2569 = vmatprep.subr.bf16.mxu0 0
      %2570 = vmatpush2.bf16.msra.mxu0 0
      %2571 = vmatprep.subr.bf16.mxu0 0
      %2572 = vmatpush2.bf16.msra.mxu0 0
      %2573 = vmatprep.subr.bf16.mxu0 0
      %2574 = vmatpush2.bf16.msra.mxu0 0
      %2575 = vmatprep.subr.bf16.mxu0 0
      %2576 = vmatpush2.bf16.msra.mxu0 0
      %2577 = vmatprep.subr.bf16.mxu0 0
      %2578 = vmatpush2.bf16.msra.mxu0 0
      %2579 = vmatprep.subr.bf16.mxu0 0
      %2580 = vmatpush2.bf16.msra.mxu0 0
      %2581 = vmatprep.subr.bf16.mxu0 0
      %2582 = vmatpush2.bf16.msra.mxu0 0
      %2583 = vmatprep.subr.bf16.mxu0 0
      %2584 = vmatpush2.bf16.msra.mxu0 0
      %2585 = vmatprep.mubr.bf16.mxu0 0
      %2586 = vmatmul.mubr.bf16.gmra.mxu0 %v2517
      %v2587 = vpop.f32.mrf.mxu0
      %v2588 = vadd.f32 0.0, %v2587
      %v2589 = vpop.f32.mrf.mxu0
      %v2590 = vpop.f32.mrf.mxu0
      %v2591 = vadd.f32 0.0, %v2590
      %v2592 = vpop.f32.mrf.mxu0
      %2593 = vmatprep.mubr.bf16.mxu0 0
      %2594 = vmatmul.mubr.bf16.gmra.mxu0 %v2519
      %v2595 = vpop.f32.mrf.mxu0
      %v2596 = vadd.f32 0.0, %v2595
      %v2597 = vpop.f32.mrf.mxu0
      %v2598 = vpop.f32.mrf.mxu0
      %v2599 = vadd.f32 0.0, %v2598
      %v2600 = vpop.f32.mrf.mxu0
      %2601 = vmatprep.mubr.bf16.mxu0 0
      %2602 = vmatmul.mubr.bf16.gmra.mxu0 %v2521
      %v2603 = vpop.f32.mrf.mxu0
      %v2604 = vadd.f32 0.0, %v2603
      %v2605 = vpop.f32.mrf.mxu0
      %v2606 = vpop.f32.mrf.mxu0
      %v2607 = vadd.f32 0.0, %v2606
      %v2608 = vpop.f32.mrf.mxu0
      %2609 = vmatprep.mubr.bf16.mxu0 0
      %2610 = vmatmul.mubr.bf16.gmra.mxu0 %v2523
      %v2611 = vpop.f32.mrf.mxu0
      %v2612 = vadd.f32 0.0, %v2611
      %v2613 = vpop.f32.mrf.mxu0
      %v2614 = vpop.f32.mrf.mxu0
      %v2615 = vadd.f32 0.0, %v2614
      %v2616 = vpop.f32.mrf.mxu0
      %2617 = vmatprep.mubr.bf16.mxu0 0
      %2618 = vmatmul.mubr.bf16.gmra.mxu0 %v2525
      %v2619 = vpop.f32.mrf.mxu0
      %v2620 = vadd.f32 0.0, %v2619
      %v2621 = vpop.f32.mrf.mxu0
      %v2622 = vpop.f32.mrf.mxu0
      %v2623 = vadd.f32 0.0, %v2622
      %v2624 = vpop.f32.mrf.mxu0
      %2625 = vmatprep.mubr.bf16.mxu0 0
      %2626 = vmatmul.mubr.bf16.gmra.mxu0 %v2527
      %v2627 = vpop.f32.mrf.mxu0
      %v2628 = vadd.f32 0.0, %v2627
      %v2629 = vpop.f32.mrf.mxu0
      %v2630 = vpop.f32.mrf.mxu0
      %v2631 = vadd.f32 0.0, %v2630
      %v2632 = vpop.f32.mrf.mxu0
      %2633 = vmatprep.mubr.bf16.mxu0 0
      %2634 = vmatmul.mubr.bf16.gmra.mxu0 %v2529
      %v2635 = vpop.f32.mrf.mxu0
      %v2636 = vadd.f32 0.0, %v2635
      %v2637 = vpop.f32.mrf.mxu0
      %v2638 = vpop.f32.mrf.mxu0
      %v2639 = vadd.f32 0.0, %v2638
      %v2640 = vpop.f32.mrf.mxu0
      %2641 = vmatprep.mubr.bf16.mxu0 0
      %2642 = vmatmul.mubr.bf16.gmra.mxu0 %v2531
      %v2643 = vpop.f32.mrf.mxu0
      %v2644 = vadd.f32 0.0, %v2643
      %v2645 = vpop.f32.mrf.mxu0
      %v2646 = vpop.f32.mrf.mxu0
      %v2647 = vadd.f32 0.0, %v2646
      %v2648 = vpop.f32.mrf.mxu0
      %2649 = vmatprep.mubr.bf16.mxu0 0
      %2650 = vmatmul.mubr.bf16.gmra.mxu0 %v2533
      %v2651 = vpop.f32.mrf.mxu0
      %v2652 = vadd.f32 0.0, %v2651
      %v2653 = vpop.f32.mrf.mxu0
      %v2654 = vpop.f32.mrf.mxu0
      %v2655 = vadd.f32 0.0, %v2654
      %v2656 = vpop.f32.mrf.mxu0
      %2657 = vmatprep.mubr.bf16.mxu0 0
      %2658 = vmatmul.mubr.bf16.gmra.mxu0 %v2535
      %v2659 = vpop.f32.mrf.mxu0
      %v2660 = vadd.f32 0.0, %v2659
      %v2661 = vpop.f32.mrf.mxu0
      %v2662 = vpop.f32.mrf.mxu0
      %v2663 = vadd.f32 0.0, %v2662
      %v2664 = vpop.f32.mrf.mxu0
      %2665 = vmatprep.mubr.bf16.mxu0 0
      %2666 = vmatmul.mubr.bf16.gmra.mxu0 %v2537
      %v2667 = vpop.f32.mrf.mxu0
      %v2668 = vadd.f32 0.0, %v2667
      %v2669 = vpop.f32.mrf.mxu0
      %v2670 = vpop.f32.mrf.mxu0
      %v2671 = vadd.f32 0.0, %v2670
      %v2672 = vpop.f32.mrf.mxu0
      %2673 = vmatprep.mubr.bf16.mxu0 0
      %2674 = vmatmul.mubr.bf16.gmra.mxu0 %v2539
      %v2675 = vpop.f32.mrf.mxu0
      %v2676 = vadd.f32 0.0, %v2675
      %v2677 = vpop.f32.mrf.mxu0
      %v2678 = vpop.f32.mrf.mxu0
      %v2679 = vadd.f32 0.0, %v2678
      %v2680 = vpop.f32.mrf.mxu0
      %2681 = vmatprep.mubr.bf16.mxu0 0
      %2682 = vmatmul.mubr.bf16.gmra.mxu0 %v2541
      %v2683 = vpop.f32.mrf.mxu0
      %v2684 = vadd.f32 0.0, %v2683
      %v2685 = vpop.f32.mrf.mxu0
      %v2686 = vpop.f32.mrf.mxu0
      %v2687 = vadd.f32 0.0, %v2686
      %v2688 = vpop.f32.mrf.mxu0
      %2689 = vmatprep.mubr.bf16.mxu0 0
      %2690 = vmatmul.mubr.bf16.gmra.mxu0 %v2543
      %v2691 = vpop.f32.mrf.mxu0
      %v2692 = vadd.f32 0.0, %v2691
      %v2693 = vpop.f32.mrf.mxu0
      %v2694 = vpop.f32.mrf.mxu0
      %v2695 = vadd.f32 0.0, %v2694
      %v2696 = vpop.f32.mrf.mxu0
      %2697 = vmatprep.mubr.bf16.mxu0 0
      %2698 = vmatmul.mubr.bf16.gmra.mxu0 %v2545
      %v2699 = vpop.f32.mrf.mxu0
      %v2700 = vadd.f32 0.0, %v2699
      %v2701 = vpop.f32.mrf.mxu0
      %v2702 = vpop.f32.mrf.mxu0
      %v2703 = vadd.f32 0.0, %v2702
      %v2704 = vpop.f32.mrf.mxu0
      %2705 = vmatprep.mubr.bf16.mxu0 0
      %2706 = vmatmul.mubr.bf16.gmra.mxu0 %v2547
      %v2707 = vpop.f32.mrf.mxu0
      %v2708 = vadd.f32 0.0, %v2707
      %v2709 = vpop.f32.mrf.mxu0
      %v2710 = vpop.f32.mrf.mxu0
      %v2711 = vadd.f32 0.0, %v2710
      %v2712 = vpop.f32.mrf.mxu0
      %2713 = vdwg.mxu0
      %v2716 = vunpack.c.l.b16 %v1622
      %v2717 = vunpack.c.l.b16 %v1623
      %v2718 = vpack.c.b16 %v2717, %v2716
      %v2719 = vsel %vm2516, %v1591, 0
      %v2721 = vsel %vm2516, %v1593, 0
      %v2723 = vsel %vm2516, %v1595, 0
      %v2725 = vsel %vm2516, %v1597, 0
      %v2727 = vsel %vm2516, %v1599, 0
      %v2729 = vsel %vm2516, %v1601, 0
      %v2731 = vsel %vm2516, %v1603, 0
      %v2733 = vsel %vm2516, %v1605, 0
      %v2735 = vsel %vm2516, %v1607, 0
      %v2737 = vsel %vm2516, %v1609, 0
      %v2739 = vsel %vm2516, %v1611, 0
      %v2741 = vsel %vm2516, %v1613, 0
      %v2743 = vsel %vm2516, %v1615, 0
      %v2745 = vsel %vm2516, %v1617, 0
      %v2747 = vsel %vm2516, %v1619, 0
      %v2749 = vsel %vm2516, %v1621, 0
      %v2752 = vsel %vm2549, %v2718, 0
      %2754 = vmatprep.subr.bf16.mxu0 0
      %2755 = vmatpush1.bf16.msra.mxu0 0
      %2756 = vmatprep.subr.bf16.mxu0 0
      %2757 = vmatpush1.bf16.msra.mxu0 0
      %2758 = vmatprep.subr.bf16.mxu0 0
      %2759 = vmatpush1.bf16.msra.mxu0 0
      %2760 = vmatprep.subr.bf16.mxu0 0
      %2761 = vmatpush1.bf16.msra.mxu0 0
      %2762 = vmatprep.subr.bf16.mxu0 0
      %2763 = vmatpush1.bf16.msra.mxu0 0
      %2764 = vmatprep.subr.bf16.mxu0 0
      %2765 = vmatpush1.bf16.msra.mxu0 0
      %2766 = vmatprep.subr.bf16.mxu0 0
      %2767 = vmatpush1.bf16.msra.mxu0 0
      %2768 = vmatprep.subr.bf16.mxu0 0
      %2769 = vmatpush1.bf16.msra.mxu0 %v2752
      %2770 = vmatprep.subr.bf16.mxu0 0
      %2771 = vmatpush2.bf16.msra.mxu0 0
      %2772 = vmatprep.subr.bf16.mxu0 0
      %2773 = vmatpush2.bf16.msra.mxu0 0
      %2774 = vmatprep.subr.bf16.mxu0 0
      %2775 = vmatpush2.bf16.msra.mxu0 0
      %2776 = vmatprep.subr.bf16.mxu0 0
      %2777 = vmatpush2.bf16.msra.mxu0 0
      %2778 = vmatprep.subr.bf16.mxu0 0
      %2779 = vmatpush2.bf16.msra.mxu0 0
      %2780 = vmatprep.subr.bf16.mxu0 0
      %2781 = vmatpush2.bf16.msra.mxu0 0
      %2782 = vmatprep.subr.bf16.mxu0 0
      %2783 = vmatpush2.bf16.msra.mxu0 0
      %2784 = vmatprep.subr.bf16.mxu0 0
      %2785 = vmatpush2.bf16.msra.mxu0 0
      %2786 = vmatprep.mubr.bf16.mxu0 0
      %2787 = vmatmul.mubr.bf16.gmra.mxu0 %v2719
      %v2788 = vpop.f32.mrf.mxu0
      %v2789 = vadd.f32 %v2588, %v2788
      %v2790 = vpop.f32.mrf.mxu0
      %v2791 = vpop.f32.mrf.mxu0
      %v2792 = vadd.f32 %v2591, %v2791
      %v2793 = vpop.f32.mrf.mxu0
      %2794 = vmatprep.mubr.bf16.mxu0 0
      %2795 = vmatmul.mubr.bf16.gmra.mxu0 %v2721
      %v2796 = vpop.f32.mrf.mxu0
      %v2797 = vadd.f32 %v2596, %v2796
      %v2798 = vpop.f32.mrf.mxu0
      %v2799 = vpop.f32.mrf.mxu0
      %v2800 = vadd.f32 %v2599, %v2799
      %v2801 = vpop.f32.mrf.mxu0
      %2802 = vmatprep.mubr.bf16.mxu0 0
      %2803 = vmatmul.mubr.bf16.gmra.mxu0 %v2723
      %v2804 = vpop.f32.mrf.mxu0
      %v2805 = vadd.f32 %v2604, %v2804
      %v2806 = vpop.f32.mrf.mxu0
      %v2807 = vpop.f32.mrf.mxu0
      %v2808 = vadd.f32 %v2607, %v2807
      %v2809 = vpop.f32.mrf.mxu0
      %2810 = vmatprep.mubr.bf16.mxu0 0
      %2811 = vmatmul.mubr.bf16.gmra.mxu0 %v2725
      %v2812 = vpop.f32.mrf.mxu0
      %v2813 = vadd.f32 %v2612, %v2812
      %v2814 = vpop.f32.mrf.mxu0
      %v2815 = vpop.f32.mrf.mxu0
      %v2816 = vadd.f32 %v2615, %v2815
      %v2817 = vpop.f32.mrf.mxu0
      %2818 = vmatprep.mubr.bf16.mxu0 0
      %2819 = vmatmul.mubr.bf16.gmra.mxu0 %v2727
      %v2820 = vpop.f32.mrf.mxu0
      %v2821 = vadd.f32 %v2620, %v2820
      %v2822 = vpop.f32.mrf.mxu0
      %v2823 = vpop.f32.mrf.mxu0
      %v2824 = vadd.f32 %v2623, %v2823
      %v2825 = vpop.f32.mrf.mxu0
      %2826 = vmatprep.mubr.bf16.mxu0 0
      %2827 = vmatmul.mubr.bf16.gmra.mxu0 %v2729
      %v2828 = vpop.f32.mrf.mxu0
      %v2829 = vadd.f32 %v2628, %v2828
      %v2830 = vpop.f32.mrf.mxu0
      %v2831 = vpop.f32.mrf.mxu0
      %v2832 = vadd.f32 %v2631, %v2831
      %v2833 = vpop.f32.mrf.mxu0
      %2834 = vmatprep.mubr.bf16.mxu0 0
      %2835 = vmatmul.mubr.bf16.gmra.mxu0 %v2731
      %v2836 = vpop.f32.mrf.mxu0
      %v2837 = vadd.f32 %v2636, %v2836
      %v2838 = vpop.f32.mrf.mxu0
      %v2839 = vpop.f32.mrf.mxu0
      %v2840 = vadd.f32 %v2639, %v2839
      %v2841 = vpop.f32.mrf.mxu0
      %2842 = vmatprep.mubr.bf16.mxu0 0
      %2843 = vmatmul.mubr.bf16.gmra.mxu0 %v2733
      %v2844 = vpop.f32.mrf.mxu0
      %v2845 = vadd.f32 %v2644, %v2844
      %v2846 = vpop.f32.mrf.mxu0
      %v2847 = vpop.f32.mrf.mxu0
      %v2848 = vadd.f32 %v2647, %v2847
      %v2849 = vpop.f32.mrf.mxu0
      %2850 = vmatprep.mubr.bf16.mxu0 0
      %2851 = vmatmul.mubr.bf16.gmra.mxu0 %v2735
      %v2852 = vpop.f32.mrf.mxu0
      %v2853 = vadd.f32 %v2652, %v2852
      %v2854 = vpop.f32.mrf.mxu0
      %v2855 = vpop.f32.mrf.mxu0
      %v2856 = vadd.f32 %v2655, %v2855
      %v2857 = vpop.f32.mrf.mxu0
      %2858 = vmatprep.mubr.bf16.mxu0 0
      %2859 = vmatmul.mubr.bf16.gmra.mxu0 %v2737
      %v2860 = vpop.f32.mrf.mxu0
      %v2861 = vadd.f32 %v2660, %v2860
      %v2862 = vpop.f32.mrf.mxu0
      %v2863 = vpop.f32.mrf.mxu0
      %v2864 = vadd.f32 %v2663, %v2863
      %v2865 = vpop.f32.mrf.mxu0
      %2866 = vmatprep.mubr.bf16.mxu0 0
      %2867 = vmatmul.mubr.bf16.gmra.mxu0 %v2739
      %v2868 = vpop.f32.mrf.mxu0
      %v2869 = vadd.f32 %v2668, %v2868
      %v2870 = vpop.f32.mrf.mxu0
      %v2871 = vpop.f32.mrf.mxu0
      %v2872 = vadd.f32 %v2671, %v2871
      %v2873 = vpop.f32.mrf.mxu0
      %2874 = vmatprep.mubr.bf16.mxu0 0
      %2875 = vmatmul.mubr.bf16.gmra.mxu0 %v2741
      %v2876 = vpop.f32.mrf.mxu0
      %v2877 = vadd.f32 %v2676, %v2876
      %v2878 = vpop.f32.mrf.mxu0
      %v2879 = vpop.f32.mrf.mxu0
      %v2880 = vadd.f32 %v2679, %v2879
      %v2881 = vpop.f32.mrf.mxu0
      %2882 = vmatprep.mubr.bf16.mxu0 0
      %2883 = vmatmul.mubr.bf16.gmra.mxu0 %v2743
      %v2884 = vpop.f32.mrf.mxu0
      %v2885 = vadd.f32 %v2684, %v2884
      %v2886 = vpop.f32.mrf.mxu0
      %v2887 = vpop.f32.mrf.mxu0
      %v2888 = vadd.f32 %v2687, %v2887
      %v2889 = vpop.f32.mrf.mxu0
      %2890 = vmatprep.mubr.bf16.mxu0 0
      %2891 = vmatmul.mubr.bf16.gmra.mxu0 %v2745
      %v2892 = vpop.f32.mrf.mxu0
      %v2893 = vadd.f32 %v2692, %v2892
      %v2894 = vpop.f32.mrf.mxu0
      %v2895 = vpop.f32.mrf.mxu0
      %v2896 = vadd.f32 %v2695, %v2895
      %v2897 = vpop.f32.mrf.mxu0
      %2898 = vmatprep.mubr.bf16.mxu0 0
      %2899 = vmatmul.mubr.bf16.gmra.mxu0 %v2747
      %v2900 = vpop.f32.mrf.mxu0
      %v2901 = vadd.f32 %v2700, %v2900
      %v2902 = vpop.f32.mrf.mxu0
      %v2903 = vpop.f32.mrf.mxu0
      %v2904 = vadd.f32 %v2703, %v2903
      %v2905 = vpop.f32.mrf.mxu0
      %2906 = vmatprep.mubr.bf16.mxu0 0
      %2907 = vmatmul.mubr.bf16.gmra.mxu0 %v2749
      %v2908 = vpop.f32.mrf.mxu0
      %v2909 = vadd.f32 %v2708, %v2908
      %v2910 = vpop.f32.mrf.mxu0
      %v2911 = vpop.f32.mrf.mxu0
      %v2912 = vadd.f32 %v2711, %v2911
      %v2913 = vpop.f32.mrf.mxu0
      %2914 = vdwg.mxu0
      %s2915 = sadd.s32 %s730, 2
      %s2916 = smul.u32 %s2915, 3
      %s2917 = smul.addr %s2916, 4
      %s2918 = scalar_lea.vmem [#allocation2], %s2917
      %v2919 = vld [vmem:[%s2918] sm:$0xf]
      %v2920 = vld [vmem:[%s2918 + $0x4] sm:$0xf]
      %v2921 = vld [vmem:[%s2918 + $0x8] sm:$0x1]
      %v2922 = vld [vmem:[%s2918 + $0xc] sm:$0xf]
      %v2923 = vld [vmem:[%s2918 + $0x10] sm:$0xf]
      %v2924 = vld [vmem:[%s2918 + $0x14] sm:$0x1]
      %v2925 = vld [vmem:[%s2918 + $0x18] sm:$0xf]
      %v2926 = vld [vmem:[%s2918 + $0x1c] sm:$0xf]
      %v2927 = vld [vmem:[%s2918 + $0x20] sm:$0x1]
      %v2928 = vld [vmem:[%s2918 + $0x24] sm:$0xf]
      %v2929 = vld [vmem:[%s2918 + $0x28] sm:$0xf]
      %v2930 = vld [vmem:[%s2918 + $0x2c] sm:$0x1]
      %v2931 = vld [vmem:[%s2918 + $0x30] sm:$0xf]
      %v2932 = vld [vmem:[%s2918 + $0x34] sm:$0xf]
      %v2933 = vld [vmem:[%s2918 + $0x38] sm:$0x1]
      %v2934 = vld [vmem:[%s2918 + $0x3c] sm:$0xf]
      %v2935 = vld [vmem:[%s2918 + $0x40] sm:$0xf]
      %v2936 = vld [vmem:[%s2918 + $0x44] sm:$0x1]
      %v2937 = vld [vmem:[%s2918 + $0x48] sm:$0xf]
      %v2938 = vld [vmem:[%s2918 + $0x4c] sm:$0xf]
      %v2939 = vld [vmem:[%s2918 + $0x50] sm:$0x1]
      %v2940 = vld [vmem:[%s2918 + $0x54] sm:$0xf]
      %v2941 = vld [vmem:[%s2918 + $0x58] sm:$0xf]
      %v2942 = vld [vmem:[%s2918 + $0x5c] sm:$0x1]
      %v2943 = vld [vmem:[%s2918 + $0x60] sm:$0xf]
      %v2944 = vld [vmem:[%s2918 + $0x64] sm:$0xf]
      %v2945 = vld [vmem:[%s2918 + $0x68] sm:$0x1]
      %v2946 = vld [vmem:[%s2918 + $0x6c] sm:$0xf]
      %v2947 = vld [vmem:[%s2918 + $0x70] sm:$0xf]
      %v2948 = vld [vmem:[%s2918 + $0x74] sm:$0x1]
      %v2949 = vld [vmem:[%s2918 + $0x78] sm:$0xf]
      %v2950 = vld [vmem:[%s2918 + $0x7c] sm:$0xf]
      %v2951 = vld [vmem:[%s2918 + $0x80] sm:$0x1]
      %v2952 = vld [vmem:[%s2918 + $0x84] sm:$0xf]
      %v2953 = vld [vmem:[%s2918 + $0x88] sm:$0xf]
      %v2954 = vld [vmem:[%s2918 + $0x8c] sm:$0x1]
      %v2955 = vld [vmem:[%s2918 + $0x90] sm:$0xf]
      %v2956 = vld [vmem:[%s2918 + $0x94] sm:$0xf]
      %v2957 = vld [vmem:[%s2918 + $0x98] sm:$0x1]
      %v2958 = vld [vmem:[%s2918 + $0x9c] sm:$0xf]
      %v2959 = vld [vmem:[%s2918 + $0xa0] sm:$0xf]
      %v2960 = vld [vmem:[%s2918 + $0xa4] sm:$0x1]
      %v2961 = vld [vmem:[%s2918 + $0xa8] sm:$0xf]
      %v2962 = vld [vmem:[%s2918 + $0xac] sm:$0xf]
      %v2963 = vld [vmem:[%s2918 + $0xb0] sm:$0x1]
      %v2964 = vld [vmem:[%s2918 + $0xb4] sm:$0xf]
      %v2965 = vld [vmem:[%s2918 + $0xb8] sm:$0xf]
      %v2966 = vld [vmem:[%s2918 + $0xbc] sm:$0x1]
      %v2968 = vshrl.u32 %v2919, 16
      %v2970 = vrot.slane %v2968, 4
      %v2971 = vshll.u32 %v2919, 16
      %v2973 = vrot.slane %v2971, 5
      %v2974 = vor.u32 %v2970, %v2973
      %v2975 = vrot.slane %v2974, 4
      %v2977 = vshll.u32 %v2920, 16
      %v2979 = vrot.slane %v2977, 5
      %v2980 = vsel %vm784, %v2975, %v2979
      %v2981 = vshrl.u32 %v2920, 16
      %v2983 = vrot.slane %v2981, 4
      %v2984 = vor.u32 %v2983, %v2979
      %v2985 = vrot.slane %v2984, 4
      %v2987 = vshll.u32 %v2921, 16
      %v2989 = vrot.slane %v2987, 5
      %v2990 = vsel %vm784, %v2985, %v2989
      %v2992 = vshrl.u32 %v2922, 16
      %v2994 = vrot.slane %v2992, 4
      %v2995 = vshll.u32 %v2922, 16
      %v2997 = vrot.slane %v2995, 5
      %v2998 = vor.u32 %v2994, %v2997
      %v2999 = vrot.slane %v2998, 4
      %v3001 = vshll.u32 %v2923, 16
      %v3003 = vrot.slane %v3001, 5
      %v3004 = vsel %vm784, %v2999, %v3003
      %v3005 = vshrl.u32 %v2923, 16
      %v3007 = vrot.slane %v3005, 4
      %v3008 = vor.u32 %v3007, %v3003
      %v3009 = vrot.slane %v3008, 4
      %v3011 = vshll.u32 %v2924, 16
      %v3013 = vrot.slane %v3011, 5
      %v3014 = vsel %vm784, %v3009, %v3013
      %v3016 = vshrl.u32 %v2925, 16
      %v3018 = vrot.slane %v3016, 4
      %v3019 = vshll.u32 %v2925, 16
      %v3021 = vrot.slane %v3019, 5
      %v3022 = vor.u32 %v3018, %v3021
      %v3023 = vrot.slane %v3022, 4
      %v3025 = vshll.u32 %v2926, 16
      %v3027 = vrot.slane %v3025, 5
      %v3028 = vsel %vm784, %v3023, %v3027
      %v3029 = vshrl.u32 %v2926, 16
      %v3031 = vrot.slane %v3029, 4
      %v3032 = vor.u32 %v3031, %v3027
      %v3033 = vrot.slane %v3032, 4
      %v3035 = vshll.u32 %v2927, 16
      %v3037 = vrot.slane %v3035, 5
      %v3038 = vsel %vm784, %v3033, %v3037
      %v3040 = vshrl.u32 %v2928, 16
      %v3042 = vrot.slane %v3040, 4
      %v3043 = vshll.u32 %v2928, 16
      %v3045 = vrot.slane %v3043, 5
      %v3046 = vor.u32 %v3042, %v3045
      %v3047 = vrot.slane %v3046, 4
      %v3049 = vshll.u32 %v2929, 16
      %v3051 = vrot.slane %v3049, 5
      %v3052 = vsel %vm784, %v3047, %v3051
      %v3053 = vshrl.u32 %v2929, 16
      %v3055 = vrot.slane %v3053, 4
      %v3056 = vor.u32 %v3055, %v3051
      %v3057 = vrot.slane %v3056, 4
      %v3059 = vshll.u32 %v2930, 16
      %v3061 = vrot.slane %v3059, 5
      %v3062 = vsel %vm784, %v3057, %v3061
      %v3064 = vshrl.u32 %v2931, 16
      %v3066 = vrot.slane %v3064, 4
      %v3067 = vshll.u32 %v2931, 16
      %v3069 = vrot.slane %v3067, 5
      %v3070 = vor.u32 %v3066, %v3069
      %v3071 = vrot.slane %v3070, 4
      %v3073 = vshll.u32 %v2932, 16
      %v3075 = vrot.slane %v3073, 5
      %v3076 = vsel %vm784, %v3071, %v3075
      %v3077 = vshrl.u32 %v2932, 16
      %v3079 = vrot.slane %v3077, 4
      %v3080 = vor.u32 %v3079, %v3075
      %v3081 = vrot.slane %v3080, 4
      %v3083 = vshll.u32 %v2933, 16
      %v3085 = vrot.slane %v3083, 5
      %v3086 = vsel %vm784, %v3081, %v3085
      %v3088 = vshrl.u32 %v2934, 16
      %v3090 = vrot.slane %v3088, 4
      %v3091 = vshll.u32 %v2934, 16
      %v3093 = vrot.slane %v3091, 5
      %v3094 = vor.u32 %v3090, %v3093
      %v3095 = vrot.slane %v3094, 4
      %v3097 = vshll.u32 %v2935, 16
      %v3099 = vrot.slane %v3097, 5
      %v3100 = vsel %vm784, %v3095, %v3099
      %v3101 = vshrl.u32 %v2935, 16
      %v3103 = vrot.slane %v3101, 4
      %v3104 = vor.u32 %v3103, %v3099
      %v3105 = vrot.slane %v3104, 4
      %v3107 = vshll.u32 %v2936, 16
      %v3109 = vrot.slane %v3107, 5
      %v3110 = vsel %vm784, %v3105, %v3109
      %v3112 = vshrl.u32 %v2937, 16
      %v3114 = vrot.slane %v3112, 4
      %v3115 = vshll.u32 %v2937, 16
      %v3117 = vrot.slane %v3115, 5
      %v3118 = vor.u32 %v3114, %v3117
      %v3119 = vrot.slane %v3118, 4
      %v3121 = vshll.u32 %v2938, 16
      %v3123 = vrot.slane %v3121, 5
      %v3124 = vsel %vm784, %v3119, %v3123
      %v3125 = vshrl.u32 %v2938, 16
      %v3127 = vrot.slane %v3125, 4
      %v3128 = vor.u32 %v3127, %v3123
      %v3129 = vrot.slane %v3128, 4
      %v3131 = vshll.u32 %v2939, 16
      %v3133 = vrot.slane %v3131, 5
      %v3134 = vsel %vm784, %v3129, %v3133
      %v3136 = vshrl.u32 %v2940, 16
      %v3138 = vrot.slane %v3136, 4
      %v3139 = vshll.u32 %v2940, 16
      %v3141 = vrot.slane %v3139, 5
      %v3142 = vor.u32 %v3138, %v3141
      %v3143 = vrot.slane %v3142, 4
      %v3145 = vshll.u32 %v2941, 16
      %v3147 = vrot.slane %v3145, 5
      %v3148 = vsel %vm784, %v3143, %v3147
      %v3149 = vshrl.u32 %v2941, 16
      %v3151 = vrot.slane %v3149, 4
      %v3152 = vor.u32 %v3151, %v3147
      %v3153 = vrot.slane %v3152, 4
      %v3155 = vshll.u32 %v2942, 16
      %v3157 = vrot.slane %v3155, 5
      %v3158 = vsel %vm784, %v3153, %v3157
      %v3160 = vshrl.u32 %v2943, 16
      %v3162 = vrot.slane %v3160, 4
      %v3163 = vshll.u32 %v2943, 16
      %v3165 = vrot.slane %v3163, 5
      %v3166 = vor.u32 %v3162, %v3165
      %v3167 = vrot.slane %v3166, 4
      %v3169 = vshll.u32 %v2944, 16
      %v3171 = vrot.slane %v3169, 5
      %v3172 = vsel %vm784, %v3167, %v3171
      %v3173 = vshrl.u32 %v2944, 16
      %v3175 = vrot.slane %v3173, 4
      %v3176 = vor.u32 %v3175, %v3171
      %v3177 = vrot.slane %v3176, 4
      %v3179 = vshll.u32 %v2945, 16
      %v3181 = vrot.slane %v3179, 5
      %v3182 = vsel %vm784, %v3177, %v3181
      %v3184 = vshrl.u32 %v2946, 16
      %v3186 = vrot.slane %v3184, 4
      %v3187 = vshll.u32 %v2946, 16
      %v3189 = vrot.slane %v3187, 5
      %v3190 = vor.u32 %v3186, %v3189
      %v3191 = vrot.slane %v3190, 4
      %v3193 = vshll.u32 %v2947, 16
      %v3195 = vrot.slane %v3193, 5
      %v3196 = vsel %vm784, %v3191, %v3195
      %v3197 = vshrl.u32 %v2947, 16
      %v3199 = vrot.slane %v3197, 4
      %v3200 = vor.u32 %v3199, %v3195
      %v3201 = vrot.slane %v3200, 4
      %v3203 = vshll.u32 %v2948, 16
      %v3205 = vrot.slane %v3203, 5
      %v3206 = vsel %vm784, %v3201, %v3205
      %v3208 = vshrl.u32 %v2949, 16
      %v3210 = vrot.slane %v3208, 4
      %v3211 = vshll.u32 %v2949, 16
      %v3213 = vrot.slane %v3211, 5
      %v3214 = vor.u32 %v3210, %v3213
      %v3215 = vrot.slane %v3214, 4
      %v3217 = vshll.u32 %v2950, 16
      %v3219 = vrot.slane %v3217, 5
      %v3220 = vsel %vm784, %v3215, %v3219
      %v3221 = vshrl.u32 %v2950, 16
      %v3223 = vrot.slane %v3221, 4
      %v3224 = vor.u32 %v3223, %v3219
      %v3225 = vrot.slane %v3224, 4
      %v3227 = vshll.u32 %v2951, 16
      %v3229 = vrot.slane %v3227, 5
      %v3230 = vsel %vm784, %v3225, %v3229
      %v3232 = vshrl.u32 %v2952, 16
      %v3234 = vrot.slane %v3232, 4
      %v3235 = vshll.u32 %v2952, 16
      %v3237 = vrot.slane %v3235, 5
      %v3238 = vor.u32 %v3234, %v3237
      %v3239 = vrot.slane %v3238, 4
      %v3241 = vshll.u32 %v2953, 16
      %v3243 = vrot.slane %v3241, 5
      %v3244 = vsel %vm784, %v3239, %v3243
      %v3245 = vshrl.u32 %v2953, 16
      %v3247 = vrot.slane %v3245, 4
      %v3248 = vor.u32 %v3247, %v3243
      %v3249 = vrot.slane %v3248, 4
      %v3251 = vshll.u32 %v2954, 16
      %v3253 = vrot.slane %v3251, 5
      %v3254 = vsel %vm784, %v3249, %v3253
      %v3256 = vshrl.u32 %v2955, 16
      %v3258 = vrot.slane %v3256, 4
      %v3259 = vshll.u32 %v2955, 16
      %v3261 = vrot.slane %v3259, 5
      %v3262 = vor.u32 %v3258, %v3261
      %v3263 = vrot.slane %v3262, 4
      %v3265 = vshll.u32 %v2956, 16
      %v3267 = vrot.slane %v3265, 5
      %v3268 = vsel %vm784, %v3263, %v3267
      %v3269 = vshrl.u32 %v2956, 16
      %v3271 = vrot.slane %v3269, 4
      %v3272 = vor.u32 %v3271, %v3267
      %v3273 = vrot.slane %v3272, 4
      %v3275 = vshll.u32 %v2957, 16
      %v3277 = vrot.slane %v3275, 5
      %v3278 = vsel %vm784, %v3273, %v3277
      %v3280 = vshrl.u32 %v2958, 16
      %v3282 = vrot.slane %v3280, 4
      %v3283 = vshll.u32 %v2958, 16
      %v3285 = vrot.slane %v3283, 5
      %v3286 = vor.u32 %v3282, %v3285
      %v3287 = vrot.slane %v3286, 4
      %v3289 = vshll.u32 %v2959, 16
      %v3291 = vrot.slane %v3289, 5
      %v3292 = vsel %vm784, %v3287, %v3291
      %v3293 = vshrl.u32 %v2959, 16
      %v3295 = vrot.slane %v3293, 4
      %v3296 = vor.u32 %v3295, %v3291
      %v3297 = vrot.slane %v3296, 4
      %v3299 = vshll.u32 %v2960, 16
      %v3301 = vrot.slane %v3299, 5
      %v3302 = vsel %vm784, %v3297, %v3301
      %v3304 = vshrl.u32 %v2961, 16
      %v3306 = vrot.slane %v3304, 4
      %v3307 = vshll.u32 %v2961, 16
      %v3309 = vrot.slane %v3307, 5
      %v3310 = vor.u32 %v3306, %v3309
      %v3311 = vrot.slane %v3310, 4
      %v3313 = vshll.u32 %v2962, 16
      %v3315 = vrot.slane %v3313, 5
      %v3316 = vsel %vm784, %v3311, %v3315
      %v3317 = vshrl.u32 %v2962, 16
      %v3319 = vrot.slane %v3317, 4
      %v3320 = vor.u32 %v3319, %v3315
      %v3321 = vrot.slane %v3320, 4
      %v3323 = vshll.u32 %v2963, 16
      %v3325 = vrot.slane %v3323, 5
      %v3326 = vsel %vm784, %v3321, %v3325
      %v3328 = vshrl.u32 %v2964, 16
      %v3330 = vrot.slane %v3328, 4
      %v3331 = vshll.u32 %v2964, 16
      %v3333 = vrot.slane %v3331, 5
      %v3334 = vor.u32 %v3330, %v3333
      %v3335 = vrot.slane %v3334, 4
      %v3337 = vshll.u32 %v2965, 16
      %v3339 = vrot.slane %v3337, 5
      %v3340 = vsel %vm784, %v3335, %v3339
      %v3341 = vshrl.u32 %v2965, 16
      %v3343 = vrot.slane %v3341, 4
      %v3344 = vor.u32 %v3343, %v3339
      %v3345 = vrot.slane %v3344, 4
      %v3347 = vshll.u32 %v2966, 16
      %v3349 = vrot.slane %v3347, 5
      %v3350 = vsel %vm784, %v3345, %v3349
      %v3399 = vrot.slane %v2919, 5
      %v3400 = vrot.slane %v3399, 4
      %v3401 = vrot.slane %v2920, 5
      %v3402 = vsel %vm1219, %v3400, %v3401
      %v3403 = vrot.slane %v3401, 4
      %v3404 = vrot.slane %v2921, 5
      %v3405 = vsel %vm1219, %v3403, %v3404
      %v3406 = vrot.slane %v2922, 5
      %v3407 = vrot.slane %v3406, 4
      %v3408 = vrot.slane %v2923, 5
      %v3409 = vsel %vm1219, %v3407, %v3408
      %v3410 = vrot.slane %v3408, 4
      %v3411 = vrot.slane %v2924, 5
      %v3412 = vsel %vm1219, %v3410, %v3411
      %v3413 = vrot.slane %v2925, 5
      %v3414 = vrot.slane %v3413, 4
      %v3415 = vrot.slane %v2926, 5
      %v3416 = vsel %vm1219, %v3414, %v3415
      %v3417 = vrot.slane %v3415, 4
      %v3418 = vrot.slane %v2927, 5
      %v3419 = vsel %vm1219, %v3417, %v3418
      %v3420 = vrot.slane %v2928, 5
      %v3421 = vrot.slane %v3420, 4
      %v3422 = vrot.slane %v2929, 5
      %v3423 = vsel %vm1219, %v3421, %v3422
      %v3424 = vrot.slane %v3422, 4
      %v3425 = vrot.slane %v2930, 5
      %v3426 = vsel %vm1219, %v3424, %v3425
      %v3427 = vrot.slane %v2931, 5
      %v3428 = vrot.slane %v3427, 4
      %v3429 = vrot.slane %v2932, 5
      %v3430 = vsel %vm1219, %v3428, %v3429
      %v3431 = vrot.slane %v3429, 4
      %v3432 = vrot.slane %v2933, 5
      %v3433 = vsel %vm1219, %v3431, %v3432
      %v3434 = vrot.slane %v2934, 5
      %v3435 = vrot.slane %v3434, 4
      %v3436 = vrot.slane %v2935, 5
      %v3437 = vsel %vm1219, %v3435, %v3436
      %v3438 = vrot.slane %v3436, 4
      %v3439 = vrot.slane %v2936, 5
      %v3440 = vsel %vm1219, %v3438, %v3439
      %v3441 = vrot.slane %v2937, 5
      %v3442 = vrot.slane %v3441, 4
      %v3443 = vrot.slane %v2938, 5
      %v3444 = vsel %vm1219, %v3442, %v3443
      %v3445 = vrot.slane %v3443, 4
      %v3446 = vrot.slane %v2939, 5
      %v3447 = vsel %vm1219, %v3445, %v3446
      %v3448 = vrot.slane %v2940, 5
      %v3449 = vrot.slane %v3448, 4
      %v3450 = vrot.slane %v2941, 5
      %v3451 = vsel %vm1219, %v3449, %v3450
      %v3452 = vrot.slane %v3450, 4
      %v3453 = vrot.slane %v2942, 5
      %v3454 = vsel %vm1219, %v3452, %v3453
      %v3455 = vrot.slane %v2943, 5
      %v3456 = vrot.slane %v3455, 4
      %v3457 = vrot.slane %v2944, 5
      %v3458 = vsel %vm1219, %v3456, %v3457
      %v3459 = vrot.slane %v3457, 4
      %v3460 = vrot.slane %v2945, 5
      %v3461 = vsel %vm1219, %v3459, %v3460
      %v3462 = vrot.slane %v2946, 5
      %v3463 = vrot.slane %v3462, 4
      %v3464 = vrot.slane %v2947, 5
      %v3465 = vsel %vm1219, %v3463, %v3464
      %v3466 = vrot.slane %v3464, 4
      %v3467 = vrot.slane %v2948, 5
      %v3468 = vsel %vm1219, %v3466, %v3467
      %v3469 = vrot.slane %v2949, 5
      %v3470 = vrot.slane %v3469, 4
      %v3471 = vrot.slane %v2950, 5
      %v3472 = vsel %vm1219, %v3470, %v3471
      %v3473 = vrot.slane %v3471, 4
      %v3474 = vrot.slane %v2951, 5
      %v3475 = vsel %vm1219, %v3473, %v3474
      %v3476 = vrot.slane %v2952, 5
      %v3477 = vrot.slane %v3476, 4
      %v3478 = vrot.slane %v2953, 5
      %v3479 = vsel %vm1219, %v3477, %v3478
      %v3480 = vrot.slane %v3478, 4
      %v3481 = vrot.slane %v2954, 5
      %v3482 = vsel %vm1219, %v3480, %v3481
      %v3483 = vrot.slane %v2955, 5
      %v3484 = vrot.slane %v3483, 4
      %v3485 = vrot.slane %v2956, 5
      %v3486 = vsel %vm1219, %v3484, %v3485
      %v3487 = vrot.slane %v3485, 4
      %v3488 = vrot.slane %v2957, 5
      %v3489 = vsel %vm1219, %v3487, %v3488
      %v3490 = vrot.slane %v2958, 5
      %v3491 = vrot.slane %v3490, 4
      %v3492 = vrot.slane %v2959, 5
      %v3493 = vsel %vm1219, %v3491, %v3492
      %v3494 = vrot.slane %v3492, 4
      %v3495 = vrot.slane %v2960, 5
      %v3496 = vsel %vm1219, %v3494, %v3495
      %v3497 = vrot.slane %v2961, 5
      %v3498 = vrot.slane %v3497, 4
      %v3499 = vrot.slane %v2962, 5
      %v3500 = vsel %vm1219, %v3498, %v3499
      %v3501 = vrot.slane %v3499, 4
      %v3502 = vrot.slane %v2963, 5
      %v3503 = vsel %vm1219, %v3501, %v3502
      %v3504 = vrot.slane %v2964, 5
      %v3505 = vrot.slane %v3504, 4
      %v3506 = vrot.slane %v2965, 5
      %v3507 = vsel %vm1219, %v3505, %v3506
      %v3508 = vrot.slane %v3506, 4
      %v3509 = vrot.slane %v2966, 5
      %v3510 = vsel %vm1219, %v3508, %v3509
      %v3511 = vunpack.c.l.b16 %v2919
      %v3512 = vunpack.c.l.b16 %v2920
      %v3513 = vunpack.c.l.b16 %v2922
      %v3514 = vunpack.c.l.b16 %v2923
      %v3515 = vunpack.c.l.b16 %v2925
      %v3516 = vunpack.c.l.b16 %v2926
      %v3517 = vunpack.c.l.b16 %v2928
      %v3518 = vunpack.c.l.b16 %v2929
      %v3519 = vunpack.c.l.b16 %v2931
      %v3520 = vunpack.c.l.b16 %v2932
      %v3521 = vunpack.c.l.b16 %v2934
      %v3522 = vunpack.c.l.b16 %v2935
      %v3523 = vunpack.c.l.b16 %v2937
      %v3524 = vunpack.c.l.b16 %v2938
      %v3525 = vunpack.c.l.b16 %v2940
      %v3526 = vunpack.c.l.b16 %v2941
      %v3527 = vunpack.c.l.b16 %v2943
      %v3528 = vunpack.c.l.b16 %v2944
      %v3529 = vunpack.c.l.b16 %v2946
      %v3530 = vunpack.c.l.b16 %v2947
      %v3531 = vunpack.c.l.b16 %v2949
      %v3532 = vunpack.c.l.b16 %v2950
      %v3533 = vunpack.c.l.b16 %v2952
      %v3534 = vunpack.c.l.b16 %v2953
      %v3535 = vunpack.c.l.b16 %v2955
      %v3536 = vunpack.c.l.b16 %v2956
      %v3537 = vunpack.c.l.b16 %v2958
      %v3538 = vunpack.c.l.b16 %v2959
      %v3539 = vunpack.c.l.b16 %v2961
      %v3540 = vunpack.c.l.b16 %v2962
      %v3541 = vunpack.c.l.b16 %v2964
      %v3542 = vunpack.c.l.b16 %v2965
      %v3543 = vpack.c.b16 %v3512, %v3511
      %v3544 = vpack.c.b16 %v3514, %v3513
      %v3545 = vpack.c.b16 %v3516, %v3515
      %v3546 = vpack.c.b16 %v3518, %v3517
      %v3547 = vpack.c.b16 %v3520, %v3519
      %v3548 = vpack.c.b16 %v3522, %v3521
      %v3549 = vpack.c.b16 %v3524, %v3523
      %v3550 = vpack.c.b16 %v3526, %v3525
      %v3551 = vpack.c.b16 %v3528, %v3527
      %v3552 = vpack.c.b16 %v3530, %v3529
      %v3553 = vpack.c.b16 %v3532, %v3531
      %v3554 = vpack.c.b16 %v3534, %v3533
      %v3555 = vpack.c.b16 %v3536, %v3535
      %v3556 = vpack.c.b16 %v3538, %v3537
      %v3557 = vpack.c.b16 %v3540, %v3539
      %v3558 = vpack.c.b16 %v3542, %v3541
      %v3559 = vunpack.c.l.b16 %v2980
      %v3560 = vunpack.c.l.b16 %v2990
      %v3561 = vunpack.c.l.b16 %v3004
      %v3562 = vunpack.c.l.b16 %v3014
      %v3563 = vunpack.c.l.b16 %v3028
      %v3564 = vunpack.c.l.b16 %v3038
      %v3565 = vunpack.c.l.b16 %v3052
      %v3566 = vunpack.c.l.b16 %v3062
      %v3567 = vunpack.c.l.b16 %v3076
      %v3568 = vunpack.c.l.b16 %v3086
      %v3569 = vunpack.c.l.b16 %v3100
      %v3570 = vunpack.c.l.b16 %v3110
      %v3571 = vunpack.c.l.b16 %v3124
      %v3572 = vunpack.c.l.b16 %v3134
      %v3573 = vunpack.c.l.b16 %v3148
      %v3574 = vunpack.c.l.b16 %v3158
      %v3575 = vunpack.c.l.b16 %v3172
      %v3576 = vunpack.c.l.b16 %v3182
      %v3577 = vunpack.c.l.b16 %v3196
      %v3578 = vunpack.c.l.b16 %v3206
      %v3579 = vunpack.c.l.b16 %v3220
      %v3580 = vunpack.c.l.b16 %v3230
      %v3581 = vunpack.c.l.b16 %v3244
      %v3582 = vunpack.c.l.b16 %v3254
      %v3583 = vunpack.c.l.b16 %v3268
      %v3584 = vunpack.c.l.b16 %v3278
      %v3585 = vunpack.c.l.b16 %v3292
      %v3586 = vunpack.c.l.b16 %v3302
      %v3587 = vunpack.c.l.b16 %v3316
      %v3588 = vunpack.c.l.b16 %v3326
      %v3589 = vunpack.c.l.b16 %v3340
      %v3590 = vunpack.c.l.b16 %v3350
      %v3591 = vpack.c.b16 %v3560, %v3559
      %v3592 = vpack.c.b16 %v3562, %v3561
      %v3593 = vpack.c.b16 %v3564, %v3563
      %v3594 = vpack.c.b16 %v3566, %v3565
      %v3595 = vpack.c.b16 %v3568, %v3567
      %v3596 = vpack.c.b16 %v3570, %v3569
      %v3597 = vpack.c.b16 %v3572, %v3571
      %v3598 = vpack.c.b16 %v3574, %v3573
      %v3599 = vpack.c.b16 %v3576, %v3575
      %v3600 = vpack.c.b16 %v3578, %v3577
      %v3601 = vpack.c.b16 %v3580, %v3579
      %v3602 = vpack.c.b16 %v3582, %v3581
      %v3603 = vpack.c.b16 %v3584, %v3583
      %v3604 = vpack.c.b16 %v3586, %v3585
      %v3605 = vpack.c.b16 %v3588, %v3587
      %v3606 = vpack.c.b16 %v3590, %v3589
      %3607 = vrot.lane.b32.xlu0 %v3591, 4
      %v3608 = vpop.permute.xlu0 %3607
      %3609 = vrot.lane.b32.xlu0 %v3592, 4
      %v3610 = vpop.permute.xlu0 %3609
      %3611 = vrot.lane.b32.xlu0 %v3593, 4
      %v3612 = vpop.permute.xlu0 %3611
      %3613 = vrot.lane.b32.xlu0 %v3594, 4
      %v3614 = vpop.permute.xlu0 %3613
      %3615 = vrot.lane.b32.xlu0 %v3595, 4
      %v3616 = vpop.permute.xlu0 %3615
      %3617 = vrot.lane.b32.xlu0 %v3596, 4
      %v3618 = vpop.permute.xlu0 %3617
      %3619 = vrot.lane.b32.xlu0 %v3597, 4
      %v3620 = vpop.permute.xlu0 %3619
      %3621 = vrot.lane.b32.xlu0 %v3598, 4
      %v3622 = vpop.permute.xlu0 %3621
      %3623 = vrot.lane.b32.xlu0 %v3599, 4
      %v3624 = vpop.permute.xlu0 %3623
      %3625 = vrot.lane.b32.xlu0 %v3600, 4
      %v3626 = vpop.permute.xlu0 %3625
      %3627 = vrot.lane.b32.xlu0 %v3601, 4
      %v3628 = vpop.permute.xlu0 %3627
      %3629 = vrot.lane.b32.xlu0 %v3602, 4
      %v3630 = vpop.permute.xlu0 %3629
      %3631 = vrot.lane.b32.xlu0 %v3603, 4
      %v3632 = vpop.permute.xlu0 %3631
      %3633 = vrot.lane.b32.xlu0 %v3604, 4
      %v3634 = vpop.permute.xlu0 %3633
      %3635 = vrot.lane.b32.xlu0 %v3605, 4
      %v3636 = vpop.permute.xlu0 %3635
      %3637 = vrot.lane.b32.xlu0 %v3606, 4
      %v3638 = vpop.permute.xlu0 %3637
      %v3639 = vunpack.c.l.b16 %v3402
      %v3640 = vunpack.c.l.b16 %v3405
      %v3641 = vunpack.c.l.b16 %v3409
      %v3642 = vunpack.c.l.b16 %v3412
      %v3643 = vunpack.c.l.b16 %v3416
      %v3644 = vunpack.c.l.b16 %v3419
      %v3645 = vunpack.c.l.b16 %v3423
      %v3646 = vunpack.c.l.b16 %v3426
      %v3647 = vunpack.c.l.b16 %v3430
      %v3648 = vunpack.c.l.b16 %v3433
      %v3649 = vunpack.c.l.b16 %v3437
      %v3650 = vunpack.c.l.b16 %v3440
      %v3651 = vunpack.c.l.b16 %v3444
      %v3652 = vunpack.c.l.b16 %v3447
      %v3653 = vunpack.c.l.b16 %v3451
      %v3654 = vunpack.c.l.b16 %v3454
      %v3655 = vunpack.c.l.b16 %v3458
      %v3656 = vunpack.c.l.b16 %v3461
      %v3657 = vunpack.c.l.b16 %v3465
      %v3658 = vunpack.c.l.b16 %v3468
      %v3659 = vunpack.c.l.b16 %v3472
      %v3660 = vunpack.c.l.b16 %v3475
      %v3661 = vunpack.c.l.b16 %v3479
      %v3662 = vunpack.c.l.b16 %v3482
      %v3663 = vunpack.c.l.b16 %v3486
      %v3664 = vunpack.c.l.b16 %v3489
      %v3665 = vunpack.c.l.b16 %v3493
      %v3666 = vunpack.c.l.b16 %v3496
      %v3667 = vunpack.c.l.b16 %v3500
      %v3668 = vunpack.c.l.b16 %v3503
      %v3669 = vunpack.c.l.b16 %v3507
      %v3670 = vunpack.c.l.b16 %v3510
      %v3671 = vpack.c.b16 %v3640, %v3639
      %v3672 = vpack.c.b16 %v3642, %v3641
      %v3673 = vpack.c.b16 %v3644, %v3643
      %v3674 = vpack.c.b16 %v3646, %v3645
      %v3675 = vpack.c.b16 %v3648, %v3647
      %v3676 = vpack.c.b16 %v3650, %v3649
      %v3677 = vpack.c.b16 %v3652, %v3651
      %v3678 = vpack.c.b16 %v3654, %v3653
      %v3679 = vpack.c.b16 %v3656, %v3655
      %v3680 = vpack.c.b16 %v3658, %v3657
      %v3681 = vpack.c.b16 %v3660, %v3659
      %v3682 = vpack.c.b16 %v3662, %v3661
      %v3683 = vpack.c.b16 %v3664, %v3663
      %v3684 = vpack.c.b16 %v3666, %v3665
      %v3685 = vpack.c.b16 %v3668, %v3667
      %v3686 = vpack.c.b16 %v3670, %v3669
      %3687 = vrot.lane.b32.xlu0 %v3671, 8
      %v3688 = vpop.permute.xlu0 %3687
      %3689 = vrot.lane.b32.xlu0 %v3672, 8
      %v3690 = vpop.permute.xlu0 %3689
      %3691 = vrot.lane.b32.xlu0 %v3673, 8
      %v3692 = vpop.permute.xlu0 %3691
      %3693 = vrot.lane.b32.xlu0 %v3674, 8
      %v3694 = vpop.permute.xlu0 %3693
      %3695 = vrot.lane.b32.xlu0 %v3675, 8
      %v3696 = vpop.permute.xlu0 %3695
      %3697 = vrot.lane.b32.xlu0 %v3676, 8
      %v3698 = vpop.permute.xlu0 %3697
      %3699 = vrot.lane.b32.xlu0 %v3677, 8
      %v3700 = vpop.permute.xlu0 %3699
      %3701 = vrot.lane.b32.xlu0 %v3678, 8
      %v3702 = vpop.permute.xlu0 %3701
      %3703 = vrot.lane.b32.xlu0 %v3679, 8
      %v3704 = vpop.permute.xlu0 %3703
      %3705 = vrot.lane.b32.xlu0 %v3680, 8
      %v3706 = vpop.permute.xlu0 %3705
      %3707 = vrot.lane.b32.xlu0 %v3681, 8
      %v3708 = vpop.permute.xlu0 %3707
      %3709 = vrot.lane.b32.xlu0 %v3682, 8
      %v3710 = vpop.permute.xlu0 %3709
      %3711 = vrot.lane.b32.xlu0 %v3683, 8
      %v3712 = vpop.permute.xlu0 %3711
      %3713 = vrot.lane.b32.xlu0 %v3684, 8
      %v3714 = vpop.permute.xlu0 %3713
      %3715 = vrot.lane.b32.xlu0 %v3685, 8
      %v3716 = vpop.permute.xlu0 %3715
      %3717 = vrot.lane.b32.xlu0 %v3686, 8
      %v3718 = vpop.permute.xlu0 %3717
      %v3721 = vsel %vm1540, %v3543, %v3608
      %v3724 = vsel %vm1540, %v3544, %v3610
      %v3727 = vsel %vm1540, %v3545, %v3612
      %v3730 = vsel %vm1540, %v3546, %v3614
      %v3733 = vsel %vm1540, %v3547, %v3616
      %v3736 = vsel %vm1540, %v3548, %v3618
      %v3739 = vsel %vm1540, %v3549, %v3620
      %v3742 = vsel %vm1540, %v3550, %v3622
      %v3745 = vsel %vm1540, %v3551, %v3624
      %v3748 = vsel %vm1540, %v3552, %v3626
      %v3751 = vsel %vm1540, %v3553, %v3628
      %v3754 = vsel %vm1540, %v3554, %v3630
      %v3757 = vsel %vm1540, %v3555, %v3632
      %v3760 = vsel %vm1540, %v3556, %v3634
      %v3763 = vsel %vm1540, %v3557, %v3636
      %v3766 = vsel %vm1540, %v3558, %v3638
      %v3768 = vsel %vm1589, %v3721, %v3688
      %v3770 = vsel %vm1589, %v3724, %v3690
      %v3772 = vsel %vm1589, %v3727, %v3692
      %v3774 = vsel %vm1589, %v3730, %v3694
      %v3776 = vsel %vm1589, %v3733, %v3696
      %v3778 = vsel %vm1589, %v3736, %v3698
      %v3780 = vsel %vm1589, %v3739, %v3700
      %v3782 = vsel %vm1589, %v3742, %v3702
      %v3784 = vsel %vm1589, %v3745, %v3704
      %v3786 = vsel %vm1589, %v3748, %v3706
      %v3788 = vsel %vm1589, %v3751, %v3708
      %v3790 = vsel %vm1589, %v3754, %v3710
      %v3792 = vsel %vm1589, %v3757, %v3712
      %v3794 = vsel %vm1589, %v3760, %v3714
      %v3796 = vsel %vm1589, %v3763, %v3716
      %v3798 = vsel %vm1589, %v3766, %v3718
      %s3799 = scalar_lea.vmem %s1, 16
      %v3800 = vld [vmem:[%s3799] sm:$0xf]
      %v3801 = vld [vmem:[%s3799 + $0x4] sm:$0x3]
      %v3804 = vunpack.c.l.b16 %v3800
      %v3805 = vunpack.c.l.b16 %v3801
      %v3806 = vpack.c.b16 %v3805, %v3804
      %v3807 = vsel %vm2516, %v3768, 0
      %v3809 = vsel %vm2516, %v3770, 0
      %v3811 = vsel %vm2516, %v3772, 0
      %v3813 = vsel %vm2516, %v3774, 0
      %v3815 = vsel %vm2516, %v3776, 0
      %v3817 = vsel %vm2516, %v3778, 0
      %v3819 = vsel %vm2516, %v3780, 0
      %v3821 = vsel %vm2516, %v3782, 0
      %v3823 = vsel %vm2516, %v3784, 0
      %v3825 = vsel %vm2516, %v3786, 0
      %v3827 = vsel %vm2516, %v3788, 0
      %v3829 = vsel %vm2516, %v3790, 0
      %v3831 = vsel %vm2516, %v3792, 0
      %v3833 = vsel %vm2516, %v3794, 0
      %v3835 = vsel %vm2516, %v3796, 0
      %v3837 = vsel %vm2516, %v3798, 0
      %v3840 = vsel %vm2549, %v3806, 0
      %3842 = vmatprep.subr.bf16.mxu0 0
      %3843 = vmatpush1.bf16.msra.mxu0 0
      %3844 = vmatprep.subr.bf16.mxu0 0
      %3845 = vmatpush1.bf16.msra.mxu0 0
      %3846 = vmatprep.subr.bf16.mxu0 0
      %3847 = vmatpush1.bf16.msra.mxu0 0
      %3848 = vmatprep.subr.bf16.mxu0 0
      %3849 = vmatpush1.bf16.msra.mxu0 0
      %3850 = vmatprep.subr.bf16.mxu0 0
      %3851 = vmatpush1.bf16.msra.mxu0 0
      %3852 = vmatprep.subr.bf16.mxu0 0
      %3853 = vmatpush1.bf16.msra.mxu0 0
      %3854 = vmatprep.subr.bf16.mxu0 0
      %3855 = vmatpush1.bf16.msra.mxu0 0
      %3856 = vmatprep.subr.bf16.mxu0 0
      %3857 = vmatpush1.bf16.msra.mxu0 %v3840
      %3858 = vmatprep.subr.bf16.mxu0 0
      %3859 = vmatpush2.bf16.msra.mxu0 0
      %3860 = vmatprep.subr.bf16.mxu0 0
      %3861 = vmatpush2.bf16.msra.mxu0 0
      %3862 = vmatprep.subr.bf16.mxu0 0
      %3863 = vmatpush2.bf16.msra.mxu0 0
      %3864 = vmatprep.subr.bf16.mxu0 0
      %3865 = vmatpush2.bf16.msra.mxu0 0
      %3866 = vmatprep.subr.bf16.mxu0 0
      %3867 = vmatpush2.bf16.msra.mxu0 0
      %3868 = vmatprep.subr.bf16.mxu0 0
      %3869 = vmatpush2.bf16.msra.mxu0 0
      %3870 = vmatprep.subr.bf16.mxu0 0
      %3871 = vmatpush2.bf16.msra.mxu0 0
      %3872 = vmatprep.subr.bf16.mxu0 0
      %3873 = vmatpush2.bf16.msra.mxu0 0
      %3874 = vmatprep.mubr.bf16.mxu0 0
      %3875 = vmatmul.mubr.bf16.gmra.mxu0 %v3807
      %v3876 = vpop.f32.mrf.mxu0
      %v3877 = vadd.f32 0.0, %v3876
      %v3878 = vpop.f32.mrf.mxu0
      %v3879 = vpop.f32.mrf.mxu0
      %v3880 = vadd.f32 0.0, %v3879
      %v3881 = vpop.f32.mrf.mxu0
      %3882 = vmatprep.mubr.bf16.mxu0 0
      %3883 = vmatmul.mubr.bf16.gmra.mxu0 %v3809
      %v3884 = vpop.f32.mrf.mxu0
      %v3885 = vadd.f32 0.0, %v3884
      %v3886 = vpop.f32.mrf.mxu0
      %v3887 = vpop.f32.mrf.mxu0
      %v3888 = vadd.f32 0.0, %v3887
      %v3889 = vpop.f32.mrf.mxu0
      %3890 = vmatprep.mubr.bf16.mxu0 0
      %3891 = vmatmul.mubr.bf16.gmra.mxu0 %v3811
      %v3892 = vpop.f32.mrf.mxu0
      %v3893 = vadd.f32 0.0, %v3892
      %v3894 = vpop.f32.mrf.mxu0
      %v3895 = vpop.f32.mrf.mxu0
      %v3896 = vadd.f32 0.0, %v3895
      %v3897 = vpop.f32.mrf.mxu0
      %3898 = vmatprep.mubr.bf16.mxu0 0
      %3899 = vmatmul.mubr.bf16.gmra.mxu0 %v3813
      %v3900 = vpop.f32.mrf.mxu0
      %v3901 = vadd.f32 0.0, %v3900
      %v3902 = vpop.f32.mrf.mxu0
      %v3903 = vpop.f32.mrf.mxu0
      %v3904 = vadd.f32 0.0, %v3903
      %v3905 = vpop.f32.mrf.mxu0
      %3906 = vmatprep.mubr.bf16.mxu0 0
      %3907 = vmatmul.mubr.bf16.gmra.mxu0 %v3815
      %v3908 = vpop.f32.mrf.mxu0
      %v3909 = vadd.f32 0.0, %v3908
      %v3910 = vpop.f32.mrf.mxu0
      %v3911 = vpop.f32.mrf.mxu0
      %v3912 = vadd.f32 0.0, %v3911
      %v3913 = vpop.f32.mrf.mxu0
      %3914 = vmatprep.mubr.bf16.mxu0 0
      %3915 = vmatmul.mubr.bf16.gmra.mxu0 %v3817
      %v3916 = vpop.f32.mrf.mxu0
      %v3917 = vadd.f32 0.0, %v3916
      %v3918 = vpop.f32.mrf.mxu0
      %v3919 = vpop.f32.mrf.mxu0
      %v3920 = vadd.f32 0.0, %v3919
      %v3921 = vpop.f32.mrf.mxu0
      %3922 = vmatprep.mubr.bf16.mxu0 0
      %3923 = vmatmul.mubr.bf16.gmra.mxu0 %v3819
      %v3924 = vpop.f32.mrf.mxu0
      %v3925 = vadd.f32 0.0, %v3924
      %v3926 = vpop.f32.mrf.mxu0
      %v3927 = vpop.f32.mrf.mxu0
      %v3928 = vadd.f32 0.0, %v3927
      %v3929 = vpop.f32.mrf.mxu0
      %3930 = vmatprep.mubr.bf16.mxu0 0
      %3931 = vmatmul.mubr.bf16.gmra.mxu0 %v3821
      %v3932 = vpop.f32.mrf.mxu0
      %v3933 = vadd.f32 0.0, %v3932
      %v3934 = vpop.f32.mrf.mxu0
      %v3935 = vpop.f32.mrf.mxu0
      %v3936 = vadd.f32 0.0, %v3935
      %v3937 = vpop.f32.mrf.mxu0
      %3938 = vmatprep.mubr.bf16.mxu0 0
      %3939 = vmatmul.mubr.bf16.gmra.mxu0 %v3823
      %v3940 = vpop.f32.mrf.mxu0
      %v3941 = vadd.f32 0.0, %v3940
      %v3942 = vpop.f32.mrf.mxu0
      %v3943 = vpop.f32.mrf.mxu0
      %v3944 = vadd.f32 0.0, %v3943
      %v3945 = vpop.f32.mrf.mxu0
      %3946 = vmatprep.mubr.bf16.mxu0 0
      %3947 = vmatmul.mubr.bf16.gmra.mxu0 %v3825
      %v3948 = vpop.f32.mrf.mxu0
      %v3949 = vadd.f32 0.0, %v3948
      %v3950 = vpop.f32.mrf.mxu0
      %v3951 = vpop.f32.mrf.mxu0
      %v3952 = vadd.f32 0.0, %v3951
      %v3953 = vpop.f32.mrf.mxu0
      %3954 = vmatprep.mubr.bf16.mxu0 0
      %3955 = vmatmul.mubr.bf16.gmra.mxu0 %v3827
      %v3956 = vpop.f32.mrf.mxu0
      %v3957 = vadd.f32 0.0, %v3956
      %v3958 = vpop.f32.mrf.mxu0
      %v3959 = vpop.f32.mrf.mxu0
      %v3960 = vadd.f32 0.0, %v3959
      %v3961 = vpop.f32.mrf.mxu0
      %3962 = vmatprep.mubr.bf16.mxu0 0
      %3963 = vmatmul.mubr.bf16.gmra.mxu0 %v3829
      %v3964 = vpop.f32.mrf.mxu0
      %v3965 = vadd.f32 0.0, %v3964
      %v3966 = vpop.f32.mrf.mxu0
      %v3967 = vpop.f32.mrf.mxu0
      %v3968 = vadd.f32 0.0, %v3967
      %v3969 = vpop.f32.mrf.mxu0
      %3970 = vmatprep.mubr.bf16.mxu0 0
      %3971 = vmatmul.mubr.bf16.gmra.mxu0 %v3831
      %v3972 = vpop.f32.mrf.mxu0
      %v3973 = vadd.f32 0.0, %v3972
      %v3974 = vpop.f32.mrf.mxu0
      %v3975 = vpop.f32.mrf.mxu0
      %v3976 = vadd.f32 0.0, %v3975
      %v3977 = vpop.f32.mrf.mxu0
      %3978 = vmatprep.mubr.bf16.mxu0 0
      %3979 = vmatmul.mubr.bf16.gmra.mxu0 %v3833
      %v3980 = vpop.f32.mrf.mxu0
      %v3981 = vadd.f32 0.0, %v3980
      %v3982 = vpop.f32.mrf.mxu0
      %v3983 = vpop.f32.mrf.mxu0
      %v3984 = vadd.f32 0.0, %v3983
      %v3985 = vpop.f32.mrf.mxu0
      %3986 = vmatprep.mubr.bf16.mxu0 0
      %3987 = vmatmul.mubr.bf16.gmra.mxu0 %v3835
      %v3988 = vpop.f32.mrf.mxu0
      %v3989 = vadd.f32 0.0, %v3988
      %v3990 = vpop.f32.mrf.mxu0
      %v3991 = vpop.f32.mrf.mxu0
      %v3992 = vadd.f32 0.0, %v3991
      %v3993 = vpop.f32.mrf.mxu0
      %3994 = vmatprep.mubr.bf16.mxu0 0
      %3995 = vmatmul.mubr.bf16.gmra.mxu0 %v3837
      %v3996 = vpop.f32.mrf.mxu0
      %v3997 = vadd.f32 0.0, %v3996
      %v3998 = vpop.f32.mrf.mxu0
      %v3999 = vpop.f32.mrf.mxu0
      %v4000 = vadd.f32 0.0, %v3999
      %v4001 = vpop.f32.mrf.mxu0
      %4002 = vdwg.mxu0
      %v4003 = vadd.f32 %v2789, %v3877
      %v4004 = vadd.f32 %v2792, %v3880
      %v4005 = vadd.f32 %v2797, %v3885
      %v4006 = vadd.f32 %v2800, %v3888
      %v4007 = vadd.f32 %v2805, %v3893
      %v4008 = vadd.f32 %v2808, %v3896
      %v4009 = vadd.f32 %v2813, %v3901
      %v4010 = vadd.f32 %v2816, %v3904
      %v4011 = vadd.f32 %v2821, %v3909
      %v4012 = vadd.f32 %v2824, %v3912
      %v4013 = vadd.f32 %v2829, %v3917
      %v4014 = vadd.f32 %v2832, %v3920
      %v4015 = vadd.f32 %v2837, %v3925
      %v4016 = vadd.f32 %v2840, %v3928
      %v4017 = vadd.f32 %v2845, %v3933
      %v4018 = vadd.f32 %v2848, %v3936
      %v4019 = vadd.f32 %v2853, %v3941
      %v4020 = vadd.f32 %v2856, %v3944
      %v4021 = vadd.f32 %v2861, %v3949
      %v4022 = vadd.f32 %v2864, %v3952
      %v4023 = vadd.f32 %v2869, %v3957
      %v4024 = vadd.f32 %v2872, %v3960
      %v4025 = vadd.f32 %v2877, %v3965
      %v4026 = vadd.f32 %v2880, %v3968
      %v4027 = vadd.f32 %v2885, %v3973
      %v4028 = vadd.f32 %v2888, %v3976
      %v4029 = vadd.f32 %v2893, %v3981
      %v4030 = vadd.f32 %v2896, %v3984
      %v4031 = vadd.f32 %v2901, %v3989
      %v4032 = vadd.f32 %v2904, %v3992
      %v4033 = vadd.f32 %v2909, %v3997
      %v4034 = vadd.f32 %v2912, %v4000
      %v4035 = vld [vmem:[%s2] sm:$0x1]
      %v4037 = vlaneseq
      %v4038 = vshrl.u32 %v4037, 7
      %v4039 = vsub.s32 0, %v4038
      %v4040 = vrot.slane %v4035, %v4039
      %v4042 = vadd.f32 %v4003, %v4040
      %v4043 = vadd.f32 %v4004, %v4040
      %v4044 = vadd.f32 %v4005, %v4040
      %v4045 = vadd.f32 %v4006, %v4040
      %v4046 = vadd.f32 %v4007, %v4040
      %v4047 = vadd.f32 %v4008, %v4040
      %v4048 = vadd.f32 %v4009, %v4040
      %v4049 = vadd.f32 %v4010, %v4040
      %v4050 = vadd.f32 %v4011, %v4040
      %v4051 = vadd.f32 %v4012, %v4040
      %v4052 = vadd.f32 %v4013, %v4040
      %v4053 = vadd.f32 %v4014, %v4040
      %v4054 = vadd.f32 %v4015, %v4040
      %v4055 = vadd.f32 %v4016, %v4040
      %v4056 = vadd.f32 %v4017, %v4040
      %v4057 = vadd.f32 %v4018, %v4040
      %v4058 = vadd.f32 %v4019, %v4040
      %v4059 = vadd.f32 %v4020, %v4040
      %v4060 = vadd.f32 %v4021, %v4040
      %v4061 = vadd.f32 %v4022, %v4040
      %v4062 = vadd.f32 %v4023, %v4040
      %v4063 = vadd.f32 %v4024, %v4040
      %v4064 = vadd.f32 %v4025, %v4040
      %v4065 = vadd.f32 %v4026, %v4040
      %v4066 = vadd.f32 %v4027, %v4040
      %v4067 = vadd.f32 %v4028, %v4040
      %v4068 = vadd.f32 %v4029, %v4040
      %v4069 = vadd.f32 %v4030, %v4040
      %v4070 = vadd.f32 %v4031, %v4040
      %v4071 = vadd.f32 %v4032, %v4040
      %v4072 = vadd.f32 %v4033, %v4040
      %v4073 = vadd.f32 %v4034, %v4040
      %vm4074 = vcmp.gt.f32.partialorder %v4042, 0.0
      %vm4075 = vcmp.gt.f32.partialorder %v4043, 0.0
      %vm4076 = vcmp.gt.f32.partialorder %v4044, 0.0
      %vm4077 = vcmp.gt.f32.partialorder %v4045, 0.0
      %vm4078 = vcmp.gt.f32.partialorder %v4046, 0.0
      %vm4079 = vcmp.gt.f32.partialorder %v4047, 0.0
      %vm4080 = vcmp.gt.f32.partialorder %v4048, 0.0
      %vm4081 = vcmp.gt.f32.partialorder %v4049, 0.0
      %vm4082 = vcmp.gt.f32.partialorder %v4050, 0.0
      %vm4083 = vcmp.gt.f32.partialorder %v4051, 0.0
      %vm4084 = vcmp.gt.f32.partialorder %v4052, 0.0
      %vm4085 = vcmp.gt.f32.partialorder %v4053, 0.0
      %vm4086 = vcmp.gt.f32.partialorder %v4054, 0.0
      %vm4087 = vcmp.gt.f32.partialorder %v4055, 0.0
      %vm4088 = vcmp.gt.f32.partialorder %v4056, 0.0
      %vm4089 = vcmp.gt.f32.partialorder %v4057, 0.0
      %vm4090 = vcmp.gt.f32.partialorder %v4058, 0.0
      %vm4091 = vcmp.gt.f32.partialorder %v4059, 0.0
      %vm4092 = vcmp.gt.f32.partialorder %v4060, 0.0
      %vm4093 = vcmp.gt.f32.partialorder %v4061, 0.0
      %vm4094 = vcmp.gt.f32.partialorder %v4062, 0.0
      %vm4095 = vcmp.gt.f32.partialorder %v4063, 0.0
      %vm4096 = vcmp.gt.f32.partialorder %v4064, 0.0
      %vm4097 = vcmp.gt.f32.partialorder %v4065, 0.0
      %vm4098 = vcmp.gt.f32.partialorder %v4066, 0.0
      %vm4099 = vcmp.gt.f32.partialorder %v4067, 0.0
      %vm4100 = vcmp.gt.f32.partialorder %v4068, 0.0
      %vm4101 = vcmp.gt.f32.partialorder %v4069, 0.0
      %vm4102 = vcmp.gt.f32.partialorder %v4070, 0.0
      %vm4103 = vcmp.gt.f32.partialorder %v4071, 0.0
      %vm4104 = vcmp.gt.f32.partialorder %v4072, 0.0
      %vm4105 = vcmp.gt.f32.partialorder %v4073, 0.0
      %v4106 = vmul.f32 %v4042, 0.01
      %v4107 = vmul.f32 %v4043, 0.01
      %v4108 = vmul.f32 %v4044, 0.01
      %v4109 = vmul.f32 %v4045, 0.01
      %v4110 = vmul.f32 %v4046, 0.01
      %v4111 = vmul.f32 %v4047, 0.01
      %v4112 = vmul.f32 %v4048, 0.01
      %v4113 = vmul.f32 %v4049, 0.01
      %v4114 = vmul.f32 %v4050, 0.01
      %v4115 = vmul.f32 %v4051, 0.01
      %v4116 = vmul.f32 %v4052, 0.01
      %v4117 = vmul.f32 %v4053, 0.01
      %v4118 = vmul.f32 %v4054, 0.01
      %v4119 = vmul.f32 %v4055, 0.01
      %v4120 = vmul.f32 %v4056, 0.01
      %v4121 = vmul.f32 %v4057, 0.01
      %v4122 = vmul.f32 %v4058, 0.01
      %v4123 = vmul.f32 %v4059, 0.01
      %v4124 = vmul.f32 %v4060, 0.01
      %v4125 = vmul.f32 %v4061, 0.01
      %v4126 = vmul.f32 %v4062, 0.01
      %v4127 = vmul.f32 %v4063, 0.01
      %v4128 = vmul.f32 %v4064, 0.01
      %v4129 = vmul.f32 %v4065, 0.01
      %v4130 = vmul.f32 %v4066, 0.01
      %v4131 = vmul.f32 %v4067, 0.01
      %v4132 = vmul.f32 %v4068, 0.01
      %v4133 = vmul.f32 %v4069, 0.01
      %v4134 = vmul.f32 %v4070, 0.01
      %v4135 = vmul.f32 %v4071, 0.01
      %v4136 = vmul.f32 %v4072, 0.01
      %v4137 = vmul.f32 %v4073, 0.01
      %v4138 = vsel %vm4074, %v4042, %v4106
      %v4139 = vsel %vm4075, %v4043, %v4107
      %v4140 = vsel %vm4076, %v4044, %v4108
      %v4141 = vsel %vm4077, %v4045, %v4109
      %v4142 = vsel %vm4078, %v4046, %v4110
      %v4143 = vsel %vm4079, %v4047, %v4111
      %v4144 = vsel %vm4080, %v4048, %v4112
      %v4145 = vsel %vm4081, %v4049, %v4113
      %v4146 = vsel %vm4082, %v4050, %v4114
      %v4147 = vsel %vm4083, %v4051, %v4115
      %v4148 = vsel %vm4084, %v4052, %v4116
      %v4149 = vsel %vm4085, %v4053, %v4117
      %v4150 = vsel %vm4086, %v4054, %v4118
      %v4151 = vsel %vm4087, %v4055, %v4119
      %v4152 = vsel %vm4088, %v4056, %v4120
      %v4153 = vsel %vm4089, %v4057, %v4121
      %v4154 = vsel %vm4090, %v4058, %v4122
      %v4155 = vsel %vm4091, %v4059, %v4123
      %v4156 = vsel %vm4092, %v4060, %v4124
      %v4157 = vsel %vm4093, %v4061, %v4125
      %v4158 = vsel %vm4094, %v4062, %v4126
      %v4159 = vsel %vm4095, %v4063, %v4127
      %v4160 = vsel %vm4096, %v4064, %v4128
      %v4161 = vsel %vm4097, %v4065, %v4129
      %v4162 = vsel %vm4098, %v4066, %v4130
      %v4163 = vsel %vm4099, %v4067, %v4131
      %v4164 = vsel %vm4100, %v4068, %v4132
      %v4165 = vsel %vm4101, %v4069, %v4133
      %v4166 = vsel %vm4102, %v4070, %v4134
      %v4167 = vsel %vm4103, %v4071, %v4135
      %v4168 = vsel %vm4104, %v4072, %v4136
      %v4169 = vsel %vm4105, %v4073, %v4137
      %v4170 = vpack.c.bf16 %v4139, %v4138
      %v4171 = vpack.c.bf16 %v4141, %v4140
      %v4172 = vpack.c.bf16 %v4143, %v4142
      %v4173 = vpack.c.bf16 %v4145, %v4144
      %v4174 = vpack.c.bf16 %v4147, %v4146
      %v4175 = vpack.c.bf16 %v4149, %v4148
      %v4176 = vpack.c.bf16 %v4151, %v4150
      %v4177 = vpack.c.bf16 %v4153, %v4152
      %v4178 = vpack.c.bf16 %v4155, %v4154
      %v4179 = vpack.c.bf16 %v4157, %v4156
      %v4180 = vpack.c.bf16 %v4159, %v4158
      %v4181 = vpack.c.bf16 %v4161, %v4160
      %v4182 = vpack.c.bf16 %v4163, %v4162
      %v4183 = vpack.c.bf16 %v4165, %v4164
      %v4184 = vpack.c.bf16 %v4167, %v4166
      %v4185 = vpack.c.bf16 %v4169, %v4168
      %v4202 = vunpack.c.l.b16 %v4170
      %v4203 = vunpack.c.h.b16 %v4170
      %v4204 = vunpack.c.l.b16 %v4171
      %v4205 = vunpack.c.h.b16 %v4171
      %v4206 = vunpack.c.l.b16 %v4172
      %v4207 = vunpack.c.h.b16 %v4172
      %v4208 = vunpack.c.l.b16 %v4173
      %v4209 = vunpack.c.h.b16 %v4173
      %v4210 = vunpack.c.l.b16 %v4174
      %v4211 = vunpack.c.h.b16 %v4174
      %v4212 = vunpack.c.l.b16 %v4175
      %v4213 = vunpack.c.h.b16 %v4175
      %v4214 = vunpack.c.l.b16 %v4176
      %v4215 = vunpack.c.h.b16 %v4176
      %v4216 = vunpack.c.l.b16 %v4177
      %v4217 = vunpack.c.h.b16 %v4177
      %v4218 = vunpack.c.l.b16 %v4178
      %v4219 = vunpack.c.h.b16 %v4178
      %v4220 = vunpack.c.l.b16 %v4179
      %v4221 = vunpack.c.h.b16 %v4179
      %v4222 = vunpack.c.l.b16 %v4180
      %v4223 = vunpack.c.h.b16 %v4180
      %v4224 = vunpack.c.l.b16 %v4181
      %v4225 = vunpack.c.h.b16 %v4181
      %v4226 = vunpack.c.l.b16 %v4182
      %v4227 = vunpack.c.h.b16 %v4182
      %v4228 = vunpack.c.l.b16 %v4183
      %v4229 = vunpack.c.h.b16 %v4183
      %v4230 = vunpack.c.l.b16 %v4184
      %v4231 = vunpack.c.h.b16 %v4184
      %v4232 = vunpack.c.l.b16 %v4185
      %v4233 = vunpack.c.h.b16 %v4185
      %v4234 = vpack.c.b16 %v4202, %v4202
      %v4235 = vpack.c.b16 %v4203, %v4203
      %v4236 = vpack.c.b16 %v4204, %v4204
      %v4237 = vpack.c.b16 %v4205, %v4205
      %v4238 = vpack.c.b16 %v4206, %v4206
      %v4239 = vpack.c.b16 %v4207, %v4207
      %v4240 = vpack.c.b16 %v4208, %v4208
      %v4241 = vpack.c.b16 %v4209, %v4209
      %v4242 = vpack.c.b16 %v4210, %v4210
      %v4243 = vpack.c.b16 %v4211, %v4211
      %v4244 = vpack.c.b16 %v4212, %v4212
      %v4245 = vpack.c.b16 %v4213, %v4213
      %v4246 = vpack.c.b16 %v4214, %v4214
      %v4247 = vpack.c.b16 %v4215, %v4215
      %v4248 = vpack.c.b16 %v4216, %v4216
      %v4249 = vpack.c.b16 %v4217, %v4217
      %v4250 = vpack.c.b16 %v4218, %v4218
      %v4251 = vpack.c.b16 %v4219, %v4219
      %v4252 = vpack.c.b16 %v4220, %v4220
      %v4253 = vpack.c.b16 %v4221, %v4221
      %v4254 = vpack.c.b16 %v4222, %v4222
      %v4255 = vpack.c.b16 %v4223, %v4223
      %v4256 = vpack.c.b16 %v4224, %v4224
      %v4257 = vpack.c.b16 %v4225, %v4225
      %v4258 = vpack.c.b16 %v4226, %v4226
      %v4259 = vpack.c.b16 %v4227, %v4227
      %v4260 = vpack.c.b16 %v4228, %v4228
      %v4261 = vpack.c.b16 %v4229, %v4229
      %v4262 = vpack.c.b16 %v4230, %v4230
      %v4263 = vpack.c.b16 %v4231, %v4231
      %v4264 = vpack.c.b16 %v4232, %v4232
      %v4265 = vpack.c.b16 %v4233, %v4233
      %vm4298 = vcmask 27648
      %4299 = vst.msk [vmem:[%s194] sm:$0xf] %vm4298, %v4234
      %4300 = vst.msk [vmem:[%s194 + $0x4] sm:$0xf] %vm4298, %v4235
      %4301 = vst.msk [vmem:[%s194 + $0x8] sm:$0xf] %vm4298, %v4236
      %4302 = vst.msk [vmem:[%s194 + $0xc] sm:$0xf] %vm4298, %v4237
      %4303 = vst.msk [vmem:[%s194 + $0x10] sm:$0xf] %vm4298, %v4238
      %4304 = vst.msk [vmem:[%s194 + $0x14] sm:$0xf] %vm4298, %v4239
      %4305 = vst.msk [vmem:[%s194 + $0x18] sm:$0xf] %vm4298, %v4240
      %4306 = vst.msk [vmem:[%s194 + $0x1c] sm:$0xf] %vm4298, %v4241
      %4307 = vst.msk [vmem:[%s194 + $0x20] sm:$0xf] %vm4298, %v4242
      %4308 = vst.msk [vmem:[%s194 + $0x24] sm:$0xf] %vm4298, %v4243
      %4309 = vst.msk [vmem:[%s194 + $0x28] sm:$0xf] %vm4298, %v4244
      %4310 = vst.msk [vmem:[%s194 + $0x2c] sm:$0xf] %vm4298, %v4245
      %4311 = vst.msk [vmem:[%s194 + $0x30] sm:$0xf] %vm4298, %v4246
      %4312 = vst.msk [vmem:[%s194 + $0x34] sm:$0xf] %vm4298, %v4247
      %4313 = vst.msk [vmem:[%s194 + $0x38] sm:$0xf] %vm4298, %v4248
      %4314 = vst.msk [vmem:[%s194 + $0x3c] sm:$0xf] %vm4298, %v4249
      %4315 = vst.msk [vmem:[%s194 + $0x40] sm:$0xf] %vm4298, %v4250
      %4316 = vst.msk [vmem:[%s194 + $0x44] sm:$0xf] %vm4298, %v4251
      %4317 = vst.msk [vmem:[%s194 + $0x48] sm:$0xf] %vm4298, %v4252
      %4318 = vst.msk [vmem:[%s194 + $0x4c] sm:$0xf] %vm4298, %v4253
      %4319 = vst.msk [vmem:[%s194 + $0x50] sm:$0xf] %vm4298, %v4254
      %4320 = vst.msk [vmem:[%s194 + $0x54] sm:$0xf] %vm4298, %v4255
      %4321 = vst.msk [vmem:[%s194 + $0x58] sm:$0xf] %vm4298, %v4256
      %4322 = vst.msk [vmem:[%s194 + $0x5c] sm:$0xf] %vm4298, %v4257
      %4323 = vst.msk [vmem:[%s194 + $0x60] sm:$0xf] %vm4298, %v4258
      %4324 = vst.msk [vmem:[%s194 + $0x64] sm:$0xf] %vm4298, %v4259
      %4325 = vst.msk [vmem:[%s194 + $0x68] sm:$0xf] %vm4298, %v4260
      %4326 = vst.msk [vmem:[%s194 + $0x6c] sm:$0xf] %vm4298, %v4261
      %4327 = vst.msk [vmem:[%s194 + $0x70] sm:$0xf] %vm4298, %v4262
      %4328 = vst.msk [vmem:[%s194 + $0x74] sm:$0xf] %vm4298, %v4263
      %4329 = vst.msk [vmem:[%s194 + $0x78] sm:$0xf] %vm4298, %v4264
      %4330 = vst.msk [vmem:[%s194 + $0x7c] sm:$0xf] %vm4298, %v4265
      %s4331 = smul.u32 16, %s19
      %p4332 = scmp.lt.s32.totalorder %s18, 1
      %s4333 = scalar_select %p4332, %s18, 1
      %p4334 = scmp.lt.s32.totalorder %s4331, 15
      %s4335 = scalar_select %p4334, %s4331, 15
      %s4336 = smul.addr %s4335, 2
      %s4337 = smul.addr %s4333, 32
      %s4338 = sadd.s32 %s4336, %s4337
      %s4339 = smul.addr %s4338, 4
      %s4340 = scalar_lea.vmem %s3, %s4339
      // Predicated region
      $region37: #{bottleneck_forward.4} parent=31 // pred_check
        %p4341 = pneg %p114
      $region38: #{bottleneck_forward.4} parent=31 // pred_check_branch
        %4343 = sbr.rel (%p4341) target = $region40
      $region39: #{bottleneck_forward.4} parent=31 // pred_region
        %s4344 = smul.u32 16, %s19
      $region40: #{bottleneck_forward.4} parent=31 // pred_fallthru
        _
    $region32: #{bottleneck_forward.4} parent=5 // pred_fallthru
      _
    %p4345 = scmp.le.s32.totalorder 2, %s9
    // Predicated region
    $region41: #{bottleneck_forward.4} parent=5 // pred_check
      %p4346 = pneg %p4345
    $region42: #{bottleneck_forward.4} parent=5 // pred_check_branch
      %4348 = sbr.rel (%p4346) target = $region44
    $region43: #{bottleneck_forward.4} parent=5 // pred_region
      %s4349 = ssub.s32 %s9, 2
      // Predicated region
      $region45: #{bottleneck_forward.4} parent=43 // pred_check
        %p4350 = pneg %p120
      $region46: #{bottleneck_forward.4} parent=43 // pred_check_branch
        %4352 = sbr.rel (%p4350) target = $region48
      $region47: #{bottleneck_forward.4} parent=43 // pred_region
        %s4353 = smul.u32 16, %s21
        %p4354 = scmp.lt.s32.totalorder %s20, 1
        %s4355 = scalar_select %p4354, %s20, 1
        %p4356 = scmp.lt.s32.totalorder %s4353, 15
        %s4357 = scalar_select %p4356, %s4353, 15
        %s4358 = smul.addr %s4357, 2
        %s4359 = smul.addr %s4355, 32
        %s4360 = sadd.s32 %s4358, %s4359
        %s4361 = smul.addr %s4360, 4
        %s4362 = scalar_lea.vmem %s3, %s4361
      $region48: #{bottleneck_forward.4} parent=43 // pred_fallthru
        _
    $region44: #{bottleneck_forward.4} parent=5 // pred_fallthru
      _
  $region6: #{bottleneck_forward.4} parent=0 // loop_footer
    %s13 = sadd.s32 1, %s9
  $region7: #{bottleneck_forward.4} parent=0 // loop_footer_branch
    %8 = sbr.rel target = $region3
  $region8: #{bottleneck_forward.4} parent=0 // loop_exit
    _

</llo_original>
